<compile_context>
chip_gen: v6e
topology: v6e:2x2x1
jax: 0.10.0
libtpu: 0.0.40
codegen_flags: <defaults>
</compile_context>

<pallas_src>
import functools
import math

import numpy as np
import jax
import jax.numpy as jnp
from jax import lax
from jax.experimental import pallas as pl
from jax.experimental.pallas import tpu as pltpu

# Real spherical-harmonic constants (sphericart convention, no CS phase).
_C0 = 0.28209479177387814    # sqrt(1/(4 pi))
_C1 = 0.4886025119029199     # sqrt(3/(4 pi))


def _round_up(v, m):
    return ((v + m - 1) // m) * m


def _bf16_split(a_f32):
    """a = hi + lo with hi/lo bf16.  hi is exact; |lo rounding| <= 2^-16 |a|."""
    hi = a_f32.astype(jnp.bfloat16)
    lo = (a_f32 - hi.astype(jnp.float32)).astype(jnp.bfloat16)
    return hi, lo


def _dot2(a_hi, a_lo, w_ref):
    """f32 x {0,1} matmul as two native single-pass bf16 MXU matmuls.

    The 0/1 weight matrix is exact in bf16, so the only error is the bf16 rounding of
    the lo residual (<= 2^-16 relative) -- vs. 6 MXU passes for Precision.HIGHEST.
    """
    w = w_ref[...]
    return (jnp.dot(a_hi, w, preferred_element_type=jnp.float32)
            + jnp.dot(a_lo, w, preferred_element_type=jnp.float32))


def _eqbasis_kernel(x_ref, g_ref, s1_ref, s2_ref, c1_ref, c2_ref, slab_ref, *, E, dmax):
    """One grid step over TB*E edges.

    x_ref   : (TB, 3E)  f32   row-major view of (tile_n, 3): E edges/row, 3 coords each
    g_ref   : (3E, 3E)  bf16  0/1 de-interleave matrix -> lanes [xs | ys | zs]
                              (already applies sphericart's [2,0,1] input permutation)
    s1_ref  : (dmax*E, E*R1) bf16  fused 0/1 scatter matrix for coeff1 (packed layout)
    s2_ref  : (dmax*E, E*R2) bf16  fused 0/1 scatter matrix for coeff2 (packed layout)
    c1_ref  : (TB, E*R1) f32  row-major view of coeff1 (tile_n, R1)
    c2_ref  : (TB, E*R2) f32  row-major view of coeff2 (tile_n, R2)
    slab_ref: (TB, dmax*E) f32 VMEM scratch holding [sh0 | sh1 | ... ] lane blocks
    """
    x = x_ref[...]
    tb = x.shape[0]

    # l = 0 channel is a constant.
    slab_ref[:, 0:E] = jnp.full((tb, E), _C0, dtype=jnp.float32)

    if dmax > 1:
        # Fused coordinate de-interleave (sphericart [2,0,1] permutation) on the MXU.
        x_hi, x_lo = _bf16_split(x)
        coords = _dot2(x_hi, x_lo, g_ref)            # (TB, 3E) == [xs | ys | zs]
        xs = coords[:, 0 * E:1 * E]
        ys = coords[:, 1 * E:2 * E]
        zs = coords[:, 2 * E:3 * E]

        r2 = xs * xs + ys * ys + zs * zs
        # normalized=True + torch.nan_to_num(..., 0.0): l>=1 harmonics are 0 at r==0.
        inv_r = jnp.where(r2 > 0.0, lax.rsqrt(r2), 0.0)
        xn = xs * inv_r
        yn = ys * inv_r
        zn = zs * inv_r

        # Real spherical harmonics, index order l*l + l + m (lane-slice stores).
        slab_ref[:, 1 * E:2 * E] = _C1 * yn          # (1, -1)
        slab_ref[:, 2 * E:3 * E] = _C1 * zn          # (1,  0)
        slab_ref[:, 3 * E:4 * E] = _C1 * xn          # (1,  1)
        # TODO(synk): nreps >= 3 needs the l >= 2 sphericart recursion (not implemented).

    # Fused block-diagonal scatter: one K = dmax*E matmul per output, written directly.
    slab_hi, slab_lo = _bf16_split(slab_ref[...])
    c1_ref[...] = _dot2(slab_hi, slab_lo, s1_ref)
    c2_ref[...] = _dot2(slab_hi, slab_lo, s2_ref)


def equivariant_basis(x, *, nreps1=2, nreps2=2, tile_n=32768):
    """x: (n, 3) -> (coeff1 (n, nreps1**2, nreps1), coeff2 (n, nreps2, nreps2**2))."""
    n = x.shape[0]
    d1, d2 = nreps1 * nreps1, nreps2 * nreps2
    R1, R2 = d1 * nreps1, nreps2 * d2
    dmax = max(d1, d2)
    if dmax > 4:
        # TODO(synk): nreps >= 3 requires l >= 2 spherical harmonics (sphericart recursion).
        raise NotImplementedError("Pallas equivariant_basis currently supports nreps <= 2")

    E = 128                       # edges per packed output row -> full 128-lane vregs
    step = 8 * E                  # row granularity: 8 sublanes of E edges
    n_pad = _round_up(n, step)    # pad only to `step`, never to a whole tile
    rows = n_pad // E             # multiple of 8

    # Rows per grid step: as big as VMEM comfortably allows, capped so the grid has
    # >= 2 steps whenever possible (both v7x TensorCores busy under 'parallel').
    tb = _round_up(max(min(tile_n, n_pad), step), step) // E
    half_rows = _round_up(-(-rows // 2), 8)
    tb = min(tb, half_rows)
    grid = pl.cdiv(rows, tb)      # last block may be partial; Pallas masks OOB writeback

    x32 = x.astype(jnp.float32)
    if n_pad != n:
        x32 = jnp.pad(x32, ((0, n_pad - n), (0, 0)))
    x_rows = x32.reshape(rows, 3 * E)          # free row-major view of (n_pad, 3)

    # Constant 0/1 selection matrices (exactly representable in bf16 -> native MXU passes).
    g = np.zeros((3 * E, 3 * E), np.float32)
    for q in range(E):
        g[q * 3 + 2, 0 * E + q] = 1.0          # sphericart x = input column 2
        g[q * 3 + 0, 1 * E + q] = 1.0          # sphericart y = input column 0
        g[q * 3 + 1, 2 * E + q] = 1.0          # sphericart z = input column 1

    def scatter_mat(d, r, chan):
        s = np.zeros((dmax * E, E * r), np.float32)
        for k in range(d):
            j = math.isqrt(k)                  # irrep index with j**2 <= k < (j+1)**2
            ch = chan(k, j)
            for q in range(E):
                s[k * E + q, q * r + ch] = 1.0
        return s

    s1 = scatter_mat(d1, R1, lambda k, j: k * nreps1 + j)   # coeff1[:, k, j]
    s2 = scatter_mat(d2, R2, lambda k, j: j * d2 + k)       # coeff2[:, j, k]

    kern = functools.partial(_eqbasis_kernel, E=E, dmax=dmax)
    c1_rows, c2_rows = pl.pallas_call(
        kern,
        out_shape=(
            jax.ShapeDtypeStruct((rows, E * R1), jnp.float32),
            jax.ShapeDtypeStruct((rows, E * R2), jnp.float32),
        ),
        grid_spec=pltpu.PrefetchScalarGridSpec(
            num_scalar_prefetch=0,
            grid=(grid,),
            in_specs=[
                pl.BlockSpec((tb, 3 * E), lambda i: (i, 0)),
                pl.BlockSpec((3 * E, 3 * E), lambda i: (0, 0)),
                pl.BlockSpec((dmax * E, E * R1), lambda i: (0, 0)),
                pl.BlockSpec((dmax * E, E * R2), lambda i: (0, 0)),
            ],
            out_specs=(
                pl.BlockSpec((tb, E * R1), lambda i: (i, 0)),
                pl.BlockSpec((tb, E * R2), lambda i: (i, 0)),
            ),
            scratch_shapes=[pltpu.VMEM((tb, dmax * E), jnp.float32)],
        ),
        compiler_params=pltpu.CompilerParams(dimension_semantics=("parallel",)),
    )(x_rows,
      jnp.asarray(g, dtype=jnp.bfloat16),
      jnp.asarray(s1, dtype=jnp.bfloat16),
      jnp.asarray(s2, dtype=jnp.bfloat16))

    # Free row-major reshapes back to the PyTorch layouts; slice off any padding.
    coeff1 = c1_rows.reshape(n_pad, d1, nreps1)
    coeff2 = c2_rows.reshape(n_pad, nreps2, d2)
    if n_pad != n:
        coeff1 = coeff1[:n]
        coeff2 = coeff2[:n]
    return coeff1, coeff2


def _reference(x, nreps1, nreps2):
    """Pure-numpy reproduction of EquivariantBasis.forward (lmax <= 1)."""
    x = np.asarray(x, dtype=np.float32)
    xp = x[:, [2, 0, 1]]
    xs, ys, zs = xp[:, 0], xp[:, 1], xp[:, 2]
    r2 = xs * xs + ys * ys + zs * zs
    inv_r = np.where(r2 > 0.0, 1.0 / np.sqrt(np.where(r2 > 0.0, r2, 1.0)), 0.0)
    xn, yn, zn = xs * inv_r, ys * inv_r, zs * inv_r
    sh = np.stack(
        [np.full_like(xn, _C0), _C1 * yn, _C1 * zn, _C1 * xn], axis=-1
    ).astype(np.float32)

    nn = x.shape[0]
    d1, d2 = nreps1 * nreps1, nreps2 * nreps2
    c1 = np.zeros((nn, d1, nreps1), np.float32)
    c2 = np.zeros((nn, nreps2, d2), np.float32)
    for j in range(nreps1):
        lo_, hi_ = j * j, (j + 1) * (j + 1)
        c1[:, lo_:hi_, j] = sh[:, lo_:hi_]
    for j in range(nreps2):
        lo_, hi_ = j * j, (j + 1) * (j + 1)
        c2[:, j, lo_:hi_] = sh[:, lo_:hi_]
    return c1, c2


if __name__ == "__main__":
    # repr = ProductRepr(Repr(lvals=[0, 1]), Repr(lvals=[0, 1]))
    #   -> rep1.dim()=4, rep1.nreps()=2, rep2.nreps()=2, rep2.dim()=4
    NREPS1, NREPS2 = 2, 2

    def check(n, key, tile_n, zero_rows=0):
        x = jax.random.normal(jax.random.PRNGKey(key), (n, 3), dtype=jnp.float32)
        if zero_rows:
            x = x.at[:zero_rows].set(0.0)       # |x| == 0 -> nan_to_num(0.0) path
        f = jax.jit(functools.partial(
            equivariant_basis, nreps1=NREPS1, nreps2=NREPS2, tile_n=tile_n))
        c1, c2 = f(x)
        c1 = jax.block_until_ready(c1)
        c2 = jax.block_until_ready(c2)
        r1, r2 = _reference(np.asarray(x), NREPS1, NREPS2)
        assert c1.shape == (n, NREPS1 ** 2, NREPS1)
        assert c2.shape == (n, NREPS2, NREPS2 ** 2)
        np.testing.assert_allclose(np.asarray(c1), r1, rtol=1e-4, atol=1e-5)
        np.testing.assert_allclose(np.asarray(c2), r2, rtol=1e-4, atol=1e-5)

    # A: two full grid steps, includes zero-length edges (r == 0 handling).
    check(8192, key=0, tile_n=4096, zero_rows=3)
    # B: ragged edge count -> pad only to one 1024-edge step, single-step grid.
    check(1000, key=1, tile_n=32768)
    # C: ragged count + partial last block -> exercises masked OOB writeback.
    check(2500, key=2, tile_n=2048)

    print("KERNEL_OK")
</pallas_src>

<mosaic_0001>
module attributes {stable_mosaic.version = 11 : i64} {
  func.func @_eqbasis_kernel(%arg0: i32, %arg1: memref<32x384xf32, #tpu.memory_space<vmem>>, %arg2: memref<384x384xbf16, #tpu.memory_space<vmem>>, %arg3: memref<512x1024xbf16, #tpu.memory_space<vmem>>, %arg4: memref<512x1024xbf16, #tpu.memory_space<vmem>>, %arg5: memref<32x1024xf32, #tpu.memory_space<vmem>>, %arg6: memref<32x1024xf32, #tpu.memory_space<vmem>>, %arg7: memref<32x512xf32, #tpu.memory_space<vmem>>) attributes {dimension_semantics = [#tpu.dimension_semantics<parallel>], iteration_bounds = array<i64: 2>, scalar_prefetch = 0 : i64, scratch_operands = 1 : i64, tpu.core_type = #tpu.core_type<tc>, window_params = [{transform_indices = @transform_0, window_bounds = array<i64: 32, 384>}, {pipeline_mode = #tpu.pipeline_mode<synchronous>, transform_indices = @transform_1, window_bounds = array<i64: 384, 384>}, {pipeline_mode = #tpu.pipeline_mode<synchronous>, transform_indices = @transform_2, window_bounds = array<i64: 512, 1024>}, {pipeline_mode = #tpu.pipeline_mode<synchronous>, transform_indices = @transform_3, window_bounds = array<i64: 512, 1024>}, {transform_indices = @transform_4, window_bounds = array<i64: 32, 1024>}, {transform_indices = @transform_5, window_bounds = array<i64: 32, 1024>}]} {
    %c0 = arith.constant 0 : index
    %c0_0 = arith.constant 0 : index
    %0 = vector.load %arg1[%c0, %c0_0] : memref<32x384xf32, #tpu.memory_space<vmem>>, vector<32x384xf32>
    %cst = arith.constant 0.282094806 : f32
    %1 = vector.broadcast %cst : f32 to vector<32x128xf32>
    %c0_1 = arith.constant 0 : index
    %c0_2 = arith.constant 0 : index
    %2 = vector.load %arg7[%c0_1, %c0_2] : memref<32x512xf32, #tpu.memory_space<vmem>>, vector<32x128xf32>
    tpu.vector_store %arg7[%c0_1, %c0_2], %1 {strides = array<i32>} : memref<32x512xf32, #tpu.memory_space<vmem>>, vector<32x128xf32>,
    %3 = arith.truncf %0 : vector<32x384xf32> to vector<32x384xbf16>
    %4 = arith.extf %3 : vector<32x384xbf16> to vector<32x384xf32>
    %5 = arith.subf %0, %4 : vector<32x384xf32>
    %6 = arith.truncf %5 : vector<32x384xf32> to vector<32x384xbf16>
    %c0_3 = arith.constant 0 : index
    %c0_4 = arith.constant 0 : index
    %7 = vector.load %arg2[%c0_3, %c0_4] : memref<384x384xbf16, #tpu.memory_space<vmem>>, vector<384x384xbf16>
    %cst_5 = arith.constant dense<0.000000e+00> : vector<32x384xf32>
    %8 = tpu.matmul %3, %7, %cst_5 {dimension_numbers = #tpu.dot_dimension_numbers<[1], [0], [0], [1], [0, 0, 1, 1], [], []>} : vector<32x384xbf16>, vector<384x384xbf16>, vector<32x384xf32> -> vector<32x384xf32>
    %cst_6 = arith.constant dense<0.000000e+00> : vector<32x384xf32>
    %9 = tpu.matmul %6, %7, %cst_6 {dimension_numbers = #tpu.dot_dimension_numbers<[1], [0], [0], [1], [0, 0, 1, 1], [], []>} : vector<32x384xbf16>, vector<384x384xbf16>, vector<32x384xf32> -> vector<32x384xf32>
    %10 = arith.addf %8, %9 : vector<32x384xf32>
    %11 = vector.extract_strided_slice %10 {offsets = [0, 0], sizes = [32, 128], strides = [1, 1]} : vector<32x384xf32> to vector<32x128xf32>
    %12 = vector.extract_strided_slice %10 {offsets = [0, 128], sizes = [32, 128], strides = [1, 1]} : vector<32x384xf32> to vector<32x128xf32>
    %13 = vector.extract_strided_slice %10 {offsets = [0, 256], sizes = [32, 128], strides = [1, 1]} : vector<32x384xf32> to vector<32x128xf32>
    %14 = arith.mulf %11, %11 : vector<32x128xf32>
    %15 = arith.mulf %12, %12 : vector<32x128xf32>
    %16 = arith.addf %14, %15 : vector<32x128xf32>
    %17 = arith.mulf %13, %13 : vector<32x128xf32>
    %18 = arith.addf %16, %17 : vector<32x128xf32>
    %cst_7 = arith.constant 0.000000e+00 : f32
    %19 = vector.broadcast %cst_7 : f32 to vector<32x128xf32>
    %20 = arith.cmpf ogt, %18, %19 : vector<32x128xf32>
    %21 = math.rsqrt %18 : vector<32x128xf32>
    %cst_8 = arith.constant 0.000000e+00 : f32
    %22 = vector.broadcast %cst_8 : f32 to vector<32x128xf32>
    %23 = arith.select %20, %21, %22 : vector<32x128xi1>, vector<32x128xf32>
    %24 = arith.mulf %11, %23 : vector<32x128xf32>
    %25 = arith.mulf %12, %23 : vector<32x128xf32>
    %26 = arith.mulf %13, %23 : vector<32x128xf32>
    %cst_9 = arith.constant 0.488602519 : f32
    %27 = vector.broadcast %cst_9 : f32 to vector<32x128xf32>
    %28 = arith.mulf %27, %25 : vector<32x128xf32>
    %c0_10 = arith.constant 0 : index
    %c128 = arith.constant 128 : index
    %29 = vector.load %arg7[%c0_10, %c128] : memref<32x512xf32, #tpu.memory_space<vmem>>, vector<32x128xf32>
    tpu.vector_store %arg7[%c0_10, %c128], %28 {strides = array<i32>} : memref<32x512xf32, #tpu.memory_space<vmem>>, vector<32x128xf32>,
    %cst_11 = arith.constant 0.488602519 : f32
    %30 = vector.broadcast %cst_11 : f32 to vector<32x128xf32>
    %31 = arith.mulf %30, %26 : vector<32x128xf32>
    %c0_12 = arith.constant 0 : index
    %c256 = arith.constant 256 : index
    %32 = vector.load %arg7[%c0_12, %c256] : memref<32x512xf32, #tpu.memory_space<vmem>>, vector<32x128xf32>
    tpu.vector_store %arg7[%c0_12, %c256], %31 {strides = array<i32>} : memref<32x512xf32, #tpu.memory_space<vmem>>, vector<32x128xf32>,
    %cst_13 = arith.constant 0.488602519 : f32
    %33 = vector.broadcast %cst_13 : f32 to vector<32x128xf32>
    %34 = arith.mulf %33, %24 : vector<32x128xf32>
    %c0_14 = arith.constant 0 : index
    %c384 = arith.constant 384 : index
    %35 = vector.load %arg7[%c0_14, %c384] : memref<32x512xf32, #tpu.memory_space<vmem>>, vector<32x128xf32>
    tpu.vector_store %arg7[%c0_14, %c384], %34 {strides = array<i32>} : memref<32x512xf32, #tpu.memory_space<vmem>>, vector<32x128xf32>,
    %c0_15 = arith.constant 0 : index
    %c0_16 = arith.constant 0 : index
    %36 = vector.load %arg7[%c0_15, %c0_16] : memref<32x512xf32, #tpu.memory_space<vmem>>, vector<32x512xf32>
    %37 = arith.truncf %36 : vector<32x512xf32> to vector<32x512xbf16>
    %38 = arith.extf %37 : vector<32x512xbf16> to vector<32x512xf32>
    %39 = arith.subf %36, %38 : vector<32x512xf32>
    %40 = arith.truncf %39 : vector<32x512xf32> to vector<32x512xbf16>
    %c0_17 = arith.constant 0 : index
    %c0_18 = arith.constant 0 : index
    %41 = vector.load %arg3[%c0_17, %c0_18] : memref<512x1024xbf16, #tpu.memory_space<vmem>>, vector<512x1024xbf16>
    %cst_19 = arith.constant dense<0.000000e+00> : vector<32x1024xf32>
    %42 = tpu.matmul %37, %41, %cst_19 {dimension_numbers = #tpu.dot_dimension_numbers<[1], [0], [0], [1], [0, 0, 1, 1], [], []>} : vector<32x512xbf16>, vector<512x1024xbf16>, vector<32x1024xf32> -> vector<32x1024xf32>
    %cst_20 = arith.constant dense<0.000000e+00> : vector<32x1024xf32>
    %43 = tpu.matmul %40, %41, %cst_20 {dimension_numbers = #tpu.dot_dimension_numbers<[1], [0], [0], [1], [0, 0, 1, 1], [], []>} : vector<32x512xbf16>, vector<512x1024xbf16>, vector<32x1024xf32> -> vector<32x1024xf32>
    %44 = arith.addf %42, %43 : vector<32x1024xf32>
    %c0_21 = arith.constant 0 : index
    %c0_22 = arith.constant 0 : index
    %45 = vector.load %arg5[%c0_21, %c0_22] : memref<32x1024xf32, #tpu.memory_space<vmem>>, vector<32x1024xf32>
    tpu.vector_store %arg5[%c0_21, %c0_22], %44 {strides = array<i32>} : memref<32x1024xf32, #tpu.memory_space<vmem>>, vector<32x1024xf32>,
    %c0_23 = arith.constant 0 : index
    %c0_24 = arith.constant 0 : index
    %46 = vector.load %arg4[%c0_23, %c0_24] : memref<512x1024xbf16, #tpu.memory_space<vmem>>, vector<512x1024xbf16>
    %cst_25 = arith.constant dense<0.000000e+00> : vector<32x1024xf32>
    %47 = tpu.matmul %37, %46, %cst_25 {dimension_numbers = #tpu.dot_dimension_numbers<[1], [0], [0], [1], [0, 0, 1, 1], [], []>} : vector<32x512xbf16>, vector<512x1024xbf16>, vector<32x1024xf32> -> vector<32x1024xf32>
    %cst_26 = arith.constant dense<0.000000e+00> : vector<32x1024xf32>
    %48 = tpu.matmul %40, %46, %cst_26 {dimension_numbers = #tpu.dot_dimension_numbers<[1], [0], [0], [1], [0, 0, 1, 1], [], []>} : vector<32x512xbf16>, vector<512x1024xbf16>, vector<32x1024xf32> -> vector<32x1024xf32>
    %49 = arith.addf %47, %48 : vector<32x1024xf32>
    %c0_27 = arith.constant 0 : index
    %c0_28 = arith.constant 0 : index
    %50 = vector.load %arg6[%c0_27, %c0_28] : memref<32x1024xf32, #tpu.memory_space<vmem>>, vector<32x1024xf32>
    tpu.vector_store %arg6[%c0_27, %c0_28], %49 {strides = array<i32>} : memref<32x1024xf32, #tpu.memory_space<vmem>>, vector<32x1024xf32>,
    return
  }
  func.func @transform_0(%arg0: i32) -> (i32, i32) {
    %c0_i32 = arith.constant 0 : i32
    %c0_i32_0 = arith.constant 0 : i32
    return %arg0, %c0_i32 : i32, i32
  }
  func.func @transform_1(%arg0: i32) -> (i32, i32) {
    %c0_i32 = arith.constant 0 : i32
    %c0_i32_0 = arith.constant 0 : i32
    %c0_i32_1 = arith.constant 0 : i32
    return %c0_i32, %c0_i32_0 : i32, i32
  }
  func.func @transform_2(%arg0: i32) -> (i32, i32) {
    %c0_i32 = arith.constant 0 : i32
    %c0_i32_0 = arith.constant 0 : i32
    %c0_i32_1 = arith.constant 0 : i32
    return %c0_i32, %c0_i32_0 : i32, i32
  }
  func.func @transform_3(%arg0: i32) -> (i32, i32) {
    %c0_i32 = arith.constant 0 : i32
    %c0_i32_0 = arith.constant 0 : i32
    %c0_i32_1 = arith.constant 0 : i32
    return %c0_i32, %c0_i32_0 : i32, i32
  }
  func.func @transform_4(%arg0: i32) -> (i32, i32) {
    %c0_i32 = arith.constant 0 : i32
    %c0_i32_0 = arith.constant 0 : i32
    return %arg0, %c0_i32 : i32, i32
  }
  func.func @transform_5(%arg0: i32) -> (i32, i32) {
    %c0_i32 = arith.constant 0 : i32
    %c0_i32_0 = arith.constant 0 : i32
    return %arg0, %c0_i32 : i32, i32
  }
}

</mosaic_0001>

<llo_original>
// kernel: equivariant_basis.1
$region0: #{equivariant_basis.1}
  #allocation0 [shape = 'u32[]', space=smem, size = 0x4, offset = 0x4, fixed_abs, tag = 'smem constant byte address 0x4 - core index']
  #allocation1 [shape = 'u32[144,128]{1,0:T(1,128)}', space=vmem, size = 0x12000, scoped, tag = 'internal scratch']
  #allocation2 [shape = 'f32[32,512]{1,0:T(8,128)}', space=vmem, size = 0x10000, scoped, tag = 'scratch operand']
  %s0 = inlined_call_operand.vmem [shape: f32[64,384], index: 0, kind: input, shape index: {}]
  %s1 = inlined_call_operand.vmem [shape: bf16[384,384], index: 1, kind: input, shape index: {}]
  %s2 = inlined_call_operand.vmem [shape: bf16[512,1024], index: 2, kind: input, shape index: {}]
  %s3 = inlined_call_operand.vmem [shape: bf16[512,1024], index: 3, kind: input, shape index: {}]
  %s4 = inlined_call_operand.vmem [shape: f32[64,1024], index: 4, kind: output, shape index: {0}]
  %s5 = inlined_call_operand.vmem [shape: f32[64,1024], index: 5, kind: output, shape index: {1}]
  %6 = xla_tuple %s4, %s5
  %s7 = sld [smem:[#allocation0]]
  $region57: #{equivariant_basis.1} parent=0
    _
  %s9 = ssub.s32 1, %s7
  %s10 = scalar_select 0, %s9, %s7
  loop: start=0, step=1, limit=4
  $region2: #{equivariant_basis.1} parent=0 // loop_pre_header
    _
  $region3: #{equivariant_basis.1} parent=0 // loop_header
    %s12 = sphi 0, %s16
    %p13 = scmp.ge.s32.totalorder %s12, 4
    %s22 = sphi 0, %s24
    %s25 = sphi 0, %s22
    %s26 = sphi 0, %s25
    %s42 = sphi 0, %s26
    %s46 = sphi 0, %s46
    %s48 = sphi 0, %s46
    %s49 = sphi 0, %s48
    %s63 = sphi 0, %s49
    %s67 = sphi 0, %s67
    %s69 = sphi 0, %s67
    %s70 = sphi 0, %s69
    %s84 = sphi 0, %s70
    %s88 = sphi 0, %s88
    %s90 = sphi 0, %s88
    %s91 = sphi 0, %s90
    %s105 = sphi 0, %s91
    %s111 = sphi 0, %s113
    %s114 = sphi 0, %s111
    %s115 = sphi 0, %s114
    %s131 = sphi 0, %s115
    %s137 = sphi 0, %s139
    %s140 = sphi 0, %s137
    %s141 = sphi 0, %s140
    %s157 = sphi 0, %s141
  $region4: #{equivariant_basis.1} parent=0 // loop_header_branch
    %15 = sbr.rel (%p13) target = $region8
  $region5: #{equivariant_basis.1} parent=0 // loop_body
    %s17 = ssub.s32 %s12, 1
    %s18 = ssub.s32 %s12, 2
    %s19 = sadd.s32 %s12, 1
    %s20 = ssub.s32 %s12, %s19
    %p21 = scmp.eq.s32.totalorder %s20, 0
    %s23 = sadd.s32 %s22, 1
    %s24 = scalar_select %p21, %s22, %s23
    %p27 = pneg %p21
    %p28 = scmp.eq.s32.totalorder %s12, 1
    %p29 = por %p27, %p28
    %p30 = scmp.ne.s32.totalorder %s22, %s25
    %p31 = scmp.eq.s32.totalorder %s12, 0
    %p32 = por %p30, %p31
    %p33 = scmp.ne.s32.totalorder %s22, %s25
    %p34 = scmp.eq.s32.totalorder %s17, 1
    %p35 = por %p33, %p34
    %p36 = scmp.ne.s32.totalorder %s25, %s26
    %p37 = scmp.eq.s32.totalorder %s17, 0
    %p38 = por %p36, %p37
    %p39 = scmp.ne.s32.totalorder %s25, %s26
    %p40 = scmp.eq.s32.totalorder %s18, 1
    %p41 = por %p39, %p40
    %p43 = scmp.ne.s32.totalorder %s26, %s42
    %p44 = scmp.eq.s32.totalorder %s18, 0
    %p45 = por %p43, %p44
    %s47 = sadd.s32 %s46, 1
    %p50 = scmp.eq.s32.totalorder %s12, 1
    %p51 = scmp.ne.s32.totalorder %s46, %s48
    %p52 = scmp.eq.s32.totalorder %s12, 0
    %p53 = por %p51, %p52
    %p54 = scmp.ne.s32.totalorder %s46, %s48
    %p55 = scmp.eq.s32.totalorder %s17, 1
    %p56 = por %p54, %p55
    %p57 = scmp.ne.s32.totalorder %s48, %s49
    %p58 = scmp.eq.s32.totalorder %s17, 0
    %p59 = por %p57, %p58
    %p60 = scmp.ne.s32.totalorder %s48, %s49
    %p61 = scmp.eq.s32.totalorder %s18, 1
    %p62 = por %p60, %p61
    %p64 = scmp.ne.s32.totalorder %s49, %s63
    %p65 = scmp.eq.s32.totalorder %s18, 0
    %p66 = por %p64, %p65
    %s68 = sadd.s32 %s67, 1
    %p71 = scmp.eq.s32.totalorder %s12, 1
    %p72 = scmp.ne.s32.totalorder %s67, %s69
    %p73 = scmp.eq.s32.totalorder %s12, 0
    %p74 = por %p72, %p73
    %p75 = scmp.ne.s32.totalorder %s67, %s69
    %p76 = scmp.eq.s32.totalorder %s17, 1
    %p77 = por %p75, %p76
    %p78 = scmp.ne.s32.totalorder %s69, %s70
    %p79 = scmp.eq.s32.totalorder %s17, 0
    %p80 = por %p78, %p79
    %p81 = scmp.ne.s32.totalorder %s69, %s70
    %p82 = scmp.eq.s32.totalorder %s18, 1
    %p83 = por %p81, %p82
    %p85 = scmp.ne.s32.totalorder %s70, %s84
    %p86 = scmp.eq.s32.totalorder %s18, 0
    %p87 = por %p85, %p86
    %s89 = sadd.s32 %s88, 1
    %p92 = scmp.eq.s32.totalorder %s12, 1
    %p93 = scmp.ne.s32.totalorder %s88, %s90
    %p94 = scmp.eq.s32.totalorder %s12, 0
    %p95 = por %p93, %p94
    %p96 = scmp.ne.s32.totalorder %s88, %s90
    %p97 = scmp.eq.s32.totalorder %s17, 1
    %p98 = por %p96, %p97
    %p99 = scmp.ne.s32.totalorder %s90, %s91
    %p100 = scmp.eq.s32.totalorder %s17, 0
    %p101 = por %p99, %p100
    %p102 = scmp.ne.s32.totalorder %s90, %s91
    %p103 = scmp.eq.s32.totalorder %s18, 1
    %p104 = por %p102, %p103
    %p106 = scmp.ne.s32.totalorder %s91, %s105
    %p107 = scmp.eq.s32.totalorder %s18, 0
    %p108 = por %p106, %p107
    %s109 = ssub.s32 %s12, %s19
    %p110 = scmp.eq.s32.totalorder %s109, 0
    %s112 = sadd.s32 %s111, 1
    %s113 = scalar_select %p110, %s111, %s112
    %p116 = pneg %p110
    %p117 = scmp.eq.s32.totalorder %s12, 1
    %p118 = por %p116, %p117
    %p119 = scmp.ne.s32.totalorder %s111, %s114
    %p120 = scmp.eq.s32.totalorder %s12, 0
    %p121 = por %p119, %p120
    %p122 = scmp.ne.s32.totalorder %s111, %s114
    %p123 = scmp.eq.s32.totalorder %s17, 1
    %p124 = por %p122, %p123
    %p125 = scmp.ne.s32.totalorder %s114, %s115
    %p126 = scmp.eq.s32.totalorder %s17, 0
    %p127 = por %p125, %p126
    %p128 = scmp.ne.s32.totalorder %s114, %s115
    %p129 = scmp.eq.s32.totalorder %s18, 1
    %p130 = por %p128, %p129
    %p132 = scmp.ne.s32.totalorder %s115, %s131
    %p133 = scmp.eq.s32.totalorder %s18, 0
    %p134 = por %p132, %p133
    %s135 = ssub.s32 %s12, %s19
    %p136 = scmp.eq.s32.totalorder %s135, 0
    %s138 = sadd.s32 %s137, 1
    %s139 = scalar_select %p136, %s137, %s138
    %p142 = pneg %p136
    %p143 = scmp.eq.s32.totalorder %s12, 1
    %p144 = por %p142, %p143
    %p145 = scmp.ne.s32.totalorder %s137, %s140
    %p146 = scmp.eq.s32.totalorder %s12, 0
    %p147 = por %p145, %p146
    %p148 = scmp.ne.s32.totalorder %s137, %s140
    %p149 = scmp.eq.s32.totalorder %s17, 1
    %p150 = por %p148, %p149
    %p151 = scmp.ne.s32.totalorder %s140, %s141
    %p152 = scmp.eq.s32.totalorder %s17, 0
    %p153 = por %p151, %p152
    %p154 = scmp.ne.s32.totalorder %s140, %s141
    %p155 = scmp.eq.s32.totalorder %s18, 1
    %p156 = por %p154, %p155
    %p158 = scmp.ne.s32.totalorder %s141, %s157
    %p159 = scmp.eq.s32.totalorder %s18, 0
    %p160 = por %p158, %p159
    %p161 = scmp.le.s32.totalorder 1, %s12
    %p162 = scmp.lt.s32.totalorder %s12, 3
    %p163 = pnand %p161, %p162
    %p164 = pneg %p163
    // Predicated region
    $region9: #{equivariant_basis.1} parent=5 // pred_check
      _
    $region10: #{equivariant_basis.1} parent=5 // pred_check_branch
      %166 = sbr.rel (%p163) target = $region12
    $region11: #{equivariant_basis.1} parent=5 // pred_region
      %s167 = ssub.s32 %s12, 1
      // Predicated region
      $region13: #{equivariant_basis.1} parent=11 // pred_check
        %p168 = pneg %p59
      $region14: #{equivariant_basis.1} parent=11 // pred_check_branch
        %170 = sbr.rel (%p168) target = $region16
      $region15: #{equivariant_basis.1} parent=11 // pred_region
        _
      $region16: #{equivariant_basis.1} parent=11 // pred_fallthru
        _
      // Predicated region
      $region17: #{equivariant_basis.1} parent=11 // pred_check
        %p171 = pneg %p80
      $region18: #{equivariant_basis.1} parent=11 // pred_check_branch
        %173 = sbr.rel (%p171) target = $region20
      $region19: #{equivariant_basis.1} parent=11 // pred_region
        _
      $region20: #{equivariant_basis.1} parent=11 // pred_fallthru
        _
      // Predicated region
      $region21: #{equivariant_basis.1} parent=11 // pred_check
        %p174 = pneg %p101
      $region22: #{equivariant_basis.1} parent=11 // pred_check_branch
        %176 = sbr.rel (%p174) target = $region24
      $region23: #{equivariant_basis.1} parent=11 // pred_region
        _
      $region24: #{equivariant_basis.1} parent=11 // pred_fallthru
        _
    $region12: #{equivariant_basis.1} parent=5 // pred_fallthru
      _
    %p177 = scmp.lt.s32.totalorder %s12, 2
    // Predicated region
    $region25: #{equivariant_basis.1} parent=5 // pred_check
      %p178 = pneg %p177
    $region26: #{equivariant_basis.1} parent=5 // pred_check_branch
      %180 = sbr.rel (%p178) target = $region28
    $region27: #{equivariant_basis.1} parent=5 // pred_region
      // Predicated region
      $region29: #{equivariant_basis.1} parent=27 // pred_check
        %p181 = pneg %p32
      $region30: #{equivariant_basis.1} parent=27 // pred_check_branch
        %183 = sbr.rel (%p181) target = $region32
      $region31: #{equivariant_basis.1} parent=27 // pred_region
        %s184 = smul.u32 4, %s12
        %p185 = scmp.lt.s32.totalorder %s184, 7
        %s186 = scalar_select %p185, %s184, 7
        %s187 = smul.addr %s186, 3
        %s188 = smul.addr %s187, 8
        %s189 = scalar_lea.vmem %s0, %s188
        %s190 = smul.u32 4, %s12
      $region32: #{equivariant_basis.1} parent=27 // pred_fallthru
        _
    $region28: #{equivariant_basis.1} parent=5 // pred_fallthru
      _
    %p191 = scmp.le.s32.totalorder 1, %s12
    %p192 = scmp.lt.s32.totalorder %s12, 3
    %p193 = pnand %p191, %p192
    %p194 = pneg %p193
    // Predicated region
    $region33: #{equivariant_basis.1} parent=5 // pred_check
      _
    $region34: #{equivariant_basis.1} parent=5 // pred_check_branch
      %196 = sbr.rel (%p193) target = $region36
    $region35: #{equivariant_basis.1} parent=5 // pred_region
      %s197 = ssub.s32 %s12, 1
      %s198 = smul.u32 4, %s17
      %p199 = scmp.lt.s32.totalorder %s198, 7
      %s200 = scalar_select %p199, %s198, 7
      %s201 = smul.addr %s200, 3
      %s202 = smul.addr %s201, 8
      %s203 = scalar_lea.vmem %s0, %s202
      %p204 = pneg %p38
      %p205 = pneg %p35
      %p206 = pneg %p59
      %p207 = pneg %p56
      %p208 = pneg %p80
      %p209 = pneg %p77
      %p210 = pneg %p101
      %p211 = pneg %p98
      %p212 = pneg %p127
      %p213 = pneg %p124
      %s214 = smul.u32 4, %s17
      %p215 = scmp.lt.s32.totalorder %s214, 7
      %s216 = scalar_select %p215, %s214, 7
      %s217 = smul.addr %s216, 8
      %s218 = smul.addr %s217, 8
      %s219 = scalar_lea.vmem %s4, %s218
      %p220 = pneg %p153
      %p221 = pneg %p150
      %s222 = smul.u32 4, %s17
      %p223 = scmp.lt.s32.totalorder %s222, 7
      %s224 = scalar_select %p223, %s222, 7
      %s225 = smul.addr %s224, 8
      %s226 = smul.addr %s225, 8
      %s227 = scalar_lea.vmem %s5, %s226
      %s228 = smul.u32 4, %s17
      %p229 = scmp.lt.s32.totalorder %s228, 7
      %s230 = scalar_select %p229, %s228, 7
      %s231 = smul.addr %s230, 3
      %s232 = smul.addr %s231, 8
      %s233 = scalar_lea.vmem %s0, %s232
      %s234 = smul.u32 4, %s17
      %s235 = smul.u32 4, %s17
      %p236 = scmp.lt.s32.totalorder %s235, 7
      %s237 = scalar_select %p236, %s235, 7
      %s238 = smul.addr %s237, 8
      %s239 = smul.addr %s238, 8
      %s240 = scalar_lea.vmem %s4, %s239
      %s241 = smul.u32 4, %s17
      %s242 = smul.u32 4, %s17
      %p243 = scmp.lt.s32.totalorder %s242, 7
      %s244 = scalar_select %p243, %s242, 7
      %s245 = smul.addr %s244, 8
      %s246 = smul.addr %s245, 8
      %s247 = scalar_lea.vmem %s5, %s246
      %s248 = smul.u32 4, %s17
      %v250 = vld [vmem:[%s233] sm:$0xff]
      %v251 = vld [vmem:[%s233 + $0x8] sm:$0xff]
      %v252 = vld [vmem:[%s233 + $0x10] sm:$0xff]
      %v253 = vld [vmem:[%s233 + $0x18] sm:$0xff]
      %v254 = vld [vmem:[%s233 + $0x20] sm:$0xff]
      %v255 = vld [vmem:[%s233 + $0x28] sm:$0xff]
      %v256 = vld [vmem:[%s233 + $0x30] sm:$0xff]
      %v257 = vld [vmem:[%s233 + $0x38] sm:$0xff]
      %v258 = vld [vmem:[%s233 + $0x40] sm:$0xff]
      %v259 = vld [vmem:[%s233 + $0x48] sm:$0xff]
      %v260 = vld [vmem:[%s233 + $0x50] sm:$0xff]
      %v261 = vld [vmem:[%s233 + $0x58] sm:$0xff]
      %262 = vst [vmem:[#allocation2] sm:$0xff] 0.2820948
      %263 = vst [vmem:[#allocation2 + $0x20] sm:$0xff] 0.2820948
      %264 = vst [vmem:[#allocation2 + $0x40] sm:$0xff] 0.2820948
      %265 = vst [vmem:[#allocation2 + $0x60] sm:$0xff] 0.2820948
      %v266 = vpack.c.bf16 %v253, %v250
      %v267 = vpack.c.bf16 %v254, %v251
      %v268 = vpack.c.bf16 %v255, %v252
      %v269 = vpack.c.bf16 %v259, %v256
      %v270 = vpack.c.bf16 %v260, %v257
      %v271 = vpack.c.bf16 %v261, %v258
      %v272 = vunpack.c.l.bf16 %v266
      %v273 = vunpack.c.l.bf16 %v267
      %v274 = vunpack.c.l.bf16 %v268
      %v275 = vunpack.c.h.bf16 %v266
      %v276 = vunpack.c.h.bf16 %v267
      %v277 = vunpack.c.h.bf16 %v268
      %v278 = vunpack.c.l.bf16 %v269
      %v279 = vunpack.c.l.bf16 %v270
      %v280 = vunpack.c.l.bf16 %v271
      %v281 = vunpack.c.h.bf16 %v269
      %v282 = vunpack.c.h.bf16 %v270
      %v283 = vunpack.c.h.bf16 %v271
      %v284 = vsub.f32 %v250, %v272
      %v285 = vsub.f32 %v251, %v273
      %v286 = vsub.f32 %v252, %v274
      %v287 = vsub.f32 %v253, %v275
      %v288 = vsub.f32 %v254, %v276
      %v289 = vsub.f32 %v255, %v277
      %v290 = vsub.f32 %v256, %v278
      %v291 = vsub.f32 %v257, %v279
      %v292 = vsub.f32 %v258, %v280
      %v293 = vsub.f32 %v259, %v281
      %v294 = vsub.f32 %v260, %v282
      %v295 = vsub.f32 %v261, %v283
      %v296 = vpack.c.bf16 %v287, %v284
      %v297 = vpack.c.bf16 %v288, %v285
      %v298 = vpack.c.bf16 %v289, %v286
      %v299 = vpack.c.bf16 %v293, %v290
      %v300 = vpack.c.bf16 %v294, %v291
      %v301 = vpack.c.bf16 %v295, %v292
      %v302 = vld [vmem:[%s1] sm:$0xff]
      %v303 = vld [vmem:[%s1 + $0x8] sm:$0xf]
      %v304 = vld [vmem:[%s1 + $0xc] sm:$0xff]
      %v305 = vld [vmem:[%s1 + $0x14] sm:$0xf]
      %v306 = vld [vmem:[%s1 + $0x18] sm:$0xff]
      %v307 = vld [vmem:[%s1 + $0x20] sm:$0xf]
      %v308 = vld [vmem:[%s1 + $0x24] sm:$0xff]
      %v309 = vld [vmem:[%s1 + $0x2c] sm:$0xf]
      %v310 = vld [vmem:[%s1 + $0x30] sm:$0xff]
      %v311 = vld [vmem:[%s1 + $0x38] sm:$0xf]
      %v312 = vld [vmem:[%s1 + $0x3c] sm:$0xff]
      %v313 = vld [vmem:[%s1 + $0x44] sm:$0xf]
      %v314 = vld [vmem:[%s1 + $0x48] sm:$0xff]
      %v315 = vld [vmem:[%s1 + $0x50] sm:$0xf]
      %v316 = vld [vmem:[%s1 + $0x54] sm:$0xff]
      %v317 = vld [vmem:[%s1 + $0x5c] sm:$0xf]
      %v318 = vld [vmem:[%s1 + $0x60] sm:$0xff]
      %v319 = vld [vmem:[%s1 + $0x68] sm:$0xf]
      %v320 = vld [vmem:[%s1 + $0x6c] sm:$0xff]
      %v321 = vld [vmem:[%s1 + $0x74] sm:$0xf]
      %v322 = vld [vmem:[%s1 + $0x78] sm:$0xff]
      %v323 = vld [vmem:[%s1 + $0x80] sm:$0xf]
      %v324 = vld [vmem:[%s1 + $0x84] sm:$0xff]
      %v325 = vld [vmem:[%s1 + $0x8c] sm:$0xf]
      %v326 = vld [vmem:[%s1 + $0x90] sm:$0xff]
      %v327 = vld [vmem:[%s1 + $0x98] sm:$0xf]
      %v328 = vld [vmem:[%s1 + $0x9c] sm:$0xff]
      %v329 = vld [vmem:[%s1 + $0xa4] sm:$0xf]
      %v330 = vld [vmem:[%s1 + $0xa8] sm:$0xff]
      %v331 = vld [vmem:[%s1 + $0xb0] sm:$0xf]
      %v332 = vld [vmem:[%s1 + $0xb4] sm:$0xff]
      %v333 = vld [vmem:[%s1 + $0xbc] sm:$0xf]
      %v334 = vld [vmem:[%s1 + $0xc0] sm:$0xff]
      %v335 = vld [vmem:[%s1 + $0xc8] sm:$0xf]
      %v336 = vld [vmem:[%s1 + $0xcc] sm:$0xff]
      %v337 = vld [vmem:[%s1 + $0xd4] sm:$0xf]
      %v338 = vld [vmem:[%s1 + $0xd8] sm:$0xff]
      %v339 = vld [vmem:[%s1 + $0xe0] sm:$0xf]
      %v340 = vld [vmem:[%s1 + $0xe4] sm:$0xff]
      %v341 = vld [vmem:[%s1 + $0xec] sm:$0xf]
      %v342 = vld [vmem:[%s1 + $0xf0] sm:$0xff]
      %v343 = vld [vmem:[%s1 + $0xf8] sm:$0xf]
      %v344 = vld [vmem:[%s1 + $0xfc] sm:$0xff]
      %v345 = vld [vmem:[%s1 + $0x104] sm:$0xf]
      %v346 = vld [vmem:[%s1 + $0x108] sm:$0xff]
      %v347 = vld [vmem:[%s1 + $0x110] sm:$0xf]
      %v348 = vld [vmem:[%s1 + $0x114] sm:$0xff]
      %v349 = vld [vmem:[%s1 + $0x11c] sm:$0xf]
      %v350 = vld [vmem:[%s1 + $0x120] sm:$0xff]
      %v351 = vld [vmem:[%s1 + $0x128] sm:$0xf]
      %v352 = vld [vmem:[%s1 + $0x12c] sm:$0xff]
      %v353 = vld [vmem:[%s1 + $0x134] sm:$0xf]
      %v354 = vld [vmem:[%s1 + $0x138] sm:$0xff]
      %v355 = vld [vmem:[%s1 + $0x140] sm:$0xf]
      %v356 = vld [vmem:[%s1 + $0x144] sm:$0xff]
      %v357 = vld [vmem:[%s1 + $0x14c] sm:$0xf]
      %v358 = vld [vmem:[%s1 + $0x150] sm:$0xff]
      %v359 = vld [vmem:[%s1 + $0x158] sm:$0xf]
      %v360 = vld [vmem:[%s1 + $0x15c] sm:$0xff]
      %v361 = vld [vmem:[%s1 + $0x164] sm:$0xf]
      %v362 = vld [vmem:[%s1 + $0x168] sm:$0xff]
      %v363 = vld [vmem:[%s1 + $0x170] sm:$0xf]
      %v364 = vld [vmem:[%s1 + $0x174] sm:$0xff]
      %v365 = vld [vmem:[%s1 + $0x17c] sm:$0xf]
      %v366 = vld [vmem:[%s1 + $0x180] sm:$0xff]
      %v367 = vld [vmem:[%s1 + $0x188] sm:$0xf]
      %v368 = vld [vmem:[%s1 + $0x18c] sm:$0xff]
      %v369 = vld [vmem:[%s1 + $0x194] sm:$0xf]
      %v370 = vld [vmem:[%s1 + $0x198] sm:$0xff]
      %v371 = vld [vmem:[%s1 + $0x1a0] sm:$0xf]
      %v372 = vld [vmem:[%s1 + $0x1a4] sm:$0xff]
      %v373 = vld [vmem:[%s1 + $0x1ac] sm:$0xf]
      %v374 = vld [vmem:[%s1 + $0x1b0] sm:$0xff]
      %v375 = vld [vmem:[%s1 + $0x1b8] sm:$0xf]
      %v376 = vld [vmem:[%s1 + $0x1bc] sm:$0xff]
      %v377 = vld [vmem:[%s1 + $0x1c4] sm:$0xf]
      %v378 = vld [vmem:[%s1 + $0x1c8] sm:$0xff]
      %v379 = vld [vmem:[%s1 + $0x1d0] sm:$0xf]
      %v380 = vld [vmem:[%s1 + $0x1d4] sm:$0xff]
      %v381 = vld [vmem:[%s1 + $0x1dc] sm:$0xf]
      %v382 = vld [vmem:[%s1 + $0x1e0] sm:$0xff]
      %v383 = vld [vmem:[%s1 + $0x1e8] sm:$0xf]
      %v384 = vld [vmem:[%s1 + $0x1ec] sm:$0xff]
      %v385 = vld [vmem:[%s1 + $0x1f4] sm:$0xf]
      %v386 = vld [vmem:[%s1 + $0x1f8] sm:$0xff]
      %v387 = vld [vmem:[%s1 + $0x200] sm:$0xf]
      %v388 = vld [vmem:[%s1 + $0x204] sm:$0xff]
      %v389 = vld [vmem:[%s1 + $0x20c] sm:$0xf]
      %v390 = vld [vmem:[%s1 + $0x210] sm:$0xff]
      %v391 = vld [vmem:[%s1 + $0x218] sm:$0xf]
      %v392 = vld [vmem:[%s1 + $0x21c] sm:$0xff]
      %v393 = vld [vmem:[%s1 + $0x224] sm:$0xf]
      %v394 = vld [vmem:[%s1 + $0x228] sm:$0xff]
      %v395 = vld [vmem:[%s1 + $0x230] sm:$0xf]
      %v396 = vld [vmem:[%s1 + $0x234] sm:$0xff]
      %v397 = vld [vmem:[%s1 + $0x23c] sm:$0xf]
      %v494 = vunpack.c.l.b16 %v302
      %v495 = vunpack.c.h.b16 %v302
      %v496 = vunpack.c.l.b16 %v303
      %v497 = vunpack.c.l.b16 %v304
      %v498 = vunpack.c.h.b16 %v304
      %v499 = vunpack.c.l.b16 %v305
      %v500 = vunpack.c.l.b16 %v306
      %v501 = vunpack.c.h.b16 %v306
      %v502 = vunpack.c.l.b16 %v307
      %v503 = vunpack.c.l.b16 %v308
      %v504 = vunpack.c.h.b16 %v308
      %v505 = vunpack.c.l.b16 %v309
      %v506 = vunpack.c.l.b16 %v310
      %v507 = vunpack.c.h.b16 %v310
      %v508 = vunpack.c.l.b16 %v311
      %v509 = vunpack.c.l.b16 %v312
      %v510 = vunpack.c.h.b16 %v312
      %v511 = vunpack.c.l.b16 %v313
      %v512 = vunpack.c.l.b16 %v314
      %v513 = vunpack.c.h.b16 %v314
      %v514 = vunpack.c.l.b16 %v315
      %v515 = vunpack.c.l.b16 %v316
      %v516 = vunpack.c.h.b16 %v316
      %v517 = vunpack.c.l.b16 %v317
      %v518 = vunpack.c.l.b16 %v318
      %v519 = vunpack.c.h.b16 %v318
      %v520 = vunpack.c.l.b16 %v319
      %v521 = vunpack.c.l.b16 %v320
      %v522 = vunpack.c.h.b16 %v320
      %v523 = vunpack.c.l.b16 %v321
      %v524 = vunpack.c.l.b16 %v322
      %v525 = vunpack.c.h.b16 %v322
      %v526 = vunpack.c.l.b16 %v323
      %v527 = vunpack.c.l.b16 %v324
      %v528 = vunpack.c.h.b16 %v324
      %v529 = vunpack.c.l.b16 %v325
      %v530 = vunpack.c.l.b16 %v326
      %v531 = vunpack.c.h.b16 %v326
      %v532 = vunpack.c.l.b16 %v327
      %v533 = vunpack.c.l.b16 %v328
      %v534 = vunpack.c.h.b16 %v328
      %v535 = vunpack.c.l.b16 %v329
      %v536 = vunpack.c.l.b16 %v330
      %v537 = vunpack.c.h.b16 %v330
      %v538 = vunpack.c.l.b16 %v331
      %v539 = vunpack.c.l.b16 %v332
      %v540 = vunpack.c.h.b16 %v332
      %v541 = vunpack.c.l.b16 %v333
      %v542 = vunpack.c.l.b16 %v334
      %v543 = vunpack.c.h.b16 %v334
      %v544 = vunpack.c.l.b16 %v335
      %v545 = vunpack.c.l.b16 %v336
      %v546 = vunpack.c.h.b16 %v336
      %v547 = vunpack.c.l.b16 %v337
      %v548 = vunpack.c.l.b16 %v338
      %v549 = vunpack.c.h.b16 %v338
      %v550 = vunpack.c.l.b16 %v339
      %v551 = vunpack.c.l.b16 %v340
      %v552 = vunpack.c.h.b16 %v340
      %v553 = vunpack.c.l.b16 %v341
      %v554 = vunpack.c.l.b16 %v342
      %v555 = vunpack.c.h.b16 %v342
      %v556 = vunpack.c.l.b16 %v343
      %v557 = vunpack.c.l.b16 %v344
      %v558 = vunpack.c.h.b16 %v344
      %v559 = vunpack.c.l.b16 %v345
      %v560 = vunpack.c.l.b16 %v346
      %v561 = vunpack.c.h.b16 %v346
      %v562 = vunpack.c.l.b16 %v347
      %v563 = vunpack.c.l.b16 %v348
      %v564 = vunpack.c.h.b16 %v348
      %v565 = vunpack.c.l.b16 %v349
      %v566 = vunpack.c.l.b16 %v350
      %v567 = vunpack.c.h.b16 %v350
      %v568 = vunpack.c.l.b16 %v351
      %v569 = vunpack.c.l.b16 %v352
      %v570 = vunpack.c.h.b16 %v352
      %v571 = vunpack.c.l.b16 %v353
      %v572 = vunpack.c.l.b16 %v354
      %v573 = vunpack.c.h.b16 %v354
      %v574 = vunpack.c.l.b16 %v355
      %v575 = vunpack.c.l.b16 %v356
      %v576 = vunpack.c.h.b16 %v356
      %v577 = vunpack.c.l.b16 %v357
      %v578 = vunpack.c.l.b16 %v358
      %v579 = vunpack.c.h.b16 %v358
      %v580 = vunpack.c.l.b16 %v359
      %v581 = vunpack.c.l.b16 %v360
      %v582 = vunpack.c.h.b16 %v360
      %v583 = vunpack.c.l.b16 %v361
      %v584 = vunpack.c.l.b16 %v362
      %v585 = vunpack.c.h.b16 %v362
      %v586 = vunpack.c.l.b16 %v363
      %v587 = vunpack.c.l.b16 %v364
      %v588 = vunpack.c.h.b16 %v364
      %v589 = vunpack.c.l.b16 %v365
      %v590 = vunpack.c.l.b16 %v366
      %v591 = vunpack.c.h.b16 %v366
      %v592 = vunpack.c.l.b16 %v367
      %v593 = vunpack.c.l.b16 %v368
      %v594 = vunpack.c.h.b16 %v368
      %v595 = vunpack.c.l.b16 %v369
      %v596 = vunpack.c.l.b16 %v370
      %v597 = vunpack.c.h.b16 %v370
      %v598 = vunpack.c.l.b16 %v371
      %v599 = vunpack.c.l.b16 %v372
      %v600 = vunpack.c.h.b16 %v372
      %v601 = vunpack.c.l.b16 %v373
      %v602 = vunpack.c.l.b16 %v374
      %v603 = vunpack.c.h.b16 %v374
      %v604 = vunpack.c.l.b16 %v375
      %v605 = vunpack.c.l.b16 %v376
      %v606 = vunpack.c.h.b16 %v376
      %v607 = vunpack.c.l.b16 %v377
      %v608 = vunpack.c.l.b16 %v378
      %v609 = vunpack.c.h.b16 %v378
      %v610 = vunpack.c.l.b16 %v379
      %v611 = vunpack.c.l.b16 %v380
      %v612 = vunpack.c.h.b16 %v380
      %v613 = vunpack.c.l.b16 %v381
      %v614 = vunpack.c.l.b16 %v382
      %v615 = vunpack.c.h.b16 %v382
      %v616 = vunpack.c.l.b16 %v383
      %v617 = vunpack.c.l.b16 %v384
      %v618 = vunpack.c.h.b16 %v384
      %v619 = vunpack.c.l.b16 %v385
      %v620 = vunpack.c.l.b16 %v386
      %v621 = vunpack.c.h.b16 %v386
      %v622 = vunpack.c.l.b16 %v387
      %v623 = vunpack.c.l.b16 %v388
      %v624 = vunpack.c.h.b16 %v388
      %v625 = vunpack.c.l.b16 %v389
      %v626 = vunpack.c.l.b16 %v390
      %v627 = vunpack.c.h.b16 %v390
      %v628 = vunpack.c.l.b16 %v391
      %v629 = vunpack.c.l.b16 %v392
      %v630 = vunpack.c.h.b16 %v392
      %v631 = vunpack.c.l.b16 %v393
      %v632 = vunpack.c.l.b16 %v394
      %v633 = vunpack.c.h.b16 %v394
      %v634 = vunpack.c.l.b16 %v395
      %v635 = vunpack.c.l.b16 %v396
      %v636 = vunpack.c.h.b16 %v396
      %v637 = vunpack.c.l.b16 %v397
      %v638 = vpack.c.b16 %v497, %v494
      %v639 = vpack.c.b16 %v498, %v495
      %v640 = vpack.c.b16 %v499, %v496
      %v641 = vpack.c.b16 %v503, %v500
      %v642 = vpack.c.b16 %v504, %v501
      %v643 = vpack.c.b16 %v505, %v502
      %v644 = vpack.c.b16 %v509, %v506
      %v645 = vpack.c.b16 %v510, %v507
      %v646 = vpack.c.b16 %v511, %v508
      %v647 = vpack.c.b16 %v515, %v512
      %v648 = vpack.c.b16 %v516, %v513
      %v649 = vpack.c.b16 %v517, %v514
      %v650 = vpack.c.b16 %v521, %v518
      %v651 = vpack.c.b16 %v522, %v519
      %v652 = vpack.c.b16 %v523, %v520
      %v653 = vpack.c.b16 %v527, %v524
      %v654 = vpack.c.b16 %v528, %v525
      %v655 = vpack.c.b16 %v529, %v526
      %v656 = vpack.c.b16 %v533, %v530
      %v657 = vpack.c.b16 %v534, %v531
      %v658 = vpack.c.b16 %v535, %v532
      %v659 = vpack.c.b16 %v539, %v536
      %v660 = vpack.c.b16 %v540, %v537
      %v661 = vpack.c.b16 %v541, %v538
      %v662 = vpack.c.b16 %v545, %v542
      %v663 = vpack.c.b16 %v546, %v543
      %v664 = vpack.c.b16 %v547, %v544
      %v665 = vpack.c.b16 %v551, %v548
      %v666 = vpack.c.b16 %v552, %v549
      %v667 = vpack.c.b16 %v553, %v550
      %v668 = vpack.c.b16 %v557, %v554
      %v669 = vpack.c.b16 %v558, %v555
      %v670 = vpack.c.b16 %v559, %v556
      %v671 = vpack.c.b16 %v563, %v560
      %v672 = vpack.c.b16 %v564, %v561
      %v673 = vpack.c.b16 %v565, %v562
      %v674 = vpack.c.b16 %v569, %v566
      %v675 = vpack.c.b16 %v570, %v567
      %v676 = vpack.c.b16 %v571, %v568
      %v677 = vpack.c.b16 %v575, %v572
      %v678 = vpack.c.b16 %v576, %v573
      %v679 = vpack.c.b16 %v577, %v574
      %v680 = vpack.c.b16 %v581, %v578
      %v681 = vpack.c.b16 %v582, %v579
      %v682 = vpack.c.b16 %v583, %v580
      %v683 = vpack.c.b16 %v587, %v584
      %v684 = vpack.c.b16 %v588, %v585
      %v685 = vpack.c.b16 %v589, %v586
      %v686 = vpack.c.b16 %v593, %v590
      %v687 = vpack.c.b16 %v594, %v591
      %v688 = vpack.c.b16 %v595, %v592
      %v689 = vpack.c.b16 %v599, %v596
      %v690 = vpack.c.b16 %v600, %v597
      %v691 = vpack.c.b16 %v601, %v598
      %v692 = vpack.c.b16 %v605, %v602
      %v693 = vpack.c.b16 %v606, %v603
      %v694 = vpack.c.b16 %v607, %v604
      %v695 = vpack.c.b16 %v611, %v608
      %v696 = vpack.c.b16 %v612, %v609
      %v697 = vpack.c.b16 %v613, %v610
      %v698 = vpack.c.b16 %v617, %v614
      %v699 = vpack.c.b16 %v618, %v615
      %v700 = vpack.c.b16 %v619, %v616
      %v701 = vpack.c.b16 %v623, %v620
      %v702 = vpack.c.b16 %v624, %v621
      %v703 = vpack.c.b16 %v625, %v622
      %v704 = vpack.c.b16 %v629, %v626
      %v705 = vpack.c.b16 %v630, %v627
      %v706 = vpack.c.b16 %v631, %v628
      %v707 = vpack.c.b16 %v635, %v632
      %v708 = vpack.c.b16 %v636, %v633
      %v709 = vpack.c.b16 %v637, %v634
      %782 = vmatprep.subr.bf16.mxu0 %v660
      %783 = vmatpush1.bf16.msra.mxu0 %v659
      %784 = vmatprep.subr.bf16.mxu0 %v657
      %785 = vmatpush1.bf16.msra.mxu0 %v656
      %786 = vmatprep.subr.bf16.mxu0 %v654
      %787 = vmatpush1.bf16.msra.mxu0 %v653
      %788 = vmatprep.subr.bf16.mxu0 %v651
      %789 = vmatpush1.bf16.msra.mxu0 %v650
      %790 = vmatprep.subr.bf16.mxu0 %v648
      %791 = vmatpush1.bf16.msra.mxu0 %v647
      %792 = vmatprep.subr.bf16.mxu0 %v645
      %793 = vmatpush1.bf16.msra.mxu0 %v644
      %794 = vmatprep.subr.bf16.mxu0 %v642
      %795 = vmatpush1.bf16.msra.mxu0 %v641
      %796 = vmatprep.subr.bf16.mxu0 %v639
      %797 = vmatpush1.bf16.msra.mxu0 %v638
      %798 = vmatprep.subr.bf16.mxu0 %v684
      %799 = vmatpush2.bf16.msra.mxu0 %v683
      %800 = vmatprep.subr.bf16.mxu0 %v681
      %801 = vmatpush2.bf16.msra.mxu0 %v680
      %802 = vmatprep.subr.bf16.mxu0 %v678
      %803 = vmatpush2.bf16.msra.mxu0 %v677
      %804 = vmatprep.subr.bf16.mxu0 %v675
      %805 = vmatpush2.bf16.msra.mxu0 %v674
      %806 = vmatprep.subr.bf16.mxu0 %v672
      %807 = vmatpush2.bf16.msra.mxu0 %v671
      %808 = vmatprep.subr.bf16.mxu0 %v669
      %809 = vmatpush2.bf16.msra.mxu0 %v668
      %810 = vmatprep.subr.bf16.mxu0 %v666
      %811 = vmatpush2.bf16.msra.mxu0 %v665
      %812 = vmatprep.subr.bf16.mxu0 %v663
      %813 = vmatpush2.bf16.msra.mxu0 %v662
      %814 = vmatprep.mubr.bf16.mxu0 %v297
      %815 = vmatmul.mubr.bf16.gmra.mxu0 %v296
      %v816 = vpop.f32.mrf.mxu0
      %v817 = vadd.f32 0.0, %v816
      %v818 = vpop.f32.mrf.mxu0
      %v819 = vadd.f32 0.0, %v818
      %v820 = vpop.f32.mrf.mxu0
      %v821 = vadd.f32 0.0, %v820
      %v822 = vpop.f32.mrf.mxu0
      %v823 = vadd.f32 0.0, %v822
      %824 = vmatprep.mubr.bf16.mxu0 %v300
      %825 = vmatmul.mubr.bf16.gmra.mxu0 %v299
      %v826 = vpop.f32.mrf.mxu0
      %v827 = vadd.f32 0.0, %v826
      %v828 = vpop.f32.mrf.mxu0
      %v829 = vadd.f32 0.0, %v828
      %v830 = vpop.f32.mrf.mxu0
      %v831 = vadd.f32 0.0, %v830
      %v832 = vpop.f32.mrf.mxu0
      %v833 = vadd.f32 0.0, %v832
      %834 = vdwg.mxu0
      %835 = vmatprep.subr.bf16.mxu0 %v708
      %836 = vmatpush1.bf16.msra.mxu0 %v707
      %837 = vmatprep.subr.bf16.mxu0 %v705
      %838 = vmatpush1.bf16.msra.mxu0 %v704
      %839 = vmatprep.subr.bf16.mxu0 %v702
      %840 = vmatpush1.bf16.msra.mxu0 %v701
      %841 = vmatprep.subr.bf16.mxu0 %v699
      %842 = vmatpush1.bf16.msra.mxu0 %v698
      %843 = vmatprep.subr.bf16.mxu0 %v696
      %844 = vmatpush1.bf16.msra.mxu0 %v695
      %845 = vmatprep.subr.bf16.mxu0 %v693
      %846 = vmatpush1.bf16.msra.mxu0 %v692
      %847 = vmatprep.subr.bf16.mxu0 %v690
      %848 = vmatpush1.bf16.msra.mxu0 %v689
      %849 = vmatprep.subr.bf16.mxu0 %v687
      %850 = vmatpush1.bf16.msra.mxu0 %v686
      %851 = vmatprep.subr.bf16.mxu0 0
      %852 = vmatpush2.bf16.msra.mxu0 0
      %853 = vmatprep.subr.bf16.mxu0 0
      %854 = vmatpush2.bf16.msra.mxu0 0
      %855 = vmatprep.subr.bf16.mxu0 0
      %856 = vmatpush2.bf16.msra.mxu0 0
      %857 = vmatprep.subr.bf16.mxu0 0
      %858 = vmatpush2.bf16.msra.mxu0 0
      %859 = vmatprep.subr.bf16.mxu0 0
      %860 = vmatpush2.bf16.msra.mxu0 0
      %861 = vmatprep.subr.bf16.mxu0 0
      %862 = vmatpush2.bf16.msra.mxu0 0
      %863 = vmatprep.subr.bf16.mxu0 0
      %864 = vmatpush2.bf16.msra.mxu0 0
      %865 = vmatprep.subr.bf16.mxu0 0
      %866 = vmatpush2.bf16.msra.mxu0 0
      %867 = vmatprep.mubr.bf16.mxu0 0
      %868 = vmatmul.mubr.bf16.gmra.mxu0 %v298
      %v869 = vpop.f32.mrf.mxu0
      %v870 = vadd.f32 %v817, %v869
      %v871 = vpop.f32.mrf.mxu0
      %v872 = vadd.f32 %v819, %v871
      %v873 = vpop.f32.mrf.mxu0
      %v874 = vadd.f32 %v821, %v873
      %v875 = vpop.f32.mrf.mxu0
      %v876 = vadd.f32 %v823, %v875
      %877 = vmatprep.mubr.bf16.mxu0 0
      %878 = vmatmul.mubr.bf16.gmra.mxu0 %v301
      %v879 = vpop.f32.mrf.mxu0
      %v880 = vadd.f32 %v827, %v879
      %v881 = vpop.f32.mrf.mxu0
      %v882 = vadd.f32 %v829, %v881
      %v883 = vpop.f32.mrf.mxu0
      %v884 = vadd.f32 %v831, %v883
      %v885 = vpop.f32.mrf.mxu0
      %v886 = vadd.f32 %v833, %v885
      %887 = vdwg.mxu0
      %888 = vmatprep.subr.bf16.mxu0 0
      %889 = vmatpush1.bf16.msra.mxu0 %v661
      %890 = vmatprep.subr.bf16.mxu0 0
      %891 = vmatpush1.bf16.msra.mxu0 %v658
      %892 = vmatprep.subr.bf16.mxu0 0
      %893 = vmatpush1.bf16.msra.mxu0 %v655
      %894 = vmatprep.subr.bf16.mxu0 0
      %895 = vmatpush1.bf16.msra.mxu0 %v652
      %896 = vmatprep.subr.bf16.mxu0 0
      %897 = vmatpush1.bf16.msra.mxu0 %v649
      %898 = vmatprep.subr.bf16.mxu0 0
      %899 = vmatpush1.bf16.msra.mxu0 %v646
      %900 = vmatprep.subr.bf16.mxu0 0
      %901 = vmatpush1.bf16.msra.mxu0 %v643
      %902 = vmatprep.subr.bf16.mxu0 0
      %903 = vmatpush1.bf16.msra.mxu0 %v640
      %904 = vmatprep.subr.bf16.mxu0 0
      %905 = vmatpush2.bf16.msra.mxu0 %v685
      %906 = vmatprep.subr.bf16.mxu0 0
      %907 = vmatpush2.bf16.msra.mxu0 %v682
      %908 = vmatprep.subr.bf16.mxu0 0
      %909 = vmatpush2.bf16.msra.mxu0 %v679
      %910 = vmatprep.subr.bf16.mxu0 0
      %911 = vmatpush2.bf16.msra.mxu0 %v676
      %912 = vmatprep.subr.bf16.mxu0 0
      %913 = vmatpush2.bf16.msra.mxu0 %v673
      %914 = vmatprep.subr.bf16.mxu0 0
      %915 = vmatpush2.bf16.msra.mxu0 %v670
      %916 = vmatprep.subr.bf16.mxu0 0
      %917 = vmatpush2.bf16.msra.mxu0 %v667
      %918 = vmatprep.subr.bf16.mxu0 0
      %919 = vmatpush2.bf16.msra.mxu0 %v664
      %920 = vmatprep.mubr.bf16.mxu0 %v297
      %921 = vmatmul.mubr.bf16.gmra.mxu0 %v296
      %v922 = vpop.f32.mrf.mxu0
      %v923 = vadd.f32 0.0, %v922
      %v924 = vpop.f32.mrf.mxu0
      %v925 = vpop.f32.mrf.mxu0
      %v926 = vadd.f32 0.0, %v925
      %v927 = vpop.f32.mrf.mxu0
      %928 = vmatprep.mubr.bf16.mxu0 %v300
      %929 = vmatmul.mubr.bf16.gmra.mxu0 %v299
      %v930 = vpop.f32.mrf.mxu0
      %v931 = vadd.f32 0.0, %v930
      %v932 = vpop.f32.mrf.mxu0
      %v933 = vpop.f32.mrf.mxu0
      %v934 = vadd.f32 0.0, %v933
      %v935 = vpop.f32.mrf.mxu0
      %936 = vdwg.mxu0
      %937 = vmatprep.subr.bf16.mxu0 0
      %938 = vmatpush1.bf16.msra.mxu0 %v709
      %939 = vmatprep.subr.bf16.mxu0 0
      %940 = vmatpush1.bf16.msra.mxu0 %v706
      %941 = vmatprep.subr.bf16.mxu0 0
      %942 = vmatpush1.bf16.msra.mxu0 %v703
      %943 = vmatprep.subr.bf16.mxu0 0
      %944 = vmatpush1.bf16.msra.mxu0 %v700
      %945 = vmatprep.subr.bf16.mxu0 0
      %946 = vmatpush1.bf16.msra.mxu0 %v697
      %947 = vmatprep.subr.bf16.mxu0 0
      %948 = vmatpush1.bf16.msra.mxu0 %v694
      %949 = vmatprep.subr.bf16.mxu0 0
      %950 = vmatpush1.bf16.msra.mxu0 %v691
      %951 = vmatprep.subr.bf16.mxu0 0
      %952 = vmatpush1.bf16.msra.mxu0 %v688
      %953 = vmatprep.subr.bf16.mxu0 0
      %954 = vmatpush2.bf16.msra.mxu0 0
      %955 = vmatprep.subr.bf16.mxu0 0
      %956 = vmatpush2.bf16.msra.mxu0 0
      %957 = vmatprep.subr.bf16.mxu0 0
      %958 = vmatpush2.bf16.msra.mxu0 0
      %959 = vmatprep.subr.bf16.mxu0 0
      %960 = vmatpush2.bf16.msra.mxu0 0
      %961 = vmatprep.subr.bf16.mxu0 0
      %962 = vmatpush2.bf16.msra.mxu0 0
      %963 = vmatprep.subr.bf16.mxu0 0
      %964 = vmatpush2.bf16.msra.mxu0 0
      %965 = vmatprep.subr.bf16.mxu0 0
      %966 = vmatpush2.bf16.msra.mxu0 0
      %967 = vmatprep.subr.bf16.mxu0 0
      %968 = vmatpush2.bf16.msra.mxu0 0
      %969 = vmatprep.mubr.bf16.mxu0 0
      %970 = vmatmul.mubr.bf16.gmra.mxu0 %v298
      %v971 = vpop.f32.mrf.mxu0
      %v972 = vadd.f32 %v923, %v971
      %v973 = vpop.f32.mrf.mxu0
      %v974 = vpop.f32.mrf.mxu0
      %v975 = vadd.f32 %v926, %v974
      %v976 = vpop.f32.mrf.mxu0
      %977 = vmatprep.mubr.bf16.mxu0 0
      %978 = vmatmul.mubr.bf16.gmra.mxu0 %v301
      %v979 = vpop.f32.mrf.mxu0
      %v980 = vadd.f32 %v931, %v979
      %v981 = vpop.f32.mrf.mxu0
      %v982 = vpop.f32.mrf.mxu0
      %v983 = vadd.f32 %v934, %v982
      %v984 = vpop.f32.mrf.mxu0
      %985 = vdwg.mxu0
      %986 = vmatprep.subr.bf16.mxu0 %v660
      %987 = vmatpush1.bf16.msra.mxu0 %v659
      %988 = vmatprep.subr.bf16.mxu0 %v657
      %989 = vmatpush1.bf16.msra.mxu0 %v656
      %990 = vmatprep.subr.bf16.mxu0 %v654
      %991 = vmatpush1.bf16.msra.mxu0 %v653
      %992 = vmatprep.subr.bf16.mxu0 %v651
      %993 = vmatpush1.bf16.msra.mxu0 %v650
      %994 = vmatprep.subr.bf16.mxu0 %v648
      %995 = vmatpush1.bf16.msra.mxu0 %v647
      %996 = vmatprep.subr.bf16.mxu0 %v645
      %997 = vmatpush1.bf16.msra.mxu0 %v644
      %998 = vmatprep.subr.bf16.mxu0 %v642
      %999 = vmatpush1.bf16.msra.mxu0 %v641
      %1000 = vmatprep.subr.bf16.mxu0 %v639
      %1001 = vmatpush1.bf16.msra.mxu0 %v638
      %1002 = vmatprep.subr.bf16.mxu0 %v684
      %1003 = vmatpush2.bf16.msra.mxu0 %v683
      %1004 = vmatprep.subr.bf16.mxu0 %v681
      %1005 = vmatpush2.bf16.msra.mxu0 %v680
      %1006 = vmatprep.subr.bf16.mxu0 %v678
      %1007 = vmatpush2.bf16.msra.mxu0 %v677
      %1008 = vmatprep.subr.bf16.mxu0 %v675
      %1009 = vmatpush2.bf16.msra.mxu0 %v674
      %1010 = vmatprep.subr.bf16.mxu0 %v672
      %1011 = vmatpush2.bf16.msra.mxu0 %v671
      %1012 = vmatprep.subr.bf16.mxu0 %v669
      %1013 = vmatpush2.bf16.msra.mxu0 %v668
      %1014 = vmatprep.subr.bf16.mxu0 %v666
      %1015 = vmatpush2.bf16.msra.mxu0 %v665
      %1016 = vmatprep.subr.bf16.mxu0 %v663
      %1017 = vmatpush2.bf16.msra.mxu0 %v662
      %1018 = vmatprep.mubr.bf16.mxu0 %v267
      %1019 = vmatmul.mubr.bf16.gmra.mxu0 %v266
      %v1020 = vpop.f32.mrf.mxu0
      %v1021 = vadd.f32 %v870, %v1020
      %v1022 = vpop.f32.mrf.mxu0
      %v1023 = vadd.f32 %v872, %v1022
      %v1024 = vpop.f32.mrf.mxu0
      %v1025 = vadd.f32 %v874, %v1024
      %v1026 = vpop.f32.mrf.mxu0
      %v1027 = vadd.f32 %v876, %v1026
      %1028 = vmatprep.mubr.bf16.mxu0 %v270
      %1029 = vmatmul.mubr.bf16.gmra.mxu0 %v269
      %v1030 = vpop.f32.mrf.mxu0
      %v1031 = vadd.f32 %v880, %v1030
      %v1032 = vpop.f32.mrf.mxu0
      %v1033 = vadd.f32 %v882, %v1032
      %v1034 = vpop.f32.mrf.mxu0
      %v1035 = vadd.f32 %v884, %v1034
      %v1036 = vpop.f32.mrf.mxu0
      %v1037 = vadd.f32 %v886, %v1036
      %1038 = vdwg.mxu0
      %1039 = vmatprep.subr.bf16.mxu0 %v708
      %1040 = vmatpush1.bf16.msra.mxu0 %v707
      %1041 = vmatprep.subr.bf16.mxu0 %v705
      %1042 = vmatpush1.bf16.msra.mxu0 %v704
      %1043 = vmatprep.subr.bf16.mxu0 %v702
      %1044 = vmatpush1.bf16.msra.mxu0 %v701
      %1045 = vmatprep.subr.bf16.mxu0 %v699
      %1046 = vmatpush1.bf16.msra.mxu0 %v698
      %1047 = vmatprep.subr.bf16.mxu0 %v696
      %1048 = vmatpush1.bf16.msra.mxu0 %v695
      %1049 = vmatprep.subr.bf16.mxu0 %v693
      %1050 = vmatpush1.bf16.msra.mxu0 %v692
      %1051 = vmatprep.subr.bf16.mxu0 %v690
      %1052 = vmatpush1.bf16.msra.mxu0 %v689
      %1053 = vmatprep.subr.bf16.mxu0 %v687
      %1054 = vmatpush1.bf16.msra.mxu0 %v686
      %1055 = vmatprep.subr.bf16.mxu0 0
      %1056 = vmatpush2.bf16.msra.mxu0 0
      %1057 = vmatprep.subr.bf16.mxu0 0
      %1058 = vmatpush2.bf16.msra.mxu0 0
      %1059 = vmatprep.subr.bf16.mxu0 0
      %1060 = vmatpush2.bf16.msra.mxu0 0
      %1061 = vmatprep.subr.bf16.mxu0 0
      %1062 = vmatpush2.bf16.msra.mxu0 0
      %1063 = vmatprep.subr.bf16.mxu0 0
      %1064 = vmatpush2.bf16.msra.mxu0 0
      %1065 = vmatprep.subr.bf16.mxu0 0
      %1066 = vmatpush2.bf16.msra.mxu0 0
      %1067 = vmatprep.subr.bf16.mxu0 0
      %1068 = vmatpush2.bf16.msra.mxu0 0
      %1069 = vmatprep.subr.bf16.mxu0 0
      %1070 = vmatpush2.bf16.msra.mxu0 0
      %1071 = vmatprep.mubr.bf16.mxu0 0
      %1072 = vmatmul.mubr.bf16.gmra.mxu0 %v268
      %v1073 = vpop.f32.mrf.mxu0
      %v1074 = vadd.f32 %v1021, %v1073
      %v1075 = vpop.f32.mrf.mxu0
      %v1076 = vadd.f32 %v1023, %v1075
      %v1077 = vpop.f32.mrf.mxu0
      %v1078 = vadd.f32 %v1025, %v1077
      %v1079 = vpop.f32.mrf.mxu0
      %v1080 = vadd.f32 %v1027, %v1079
      %1081 = vmatprep.mubr.bf16.mxu0 0
      %1082 = vmatmul.mubr.bf16.gmra.mxu0 %v271
      %v1083 = vpop.f32.mrf.mxu0
      %v1084 = vadd.f32 %v1031, %v1083
      %v1085 = vpop.f32.mrf.mxu0
      %v1086 = vadd.f32 %v1033, %v1085
      %v1087 = vpop.f32.mrf.mxu0
      %v1088 = vadd.f32 %v1035, %v1087
      %v1089 = vpop.f32.mrf.mxu0
      %v1090 = vadd.f32 %v1037, %v1089
      %1091 = vdwg.mxu0
      %1092 = vmatprep.subr.bf16.mxu0 0
      %1093 = vmatpush1.bf16.msra.mxu0 %v661
      %1094 = vmatprep.subr.bf16.mxu0 0
      %1095 = vmatpush1.bf16.msra.mxu0 %v658
      %1096 = vmatprep.subr.bf16.mxu0 0
      %1097 = vmatpush1.bf16.msra.mxu0 %v655
      %1098 = vmatprep.subr.bf16.mxu0 0
      %1099 = vmatpush1.bf16.msra.mxu0 %v652
      %1100 = vmatprep.subr.bf16.mxu0 0
      %1101 = vmatpush1.bf16.msra.mxu0 %v649
      %1102 = vmatprep.subr.bf16.mxu0 0
      %1103 = vmatpush1.bf16.msra.mxu0 %v646
      %1104 = vmatprep.subr.bf16.mxu0 0
      %1105 = vmatpush1.bf16.msra.mxu0 %v643
      %1106 = vmatprep.subr.bf16.mxu0 0
      %1107 = vmatpush1.bf16.msra.mxu0 %v640
      %1108 = vmatprep.subr.bf16.mxu0 0
      %1109 = vmatpush2.bf16.msra.mxu0 %v685
      %1110 = vmatprep.subr.bf16.mxu0 0
      %1111 = vmatpush2.bf16.msra.mxu0 %v682
      %1112 = vmatprep.subr.bf16.mxu0 0
      %1113 = vmatpush2.bf16.msra.mxu0 %v679
      %1114 = vmatprep.subr.bf16.mxu0 0
      %1115 = vmatpush2.bf16.msra.mxu0 %v676
      %1116 = vmatprep.subr.bf16.mxu0 0
      %1117 = vmatpush2.bf16.msra.mxu0 %v673
      %1118 = vmatprep.subr.bf16.mxu0 0
      %1119 = vmatpush2.bf16.msra.mxu0 %v670
      %1120 = vmatprep.subr.bf16.mxu0 0
      %1121 = vmatpush2.bf16.msra.mxu0 %v667
      %1122 = vmatprep.subr.bf16.mxu0 0
      %1123 = vmatpush2.bf16.msra.mxu0 %v664
      %1124 = vmatprep.mubr.bf16.mxu0 %v267
      %1125 = vmatmul.mubr.bf16.gmra.mxu0 %v266
      %v1126 = vpop.f32.mrf.mxu0
      %v1127 = vadd.f32 %v972, %v1126
      %v1128 = vpop.f32.mrf.mxu0
      %v1129 = vpop.f32.mrf.mxu0
      %v1130 = vadd.f32 %v975, %v1129
      %v1131 = vpop.f32.mrf.mxu0
      %1132 = vmatprep.mubr.bf16.mxu0 %v270
      %1133 = vmatmul.mubr.bf16.gmra.mxu0 %v269
      %v1134 = vpop.f32.mrf.mxu0
      %v1135 = vadd.f32 %v980, %v1134
      %v1136 = vpop.f32.mrf.mxu0
      %v1137 = vpop.f32.mrf.mxu0
      %v1138 = vadd.f32 %v983, %v1137
      %v1139 = vpop.f32.mrf.mxu0
      %1140 = vdwg.mxu0
      %1141 = vmatprep.subr.bf16.mxu0 0
      %1142 = vmatpush1.bf16.msra.mxu0 %v709
      %1143 = vmatprep.subr.bf16.mxu0 0
      %1144 = vmatpush1.bf16.msra.mxu0 %v706
      %1145 = vmatprep.subr.bf16.mxu0 0
      %1146 = vmatpush1.bf16.msra.mxu0 %v703
      %1147 = vmatprep.subr.bf16.mxu0 0
      %1148 = vmatpush1.bf16.msra.mxu0 %v700
      %1149 = vmatprep.subr.bf16.mxu0 0
      %1150 = vmatpush1.bf16.msra.mxu0 %v697
      %1151 = vmatprep.subr.bf16.mxu0 0
      %1152 = vmatpush1.bf16.msra.mxu0 %v694
      %1153 = vmatprep.subr.bf16.mxu0 0
      %1154 = vmatpush1.bf16.msra.mxu0 %v691
      %1155 = vmatprep.subr.bf16.mxu0 0
      %1156 = vmatpush1.bf16.msra.mxu0 %v688
      %1157 = vmatprep.subr.bf16.mxu0 0
      %1158 = vmatpush2.bf16.msra.mxu0 0
      %1159 = vmatprep.subr.bf16.mxu0 0
      %1160 = vmatpush2.bf16.msra.mxu0 0
      %1161 = vmatprep.subr.bf16.mxu0 0
      %1162 = vmatpush2.bf16.msra.mxu0 0
      %1163 = vmatprep.subr.bf16.mxu0 0
      %1164 = vmatpush2.bf16.msra.mxu0 0
      %1165 = vmatprep.subr.bf16.mxu0 0
      %1166 = vmatpush2.bf16.msra.mxu0 0
      %1167 = vmatprep.subr.bf16.mxu0 0
      %1168 = vmatpush2.bf16.msra.mxu0 0
      %1169 = vmatprep.subr.bf16.mxu0 0
      %1170 = vmatpush2.bf16.msra.mxu0 0
      %1171 = vmatprep.subr.bf16.mxu0 0
      %1172 = vmatpush2.bf16.msra.mxu0 0
      %1173 = vmatprep.mubr.bf16.mxu0 0
      %1174 = vmatmul.mubr.bf16.gmra.mxu0 %v268
      %v1175 = vpop.f32.mrf.mxu0
      %v1176 = vadd.f32 %v1127, %v1175
      %v1177 = vpop.f32.mrf.mxu0
      %v1178 = vpop.f32.mrf.mxu0
      %v1179 = vadd.f32 %v1130, %v1178
      %v1180 = vpop.f32.mrf.mxu0
      %1181 = vmatprep.mubr.bf16.mxu0 0
      %1182 = vmatmul.mubr.bf16.gmra.mxu0 %v271
      %v1183 = vpop.f32.mrf.mxu0
      %v1184 = vadd.f32 %v1135, %v1183
      %v1185 = vpop.f32.mrf.mxu0
      %v1186 = vpop.f32.mrf.mxu0
      %v1187 = vadd.f32 %v1138, %v1186
      %v1188 = vpop.f32.mrf.mxu0
      %1189 = vdwg.mxu0
      %v1190 = vmul.f32 %v1074, %v1074
      %v1191 = vmul.f32 %v1078, %v1078
      %v1192 = vmul.f32 %v1084, %v1084
      %v1193 = vmul.f32 %v1088, %v1088
      %v1194 = vmul.f32 %v1076, %v1076
      %v1195 = vmul.f32 %v1080, %v1080
      %v1196 = vmul.f32 %v1086, %v1086
      %v1197 = vmul.f32 %v1090, %v1090
      %v1198 = vadd.f32 %v1190, %v1194
      %v1199 = vadd.f32 %v1191, %v1195
      %v1200 = vadd.f32 %v1192, %v1196
      %v1201 = vadd.f32 %v1193, %v1197
      %v1202 = vmul.f32 %v1176, %v1176
      %v1203 = vmul.f32 %v1179, %v1179
      %v1204 = vmul.f32 %v1184, %v1184
      %v1205 = vmul.f32 %v1187, %v1187
      %v1206 = vadd.f32 %v1198, %v1202
      %v1207 = vadd.f32 %v1199, %v1203
      %v1208 = vadd.f32 %v1200, %v1204
      %v1209 = vadd.f32 %v1201, %v1205
      %vm1210 = vcmp.gt.f32.partialorder %v1206, 0.0
      %vm1211 = vcmp.gt.f32.partialorder %v1207, 0.0
      %vm1212 = vcmp.gt.f32.partialorder %v1208, 0.0
      %vm1213 = vcmp.gt.f32.partialorder %v1209, 0.0
      %v1214 = vrsqrt.pop %v1206
      %v1215 = vrsqrt.pop %v1207
      %v1216 = vrsqrt.pop %v1208
      %v1217 = vrsqrt.pop %v1209
      %v1218 = vsel %vm1210, %v1214, 0.0
      %v1219 = vsel %vm1211, %v1215, 0.0
      %v1220 = vsel %vm1212, %v1216, 0.0
      %v1221 = vsel %vm1213, %v1217, 0.0
      %v1222 = vmul.f32 %v1074, %v1218
      %v1223 = vmul.f32 %v1078, %v1219
      %v1224 = vmul.f32 %v1084, %v1220
      %v1225 = vmul.f32 %v1088, %v1221
      %v1226 = vmul.f32 %v1076, %v1218
      %v1227 = vmul.f32 %v1080, %v1219
      %v1228 = vmul.f32 %v1086, %v1220
      %v1229 = vmul.f32 %v1090, %v1221
      %v1230 = vmul.f32 %v1176, %v1218
      %v1231 = vmul.f32 %v1179, %v1219
      %v1232 = vmul.f32 %v1184, %v1220
      %v1233 = vmul.f32 %v1187, %v1221
      %v1234 = vmul.f32 %v1226, 0.48860252
      %v1235 = vmul.f32 %v1227, 0.48860252
      %v1236 = vmul.f32 %v1228, 0.48860252
      %v1237 = vmul.f32 %v1229, 0.48860252
      %1238 = vst [vmem:[#allocation2 + $0x8] sm:$0xff] %v1234
      %1239 = vst [vmem:[#allocation2 + $0x28] sm:$0xff] %v1235
      %1240 = vst [vmem:[#allocation2 + $0x48] sm:$0xff] %v1236
      %1241 = vst [vmem:[#allocation2 + $0x68] sm:$0xff] %v1237
      %v1242 = vmul.f32 %v1230, 0.48860252
      %v1243 = vmul.f32 %v1231, 0.48860252
      %v1244 = vmul.f32 %v1232, 0.48860252
      %v1245 = vmul.f32 %v1233, 0.48860252
      %1246 = vst [vmem:[#allocation2 + $0x10] sm:$0xff] %v1242
      %1247 = vst [vmem:[#allocation2 + $0x30] sm:$0xff] %v1243
      %1248 = vst [vmem:[#allocation2 + $0x50] sm:$0xff] %v1244
      %1249 = vst [vmem:[#allocation2 + $0x70] sm:$0xff] %v1245
      %v1250 = vmul.f32 %v1222, 0.48860252
      %v1251 = vmul.f32 %v1223, 0.48860252
      %v1252 = vmul.f32 %v1224, 0.48860252
      %v1253 = vmul.f32 %v1225, 0.48860252
      %1254 = vst [vmem:[#allocation2 + $0x18] sm:$0xff] %v1250
      %1255 = vst [vmem:[#allocation2 + $0x38] sm:$0xff] %v1251
      %1256 = vst [vmem:[#allocation2 + $0x58] sm:$0xff] %v1252
      %1257 = vst [vmem:[#allocation2 + $0x78] sm:$0xff] %v1253
      %v1258 = vld [vmem:[#allocation2] sm:$0xff]
      %v1259 = vld [vmem:[#allocation2 + $0x8] sm:$0xff]
      %v1260 = vld [vmem:[#allocation2 + $0x10] sm:$0xff]
      %v1261 = vld [vmem:[#allocation2 + $0x18] sm:$0xff]
      %v1262 = vld [vmem:[#allocation2 + $0x20] sm:$0xff]
      %v1263 = vld [vmem:[#allocation2 + $0x28] sm:$0xff]
      %v1264 = vld [vmem:[#allocation2 + $0x30] sm:$0xff]
      %v1265 = vld [vmem:[#allocation2 + $0x38] sm:$0xff]
      %v1266 = vld [vmem:[#allocation2 + $0x40] sm:$0xff]
      %v1267 = vld [vmem:[#allocation2 + $0x48] sm:$0xff]
      %v1268 = vld [vmem:[#allocation2 + $0x50] sm:$0xff]
      %v1269 = vld [vmem:[#allocation2 + $0x58] sm:$0xff]
      %v1270 = vld [vmem:[#allocation2 + $0x60] sm:$0xff]
      %v1271 = vld [vmem:[#allocation2 + $0x68] sm:$0xff]
      %v1272 = vld [vmem:[#allocation2 + $0x70] sm:$0xff]
      %v1273 = vld [vmem:[#allocation2 + $0x78] sm:$0xff]
      %v1274 = vpack.c.bf16 %v1262, %v1258
      %v1275 = vpack.c.bf16 %v1263, %v1259
      %v1276 = vpack.c.bf16 %v1264, %v1260
      %v1277 = vpack.c.bf16 %v1265, %v1261
      %v1278 = vpack.c.bf16 %v1270, %v1266
      %v1279 = vpack.c.bf16 %v1271, %v1267
      %v1280 = vpack.c.bf16 %v1272, %v1268
      %v1281 = vpack.c.bf16 %v1273, %v1269
      %v1282 = vunpack.c.l.bf16 %v1274
      %v1283 = vunpack.c.l.bf16 %v1275
      %v1284 = vunpack.c.l.bf16 %v1276
      %v1285 = vunpack.c.l.bf16 %v1277
      %v1286 = vunpack.c.h.bf16 %v1274
      %v1287 = vunpack.c.h.bf16 %v1275
      %v1288 = vunpack.c.h.bf16 %v1276
      %v1289 = vunpack.c.h.bf16 %v1277
      %v1290 = vunpack.c.l.bf16 %v1278
      %v1291 = vunpack.c.l.bf16 %v1279
      %v1292 = vunpack.c.l.bf16 %v1280
      %v1293 = vunpack.c.l.bf16 %v1281
      %v1294 = vunpack.c.h.bf16 %v1278
      %v1295 = vunpack.c.h.bf16 %v1279
      %v1296 = vunpack.c.h.bf16 %v1280
      %v1297 = vunpack.c.h.bf16 %v1281
      %v1298 = vsub.f32 %v1258, %v1282
      %v1299 = vsub.f32 %v1259, %v1283
      %v1300 = vsub.f32 %v1260, %v1284
      %v1301 = vsub.f32 %v1261, %v1285
      %v1302 = vsub.f32 %v1262, %v1286
      %v1303 = vsub.f32 %v1263, %v1287
      %v1304 = vsub.f32 %v1264, %v1288
      %v1305 = vsub.f32 %v1265, %v1289
      %v1306 = vsub.f32 %v1266, %v1290
      %v1307 = vsub.f32 %v1267, %v1291
      %v1308 = vsub.f32 %v1268, %v1292
      %v1309 = vsub.f32 %v1269, %v1293
      %v1310 = vsub.f32 %v1270, %v1294
      %v1311 = vsub.f32 %v1271, %v1295
      %v1312 = vsub.f32 %v1272, %v1296
      %v1313 = vsub.f32 %v1273, %v1297
      %v1314 = vpack.c.bf16 %v1302, %v1298
      %v1315 = vpack.c.bf16 %v1303, %v1299
      %v1316 = vpack.c.bf16 %v1304, %v1300
      %v1317 = vpack.c.bf16 %v1305, %v1301
      %v1318 = vpack.c.bf16 %v1310, %v1306
      %v1319 = vpack.c.bf16 %v1311, %v1307
      %v1320 = vpack.c.bf16 %v1312, %v1308
      %v1321 = vpack.c.bf16 %v1313, %v1309
      %v1322 = vld [vmem:[%s2] sm:$0xff]
      %v1323 = vld [vmem:[%s2 + $0x8] sm:$0xff]
      %v1324 = vld [vmem:[%s2 + $0x10] sm:$0xff]
      %v1325 = vld [vmem:[%s2 + $0x18] sm:$0xff]
      %v1326 = vld [vmem:[%s2 + $0x20] sm:$0xff]
      %v1327 = vld [vmem:[%s2 + $0x28] sm:$0xff]
      %v1328 = vld [vmem:[%s2 + $0x30] sm:$0xff]
      %v1329 = vld [vmem:[%s2 + $0x38] sm:$0xff]
      %v1330 = vld [vmem:[%s2 + $0x40] sm:$0xff]
      %v1331 = vld [vmem:[%s2 + $0x48] sm:$0xff]
      %v1332 = vld [vmem:[%s2 + $0x50] sm:$0xff]
      %v1333 = vld [vmem:[%s2 + $0x58] sm:$0xff]
      %v1334 = vld [vmem:[%s2 + $0x60] sm:$0xff]
      %v1335 = vld [vmem:[%s2 + $0x68] sm:$0xff]
      %v1336 = vld [vmem:[%s2 + $0x70] sm:$0xff]
      %v1337 = vld [vmem:[%s2 + $0x78] sm:$0xff]
      %v1338 = vld [vmem:[%s2 + $0x80] sm:$0xff]
      %v1339 = vld [vmem:[%s2 + $0x88] sm:$0xff]
      %v1340 = vld [vmem:[%s2 + $0x90] sm:$0xff]
      %v1341 = vld [vmem:[%s2 + $0x98] sm:$0xff]
      %v1342 = vld [vmem:[%s2 + $0xa0] sm:$0xff]
      %v1343 = vld [vmem:[%s2 + $0xa8] sm:$0xff]
      %v1344 = vld [vmem:[%s2 + $0xb0] sm:$0xff]
      %v1345 = vld [vmem:[%s2 + $0xb8] sm:$0xff]
      %v1346 = vld [vmem:[%s2 + $0xc0] sm:$0xff]
      %v1347 = vld [vmem:[%s2 + $0xc8] sm:$0xff]
      %v1348 = vld [vmem:[%s2 + $0xd0] sm:$0xff]
      %v1349 = vld [vmem:[%s2 + $0xd8] sm:$0xff]
      %v1350 = vld [vmem:[%s2 + $0xe0] sm:$0xff]
      %v1351 = vld [vmem:[%s2 + $0xe8] sm:$0xff]
      %v1352 = vld [vmem:[%s2 + $0xf0] sm:$0xff]
      %v1353 = vld [vmem:[%s2 + $0xf8] sm:$0xff]
      %v1354 = vld [vmem:[%s2 + $0x100] sm:$0xff]
      %v1355 = vld [vmem:[%s2 + $0x108] sm:$0xff]
      %v1356 = vld [vmem:[%s2 + $0x110] sm:$0xff]
      %v1357 = vld [vmem:[%s2 + $0x118] sm:$0xff]
      %v1358 = vld [vmem:[%s2 + $0x120] sm:$0xff]
      %v1359 = vld [vmem:[%s2 + $0x128] sm:$0xff]
      %v1360 = vld [vmem:[%s2 + $0x130] sm:$0xff]
      %v1361 = vld [vmem:[%s2 + $0x138] sm:$0xff]
      %v1362 = vld [vmem:[%s2 + $0x140] sm:$0xff]
      %v1363 = vld [vmem:[%s2 + $0x148] sm:$0xff]
      %v1364 = vld [vmem:[%s2 + $0x150] sm:$0xff]
      %v1365 = vld [vmem:[%s2 + $0x158] sm:$0xff]
      %v1366 = vld [vmem:[%s2 + $0x160] sm:$0xff]
      %v1367 = vld [vmem:[%s2 + $0x168] sm:$0xff]
      %v1368 = vld [vmem:[%s2 + $0x170] sm:$0xff]
      %v1369 = vld [vmem:[%s2 + $0x178] sm:$0xff]
      %v1370 = vld [vmem:[%s2 + $0x180] sm:$0xff]
      %v1371 = vld [vmem:[%s2 + $0x188] sm:$0xff]
      %v1372 = vld [vmem:[%s2 + $0x190] sm:$0xff]
      %v1373 = vld [vmem:[%s2 + $0x198] sm:$0xff]
      %v1374 = vld [vmem:[%s2 + $0x1a0] sm:$0xff]
      %v1375 = vld [vmem:[%s2 + $0x1a8] sm:$0xff]
      %v1376 = vld [vmem:[%s2 + $0x1b0] sm:$0xff]
      %v1377 = vld [vmem:[%s2 + $0x1b8] sm:$0xff]
      %v1378 = vld [vmem:[%s2 + $0x1c0] sm:$0xff]
      %v1379 = vld [vmem:[%s2 + $0x1c8] sm:$0xff]
      %v1380 = vld [vmem:[%s2 + $0x1d0] sm:$0xff]
      %v1381 = vld [vmem:[%s2 + $0x1d8] sm:$0xff]
      %v1382 = vld [vmem:[%s2 + $0x1e0] sm:$0xff]
      %v1383 = vld [vmem:[%s2 + $0x1e8] sm:$0xff]
      %v1384 = vld [vmem:[%s2 + $0x1f0] sm:$0xff]
      %v1385 = vld [vmem:[%s2 + $0x1f8] sm:$0xff]
      %v1386 = vld [vmem:[%s2 + $0x200] sm:$0xff]
      %v1387 = vld [vmem:[%s2 + $0x208] sm:$0xff]
      %v1388 = vld [vmem:[%s2 + $0x210] sm:$0xff]
      %v1389 = vld [vmem:[%s2 + $0x218] sm:$0xff]
      %v1390 = vld [vmem:[%s2 + $0x220] sm:$0xff]
      %v1391 = vld [vmem:[%s2 + $0x228] sm:$0xff]
      %v1392 = vld [vmem:[%s2 + $0x230] sm:$0xff]
      %v1393 = vld [vmem:[%s2 + $0x238] sm:$0xff]
      %v1394 = vld [vmem:[%s2 + $0x240] sm:$0xff]
      %v1395 = vld [vmem:[%s2 + $0x248] sm:$0xff]
      %v1396 = vld [vmem:[%s2 + $0x250] sm:$0xff]
      %v1397 = vld [vmem:[%s2 + $0x258] sm:$0xff]
      %v1398 = vld [vmem:[%s2 + $0x260] sm:$0xff]
      %v1399 = vld [vmem:[%s2 + $0x268] sm:$0xff]
      %v1400 = vld [vmem:[%s2 + $0x270] sm:$0xff]
      %v1401 = vld [vmem:[%s2 + $0x278] sm:$0xff]
      %v1402 = vld [vmem:[%s2 + $0x280] sm:$0xff]
      %v1403 = vld [vmem:[%s2 + $0x288] sm:$0xff]
      %v1404 = vld [vmem:[%s2 + $0x290] sm:$0xff]
      %v1405 = vld [vmem:[%s2 + $0x298] sm:$0xff]
      %v1406 = vld [vmem:[%s2 + $0x2a0] sm:$0xff]
      %v1407 = vld [vmem:[%s2 + $0x2a8] sm:$0xff]
      %v1408 = vld [vmem:[%s2 + $0x2b0] sm:$0xff]
      %v1409 = vld [vmem:[%s2 + $0x2b8] sm:$0xff]
      %v1410 = vld [vmem:[%s2 + $0x2c0] sm:$0xff]
      %v1411 = vld [vmem:[%s2 + $0x2c8] sm:$0xff]
      %v1412 = vld [vmem:[%s2 + $0x2d0] sm:$0xff]
      %v1413 = vld [vmem:[%s2 + $0x2d8] sm:$0xff]
      %v1414 = vld [vmem:[%s2 + $0x2e0] sm:$0xff]
      %v1415 = vld [vmem:[%s2 + $0x2e8] sm:$0xff]
      %v1416 = vld [vmem:[%s2 + $0x2f0] sm:$0xff]
      %v1417 = vld [vmem:[%s2 + $0x2f8] sm:$0xff]
      %v1418 = vld [vmem:[%s2 + $0x300] sm:$0xff]
      %v1419 = vld [vmem:[%s2 + $0x308] sm:$0xff]
      %v1420 = vld [vmem:[%s2 + $0x310] sm:$0xff]
      %v1421 = vld [vmem:[%s2 + $0x318] sm:$0xff]
      %v1422 = vld [vmem:[%s2 + $0x320] sm:$0xff]
      %v1423 = vld [vmem:[%s2 + $0x328] sm:$0xff]
      %v1424 = vld [vmem:[%s2 + $0x330] sm:$0xff]
      %v1425 = vld [vmem:[%s2 + $0x338] sm:$0xff]
      %v1426 = vld [vmem:[%s2 + $0x340] sm:$0xff]
      %v1427 = vld [vmem:[%s2 + $0x348] sm:$0xff]
      %v1428 = vld [vmem:[%s2 + $0x350] sm:$0xff]
      %v1429 = vld [vmem:[%s2 + $0x358] sm:$0xff]
      %v1430 = vld [vmem:[%s2 + $0x360] sm:$0xff]
      %v1431 = vld [vmem:[%s2 + $0x368] sm:$0xff]
      %v1432 = vld [vmem:[%s2 + $0x370] sm:$0xff]
      %v1433 = vld [vmem:[%s2 + $0x378] sm:$0xff]
      %v1434 = vld [vmem:[%s2 + $0x380] sm:$0xff]
      %v1435 = vld [vmem:[%s2 + $0x388] sm:$0xff]
      %v1436 = vld [vmem:[%s2 + $0x390] sm:$0xff]
      %v1437 = vld [vmem:[%s2 + $0x398] sm:$0xff]
      %v1438 = vld [vmem:[%s2 + $0x3a0] sm:$0xff]
      %v1439 = vld [vmem:[%s2 + $0x3a8] sm:$0xff]
      %v1440 = vld [vmem:[%s2 + $0x3b0] sm:$0xff]
      %v1441 = vld [vmem:[%s2 + $0x3b8] sm:$0xff]
      %v1442 = vld [vmem:[%s2 + $0x3c0] sm:$0xff]
      %v1443 = vld [vmem:[%s2 + $0x3c8] sm:$0xff]
      %v1444 = vld [vmem:[%s2 + $0x3d0] sm:$0xff]
      %v1445 = vld [vmem:[%s2 + $0x3d8] sm:$0xff]
      %v1446 = vld [vmem:[%s2 + $0x3e0] sm:$0xff]
      %v1447 = vld [vmem:[%s2 + $0x3e8] sm:$0xff]
      %v1448 = vld [vmem:[%s2 + $0x3f0] sm:$0xff]
      %v1449 = vld [vmem:[%s2 + $0x3f8] sm:$0xff]
      %v1450 = vld [vmem:[%s2 + $0x400] sm:$0xff]
      %v1451 = vld [vmem:[%s2 + $0x408] sm:$0xff]
      %v1452 = vld [vmem:[%s2 + $0x410] sm:$0xff]
      %v1453 = vld [vmem:[%s2 + $0x418] sm:$0xff]
      %v1454 = vld [vmem:[%s2 + $0x420] sm:$0xff]
      %v1455 = vld [vmem:[%s2 + $0x428] sm:$0xff]
      %v1456 = vld [vmem:[%s2 + $0x430] sm:$0xff]
      %v1457 = vld [vmem:[%s2 + $0x438] sm:$0xff]
      %v1458 = vld [vmem:[%s2 + $0x440] sm:$0xff]
      %v1459 = vld [vmem:[%s2 + $0x448] sm:$0xff]
      %v1460 = vld [vmem:[%s2 + $0x450] sm:$0xff]
      %v1461 = vld [vmem:[%s2 + $0x458] sm:$0xff]
      %v1462 = vld [vmem:[%s2 + $0x460] sm:$0xff]
      %v1463 = vld [vmem:[%s2 + $0x468] sm:$0xff]
      %v1464 = vld [vmem:[%s2 + $0x470] sm:$0xff]
      %v1465 = vld [vmem:[%s2 + $0x478] sm:$0xff]
      %v1466 = vld [vmem:[%s2 + $0x480] sm:$0xff]
      %v1467 = vld [vmem:[%s2 + $0x488] sm:$0xff]
      %v1468 = vld [vmem:[%s2 + $0x490] sm:$0xff]
      %v1469 = vld [vmem:[%s2 + $0x498] sm:$0xff]
      %v1470 = vld [vmem:[%s2 + $0x4a0] sm:$0xff]
      %v1471 = vld [vmem:[%s2 + $0x4a8] sm:$0xff]
      %v1472 = vld [vmem:[%s2 + $0x4b0] sm:$0xff]
      %v1473 = vld [vmem:[%s2 + $0x4b8] sm:$0xff]
      %v1474 = vld [vmem:[%s2 + $0x4c0] sm:$0xff]
      %v1475 = vld [vmem:[%s2 + $0x4c8] sm:$0xff]
      %v1476 = vld [vmem:[%s2 + $0x4d0] sm:$0xff]
      %v1477 = vld [vmem:[%s2 + $0x4d8] sm:$0xff]
      %v1478 = vld [vmem:[%s2 + $0x4e0] sm:$0xff]
      %v1479 = vld [vmem:[%s2 + $0x4e8] sm:$0xff]
      %v1480 = vld [vmem:[%s2 + $0x4f0] sm:$0xff]
      %v1481 = vld [vmem:[%s2 + $0x4f8] sm:$0xff]
      %v1482 = vld [vmem:[%s2 + $0x500] sm:$0xff]
      %v1483 = vld [vmem:[%s2 + $0x508] sm:$0xff]
      %v1484 = vld [vmem:[%s2 + $0x510] sm:$0xff]
      %v1485 = vld [vmem:[%s2 + $0x518] sm:$0xff]
      %v1486 = vld [vmem:[%s2 + $0x520] sm:$0xff]
      %v1487 = vld [vmem:[%s2 + $0x528] sm:$0xff]
      %v1488 = vld [vmem:[%s2 + $0x530] sm:$0xff]
      %v1489 = vld [vmem:[%s2 + $0x538] sm:$0xff]
      %v1490 = vld [vmem:[%s2 + $0x540] sm:$0xff]
      %v1491 = vld [vmem:[%s2 + $0x548] sm:$0xff]
      %v1492 = vld [vmem:[%s2 + $0x550] sm:$0xff]
      %v1493 = vld [vmem:[%s2 + $0x558] sm:$0xff]
      %v1494 = vld [vmem:[%s2 + $0x560] sm:$0xff]
      %v1495 = vld [vmem:[%s2 + $0x568] sm:$0xff]
      %v1496 = vld [vmem:[%s2 + $0x570] sm:$0xff]
      %v1497 = vld [vmem:[%s2 + $0x578] sm:$0xff]
      %v1498 = vld [vmem:[%s2 + $0x580] sm:$0xff]
      %v1499 = vld [vmem:[%s2 + $0x588] sm:$0xff]
      %v1500 = vld [vmem:[%s2 + $0x590] sm:$0xff]
      %v1501 = vld [vmem:[%s2 + $0x598] sm:$0xff]
      %v1502 = vld [vmem:[%s2 + $0x5a0] sm:$0xff]
      %v1503 = vld [vmem:[%s2 + $0x5a8] sm:$0xff]
      %v1504 = vld [vmem:[%s2 + $0x5b0] sm:$0xff]
      %v1505 = vld [vmem:[%s2 + $0x5b8] sm:$0xff]
      %v1506 = vld [vmem:[%s2 + $0x5c0] sm:$0xff]
      %v1507 = vld [vmem:[%s2 + $0x5c8] sm:$0xff]
      %v1508 = vld [vmem:[%s2 + $0x5d0] sm:$0xff]
      %v1509 = vld [vmem:[%s2 + $0x5d8] sm:$0xff]
      %v1510 = vld [vmem:[%s2 + $0x5e0] sm:$0xff]
      %v1511 = vld [vmem:[%s2 + $0x5e8] sm:$0xff]
      %v1512 = vld [vmem:[%s2 + $0x5f0] sm:$0xff]
      %v1513 = vld [vmem:[%s2 + $0x5f8] sm:$0xff]
      %v1514 = vld [vmem:[%s2 + $0x600] sm:$0xff]
      %v1515 = vld [vmem:[%s2 + $0x608] sm:$0xff]
      %v1516 = vld [vmem:[%s2 + $0x610] sm:$0xff]
      %v1517 = vld [vmem:[%s2 + $0x618] sm:$0xff]
      %v1518 = vld [vmem:[%s2 + $0x620] sm:$0xff]
      %v1519 = vld [vmem:[%s2 + $0x628] sm:$0xff]
      %v1520 = vld [vmem:[%s2 + $0x630] sm:$0xff]
      %v1521 = vld [vmem:[%s2 + $0x638] sm:$0xff]
      %v1522 = vld [vmem:[%s2 + $0x640] sm:$0xff]
      %v1523 = vld [vmem:[%s2 + $0x648] sm:$0xff]
      %v1524 = vld [vmem:[%s2 + $0x650] sm:$0xff]
      %v1525 = vld [vmem:[%s2 + $0x658] sm:$0xff]
      %v1526 = vld [vmem:[%s2 + $0x660] sm:$0xff]
      %v1527 = vld [vmem:[%s2 + $0x668] sm:$0xff]
      %v1528 = vld [vmem:[%s2 + $0x670] sm:$0xff]
      %v1529 = vld [vmem:[%s2 + $0x678] sm:$0xff]
      %v1530 = vld [vmem:[%s2 + $0x680] sm:$0xff]
      %v1531 = vld [vmem:[%s2 + $0x688] sm:$0xff]
      %v1532 = vld [vmem:[%s2 + $0x690] sm:$0xff]
      %v1533 = vld [vmem:[%s2 + $0x698] sm:$0xff]
      %v1534 = vld [vmem:[%s2 + $0x6a0] sm:$0xff]
      %v1535 = vld [vmem:[%s2 + $0x6a8] sm:$0xff]
      %v1536 = vld [vmem:[%s2 + $0x6b0] sm:$0xff]
      %v1537 = vld [vmem:[%s2 + $0x6b8] sm:$0xff]
      %v1538 = vld [vmem:[%s2 + $0x6c0] sm:$0xff]
      %v1539 = vld [vmem:[%s2 + $0x6c8] sm:$0xff]
      %v1540 = vld [vmem:[%s2 + $0x6d0] sm:$0xff]
      %v1541 = vld [vmem:[%s2 + $0x6d8] sm:$0xff]
      %v1542 = vld [vmem:[%s2 + $0x6e0] sm:$0xff]
      %v1543 = vld [vmem:[%s2 + $0x6e8] sm:$0xff]
      %v1544 = vld [vmem:[%s2 + $0x6f0] sm:$0xff]
      %v1545 = vld [vmem:[%s2 + $0x6f8] sm:$0xff]
      %v1546 = vld [vmem:[%s2 + $0x700] sm:$0xff]
      %v1547 = vld [vmem:[%s2 + $0x708] sm:$0xff]
      %v1548 = vld [vmem:[%s2 + $0x710] sm:$0xff]
      %v1549 = vld [vmem:[%s2 + $0x718] sm:$0xff]
      %v1550 = vld [vmem:[%s2 + $0x720] sm:$0xff]
      %v1551 = vld [vmem:[%s2 + $0x728] sm:$0xff]
      %v1552 = vld [vmem:[%s2 + $0x730] sm:$0xff]
      %v1553 = vld [vmem:[%s2 + $0x738] sm:$0xff]
      %v1554 = vld [vmem:[%s2 + $0x740] sm:$0xff]
      %v1555 = vld [vmem:[%s2 + $0x748] sm:$0xff]
      %v1556 = vld [vmem:[%s2 + $0x750] sm:$0xff]
      %v1557 = vld [vmem:[%s2 + $0x758] sm:$0xff]
      %v1558 = vld [vmem:[%s2 + $0x760] sm:$0xff]
      %v1559 = vld [vmem:[%s2 + $0x768] sm:$0xff]
      %v1560 = vld [vmem:[%s2 + $0x770] sm:$0xff]
      %v1561 = vld [vmem:[%s2 + $0x778] sm:$0xff]
      %v1562 = vld [vmem:[%s2 + $0x780] sm:$0xff]
      %v1563 = vld [vmem:[%s2 + $0x788] sm:$0xff]
      %v1564 = vld [vmem:[%s2 + $0x790] sm:$0xff]
      %v1565 = vld [vmem:[%s2 + $0x798] sm:$0xff]
      %v1566 = vld [vmem:[%s2 + $0x7a0] sm:$0xff]
      %v1567 = vld [vmem:[%s2 + $0x7a8] sm:$0xff]
      %v1568 = vld [vmem:[%s2 + $0x7b0] sm:$0xff]
      %v1569 = vld [vmem:[%s2 + $0x7b8] sm:$0xff]
      %v1570 = vld [vmem:[%s2 + $0x7c0] sm:$0xff]
      %v1571 = vld [vmem:[%s2 + $0x7c8] sm:$0xff]
      %v1572 = vld [vmem:[%s2 + $0x7d0] sm:$0xff]
      %v1573 = vld [vmem:[%s2 + $0x7d8] sm:$0xff]
      %v1574 = vld [vmem:[%s2 + $0x7e0] sm:$0xff]
      %v1575 = vld [vmem:[%s2 + $0x7e8] sm:$0xff]
      %v1576 = vld [vmem:[%s2 + $0x7f0] sm:$0xff]
      %v1577 = vld [vmem:[%s2 + $0x7f8] sm:$0xff]
      %v1834 = vunpack.c.l.b16 %v1322
      %v1835 = vunpack.c.h.b16 %v1322
      %v1836 = vunpack.c.l.b16 %v1323
      %v1837 = vunpack.c.h.b16 %v1323
      %v1838 = vunpack.c.l.b16 %v1324
      %v1839 = vunpack.c.h.b16 %v1324
      %v1840 = vunpack.c.l.b16 %v1325
      %v1841 = vunpack.c.h.b16 %v1325
      %v1842 = vunpack.c.l.b16 %v1326
      %v1843 = vunpack.c.h.b16 %v1326
      %v1844 = vunpack.c.l.b16 %v1327
      %v1845 = vunpack.c.h.b16 %v1327
      %v1846 = vunpack.c.l.b16 %v1328
      %v1847 = vunpack.c.h.b16 %v1328
      %v1848 = vunpack.c.l.b16 %v1329
      %v1849 = vunpack.c.h.b16 %v1329
      %v1850 = vunpack.c.l.b16 %v1330
      %v1851 = vunpack.c.h.b16 %v1330
      %v1852 = vunpack.c.l.b16 %v1331
      %v1853 = vunpack.c.h.b16 %v1331
      %v1854 = vunpack.c.l.b16 %v1332
      %v1855 = vunpack.c.h.b16 %v1332
      %v1856 = vunpack.c.l.b16 %v1333
      %v1857 = vunpack.c.h.b16 %v1333
      %v1858 = vunpack.c.l.b16 %v1334
      %v1859 = vunpack.c.h.b16 %v1334
      %v1860 = vunpack.c.l.b16 %v1335
      %v1861 = vunpack.c.h.b16 %v1335
      %v1862 = vunpack.c.l.b16 %v1336
      %v1863 = vunpack.c.h.b16 %v1336
      %v1864 = vunpack.c.l.b16 %v1337
      %v1865 = vunpack.c.h.b16 %v1337
      %v1866 = vunpack.c.l.b16 %v1338
      %v1867 = vunpack.c.h.b16 %v1338
      %v1868 = vunpack.c.l.b16 %v1339
      %v1869 = vunpack.c.h.b16 %v1339
      %v1870 = vunpack.c.l.b16 %v1340
      %v1871 = vunpack.c.h.b16 %v1340
      %v1872 = vunpack.c.l.b16 %v1341
      %v1873 = vunpack.c.h.b16 %v1341
      %v1874 = vunpack.c.l.b16 %v1342
      %v1875 = vunpack.c.h.b16 %v1342
      %v1876 = vunpack.c.l.b16 %v1343
      %v1877 = vunpack.c.h.b16 %v1343
      %v1878 = vunpack.c.l.b16 %v1344
      %v1879 = vunpack.c.h.b16 %v1344
      %v1880 = vunpack.c.l.b16 %v1345
      %v1881 = vunpack.c.h.b16 %v1345
      %v1882 = vunpack.c.l.b16 %v1346
      %v1883 = vunpack.c.h.b16 %v1346
      %v1884 = vunpack.c.l.b16 %v1347
      %v1885 = vunpack.c.h.b16 %v1347
      %v1886 = vunpack.c.l.b16 %v1348
      %v1887 = vunpack.c.h.b16 %v1348
      %v1888 = vunpack.c.l.b16 %v1349
      %v1889 = vunpack.c.h.b16 %v1349
      %v1890 = vunpack.c.l.b16 %v1350
      %v1891 = vunpack.c.h.b16 %v1350
      %v1892 = vunpack.c.l.b16 %v1351
      %v1893 = vunpack.c.h.b16 %v1351
      %v1894 = vunpack.c.l.b16 %v1352
      %v1895 = vunpack.c.h.b16 %v1352
      %v1896 = vunpack.c.l.b16 %v1353
      %v1897 = vunpack.c.h.b16 %v1353
      %v1898 = vunpack.c.l.b16 %v1354
      %v1899 = vunpack.c.h.b16 %v1354
      %v1900 = vunpack.c.l.b16 %v1355
      %v1901 = vunpack.c.h.b16 %v1355
      %v1902 = vunpack.c.l.b16 %v1356
      %v1903 = vunpack.c.h.b16 %v1356
      %v1904 = vunpack.c.l.b16 %v1357
      %v1905 = vunpack.c.h.b16 %v1357
      %v1906 = vunpack.c.l.b16 %v1358
      %v1907 = vunpack.c.h.b16 %v1358
      %v1908 = vunpack.c.l.b16 %v1359
      %v1909 = vunpack.c.h.b16 %v1359
      %v1910 = vunpack.c.l.b16 %v1360
      %v1911 = vunpack.c.h.b16 %v1360
      %v1912 = vunpack.c.l.b16 %v1361
      %v1913 = vunpack.c.h.b16 %v1361
      %v1914 = vunpack.c.l.b16 %v1362
      %v1915 = vunpack.c.h.b16 %v1362
      %v1916 = vunpack.c.l.b16 %v1363
      %v1917 = vunpack.c.h.b16 %v1363
      %v1918 = vunpack.c.l.b16 %v1364
      %v1919 = vunpack.c.h.b16 %v1364
      %v1920 = vunpack.c.l.b16 %v1365
      %v1921 = vunpack.c.h.b16 %v1365
      %v1922 = vunpack.c.l.b16 %v1366
      %v1923 = vunpack.c.h.b16 %v1366
      %v1924 = vunpack.c.l.b16 %v1367
      %v1925 = vunpack.c.h.b16 %v1367
      %v1926 = vunpack.c.l.b16 %v1368
      %v1927 = vunpack.c.h.b16 %v1368
      %v1928 = vunpack.c.l.b16 %v1369
      %v1929 = vunpack.c.h.b16 %v1369
      %v1930 = vunpack.c.l.b16 %v1370
      %v1931 = vunpack.c.h.b16 %v1370
      %v1932 = vunpack.c.l.b16 %v1371
      %v1933 = vunpack.c.h.b16 %v1371
      %v1934 = vunpack.c.l.b16 %v1372
      %v1935 = vunpack.c.h.b16 %v1372
      %v1936 = vunpack.c.l.b16 %v1373
      %v1937 = vunpack.c.h.b16 %v1373
      %v1938 = vunpack.c.l.b16 %v1374
      %v1939 = vunpack.c.h.b16 %v1374
      %v1940 = vunpack.c.l.b16 %v1375
      %v1941 = vunpack.c.h.b16 %v1375
      %v1942 = vunpack.c.l.b16 %v1376
      %v1943 = vunpack.c.h.b16 %v1376
      %v1944 = vunpack.c.l.b16 %v1377
      %v1945 = vunpack.c.h.b16 %v1377
      %v1946 = vunpack.c.l.b16 %v1378
      %v1947 = vunpack.c.h.b16 %v1378
      %v1948 = vunpack.c.l.b16 %v1379
      %v1949 = vunpack.c.h.b16 %v1379
      %v1950 = vunpack.c.l.b16 %v1380
      %v1951 = vunpack.c.h.b16 %v1380
      %v1952 = vunpack.c.l.b16 %v1381
      %v1953 = vunpack.c.h.b16 %v1381
      %v1954 = vunpack.c.l.b16 %v1382
      %v1955 = vunpack.c.h.b16 %v1382
      %v1956 = vunpack.c.l.b16 %v1383
      %v1957 = vunpack.c.h.b16 %v1383
      %v1958 = vunpack.c.l.b16 %v1384
      %v1959 = vunpack.c.h.b16 %v1384
      %v1960 = vunpack.c.l.b16 %v1385
      %v1961 = vunpack.c.h.b16 %v1385
      %v1962 = vunpack.c.l.b16 %v1386
      %v1963 = vunpack.c.h.b16 %v1386
      %v1964 = vunpack.c.l.b16 %v1387
      %v1965 = vunpack.c.h.b16 %v1387
      %v1966 = vunpack.c.l.b16 %v1388
      %v1967 = vunpack.c.h.b16 %v1388
      %v1968 = vunpack.c.l.b16 %v1389
      %v1969 = vunpack.c.h.b16 %v1389
      %v1970 = vunpack.c.l.b16 %v1390
      %v1971 = vunpack.c.h.b16 %v1390
      %v1972 = vunpack.c.l.b16 %v1391
      %v1973 = vunpack.c.h.b16 %v1391
      %v1974 = vunpack.c.l.b16 %v1392
      %v1975 = vunpack.c.h.b16 %v1392
      %v1976 = vunpack.c.l.b16 %v1393
      %v1977 = vunpack.c.h.b16 %v1393
      %v1978 = vunpack.c.l.b16 %v1394
      %v1979 = vunpack.c.h.b16 %v1394
      %v1980 = vunpack.c.l.b16 %v1395
      %v1981 = vunpack.c.h.b16 %v1395
      %v1982 = vunpack.c.l.b16 %v1396
      %v1983 = vunpack.c.h.b16 %v1396
      %v1984 = vunpack.c.l.b16 %v1397
      %v1985 = vunpack.c.h.b16 %v1397
      %v1986 = vunpack.c.l.b16 %v1398
      %v1987 = vunpack.c.h.b16 %v1398
      %v1988 = vunpack.c.l.b16 %v1399
      %v1989 = vunpack.c.h.b16 %v1399
      %v1990 = vunpack.c.l.b16 %v1400
      %v1991 = vunpack.c.h.b16 %v1400
      %v1992 = vunpack.c.l.b16 %v1401
      %v1993 = vunpack.c.h.b16 %v1401
      %v1994 = vunpack.c.l.b16 %v1402
      %v1995 = vunpack.c.h.b16 %v1402
      %v1996 = vunpack.c.l.b16 %v1403
      %v1997 = vunpack.c.h.b16 %v1403
      %v1998 = vunpack.c.l.b16 %v1404
      %v1999 = vunpack.c.h.b16 %v1404
      %v2000 = vunpack.c.l.b16 %v1405
      %v2001 = vunpack.c.h.b16 %v1405
      %v2002 = vunpack.c.l.b16 %v1406
      %v2003 = vunpack.c.h.b16 %v1406
      %v2004 = vunpack.c.l.b16 %v1407
      %v2005 = vunpack.c.h.b16 %v1407
      %v2006 = vunpack.c.l.b16 %v1408
      %v2007 = vunpack.c.h.b16 %v1408
      %v2008 = vunpack.c.l.b16 %v1409
      %v2009 = vunpack.c.h.b16 %v1409
      %v2010 = vunpack.c.l.b16 %v1410
      %v2011 = vunpack.c.h.b16 %v1410
      %v2012 = vunpack.c.l.b16 %v1411
      %v2013 = vunpack.c.h.b16 %v1411
      %v2014 = vunpack.c.l.b16 %v1412
      %v2015 = vunpack.c.h.b16 %v1412
      %v2016 = vunpack.c.l.b16 %v1413
      %v2017 = vunpack.c.h.b16 %v1413
      %v2018 = vunpack.c.l.b16 %v1414
      %v2019 = vunpack.c.h.b16 %v1414
      %v2020 = vunpack.c.l.b16 %v1415
      %v2021 = vunpack.c.h.b16 %v1415
      %v2022 = vunpack.c.l.b16 %v1416
      %v2023 = vunpack.c.h.b16 %v1416
      %v2024 = vunpack.c.l.b16 %v1417
      %v2025 = vunpack.c.h.b16 %v1417
      %v2026 = vunpack.c.l.b16 %v1418
      %v2027 = vunpack.c.h.b16 %v1418
      %v2028 = vunpack.c.l.b16 %v1419
      %v2029 = vunpack.c.h.b16 %v1419
      %v2030 = vunpack.c.l.b16 %v1420
      %v2031 = vunpack.c.h.b16 %v1420
      %v2032 = vunpack.c.l.b16 %v1421
      %v2033 = vunpack.c.h.b16 %v1421
      %v2034 = vunpack.c.l.b16 %v1422
      %v2035 = vunpack.c.h.b16 %v1422
      %v2036 = vunpack.c.l.b16 %v1423
      %v2037 = vunpack.c.h.b16 %v1423
      %v2038 = vunpack.c.l.b16 %v1424
      %v2039 = vunpack.c.h.b16 %v1424
      %v2040 = vunpack.c.l.b16 %v1425
      %v2041 = vunpack.c.h.b16 %v1425
      %v2042 = vunpack.c.l.b16 %v1426
      %v2043 = vunpack.c.h.b16 %v1426
      %v2044 = vunpack.c.l.b16 %v1427
      %v2045 = vunpack.c.h.b16 %v1427
      %v2046 = vunpack.c.l.b16 %v1428
      %v2047 = vunpack.c.h.b16 %v1428
      %v2048 = vunpack.c.l.b16 %v1429
      %v2049 = vunpack.c.h.b16 %v1429
      %v2050 = vunpack.c.l.b16 %v1430
      %v2051 = vunpack.c.h.b16 %v1430
      %v2052 = vunpack.c.l.b16 %v1431
      %v2053 = vunpack.c.h.b16 %v1431
      %v2054 = vunpack.c.l.b16 %v1432
      %v2055 = vunpack.c.h.b16 %v1432
      %v2056 = vunpack.c.l.b16 %v1433
      %v2057 = vunpack.c.h.b16 %v1433
      %v2058 = vunpack.c.l.b16 %v1434
      %v2059 = vunpack.c.h.b16 %v1434
      %v2060 = vunpack.c.l.b16 %v1435
      %v2061 = vunpack.c.h.b16 %v1435
      %v2062 = vunpack.c.l.b16 %v1436
      %v2063 = vunpack.c.h.b16 %v1436
      %v2064 = vunpack.c.l.b16 %v1437
      %v2065 = vunpack.c.h.b16 %v1437
      %v2066 = vunpack.c.l.b16 %v1438
      %v2067 = vunpack.c.h.b16 %v1438
      %v2068 = vunpack.c.l.b16 %v1439
      %v2069 = vunpack.c.h.b16 %v1439
      %v2070 = vunpack.c.l.b16 %v1440
      %v2071 = vunpack.c.h.b16 %v1440
      %v2072 = vunpack.c.l.b16 %v1441
      %v2073 = vunpack.c.h.b16 %v1441
      %v2074 = vunpack.c.l.b16 %v1442
      %v2075 = vunpack.c.h.b16 %v1442
      %v2076 = vunpack.c.l.b16 %v1443
      %v2077 = vunpack.c.h.b16 %v1443
      %v2078 = vunpack.c.l.b16 %v1444
      %v2079 = vunpack.c.h.b16 %v1444
      %v2080 = vunpack.c.l.b16 %v1445
      %v2081 = vunpack.c.h.b16 %v1445
      %v2082 = vunpack.c.l.b16 %v1446
      %v2083 = vunpack.c.h.b16 %v1446
      %v2084 = vunpack.c.l.b16 %v1447
      %v2085 = vunpack.c.h.b16 %v1447
      %v2086 = vunpack.c.l.b16 %v1448
      %v2087 = vunpack.c.h.b16 %v1448
      %v2088 = vunpack.c.l.b16 %v1449
      %v2089 = vunpack.c.h.b16 %v1449
      %v2090 = vunpack.c.l.b16 %v1450
      %v2091 = vunpack.c.h.b16 %v1450
      %v2092 = vunpack.c.l.b16 %v1451
      %v2093 = vunpack.c.h.b16 %v1451
      %v2094 = vunpack.c.l.b16 %v1452
      %v2095 = vunpack.c.h.b16 %v1452
      %v2096 = vunpack.c.l.b16 %v1453
      %v2097 = vunpack.c.h.b16 %v1453
      %v2098 = vunpack.c.l.b16 %v1454
      %v2099 = vunpack.c.h.b16 %v1454
      %v2100 = vunpack.c.l.b16 %v1455
      %v2101 = vunpack.c.h.b16 %v1455
      %v2102 = vunpack.c.l.b16 %v1456
      %v2103 = vunpack.c.h.b16 %v1456
      %v2104 = vunpack.c.l.b16 %v1457
      %v2105 = vunpack.c.h.b16 %v1457
      %v2106 = vunpack.c.l.b16 %v1458
      %v2107 = vunpack.c.h.b16 %v1458
      %v2108 = vunpack.c.l.b16 %v1459
      %v2109 = vunpack.c.h.b16 %v1459
      %v2110 = vunpack.c.l.b16 %v1460
      %v2111 = vunpack.c.h.b16 %v1460
      %v2112 = vunpack.c.l.b16 %v1461
      %v2113 = vunpack.c.h.b16 %v1461
      %v2114 = vunpack.c.l.b16 %v1462
      %v2115 = vunpack.c.h.b16 %v1462
      %v2116 = vunpack.c.l.b16 %v1463
      %v2117 = vunpack.c.h.b16 %v1463
      %v2118 = vunpack.c.l.b16 %v1464
      %v2119 = vunpack.c.h.b16 %v1464
      %v2120 = vunpack.c.l.b16 %v1465
      %v2121 = vunpack.c.h.b16 %v1465
      %v2122 = vunpack.c.l.b16 %v1466
      %v2123 = vunpack.c.h.b16 %v1466
      %v2124 = vunpack.c.l.b16 %v1467
      %v2125 = vunpack.c.h.b16 %v1467
      %v2126 = vunpack.c.l.b16 %v1468
      %v2127 = vunpack.c.h.b16 %v1468
      %v2128 = vunpack.c.l.b16 %v1469
      %v2129 = vunpack.c.h.b16 %v1469
      %v2130 = vunpack.c.l.b16 %v1470
      %v2131 = vunpack.c.h.b16 %v1470
      %v2132 = vunpack.c.l.b16 %v1471
      %v2133 = vunpack.c.h.b16 %v1471
      %v2134 = vunpack.c.l.b16 %v1472
      %v2135 = vunpack.c.h.b16 %v1472
      %v2136 = vunpack.c.l.b16 %v1473
      %v2137 = vunpack.c.h.b16 %v1473
      %v2138 = vunpack.c.l.b16 %v1474
      %v2139 = vunpack.c.h.b16 %v1474
      %v2140 = vunpack.c.l.b16 %v1475
      %v2141 = vunpack.c.h.b16 %v1475
      %v2142 = vunpack.c.l.b16 %v1476
      %v2143 = vunpack.c.h.b16 %v1476
      %v2144 = vunpack.c.l.b16 %v1477
      %v2145 = vunpack.c.h.b16 %v1477
      %v2146 = vunpack.c.l.b16 %v1478
      %v2147 = vunpack.c.h.b16 %v1478
      %v2148 = vunpack.c.l.b16 %v1479
      %v2149 = vunpack.c.h.b16 %v1479
      %v2150 = vunpack.c.l.b16 %v1480
      %v2151 = vunpack.c.h.b16 %v1480
      %v2152 = vunpack.c.l.b16 %v1481
      %v2153 = vunpack.c.h.b16 %v1481
      %v2154 = vunpack.c.l.b16 %v1482
      %v2155 = vunpack.c.h.b16 %v1482
      %v2156 = vunpack.c.l.b16 %v1483
      %v2157 = vunpack.c.h.b16 %v1483
      %v2158 = vunpack.c.l.b16 %v1484
      %v2159 = vunpack.c.h.b16 %v1484
      %v2160 = vunpack.c.l.b16 %v1485
      %v2161 = vunpack.c.h.b16 %v1485
      %v2162 = vunpack.c.l.b16 %v1486
      %v2163 = vunpack.c.h.b16 %v1486
      %v2164 = vunpack.c.l.b16 %v1487
      %v2165 = vunpack.c.h.b16 %v1487
      %v2166 = vunpack.c.l.b16 %v1488
      %v2167 = vunpack.c.h.b16 %v1488
      %v2168 = vunpack.c.l.b16 %v1489
      %v2169 = vunpack.c.h.b16 %v1489
      %v2170 = vunpack.c.l.b16 %v1490
      %v2171 = vunpack.c.h.b16 %v1490
      %v2172 = vunpack.c.l.b16 %v1491
      %v2173 = vunpack.c.h.b16 %v1491
      %v2174 = vunpack.c.l.b16 %v1492
      %v2175 = vunpack.c.h.b16 %v1492
      %v2176 = vunpack.c.l.b16 %v1493
      %v2177 = vunpack.c.h.b16 %v1493
      %v2178 = vunpack.c.l.b16 %v1494
      %v2179 = vunpack.c.h.b16 %v1494
      %v2180 = vunpack.c.l.b16 %v1495
      %v2181 = vunpack.c.h.b16 %v1495
      %v2182 = vunpack.c.l.b16 %v1496
      %v2183 = vunpack.c.h.b16 %v1496
      %v2184 = vunpack.c.l.b16 %v1497
      %v2185 = vunpack.c.h.b16 %v1497
      %v2186 = vunpack.c.l.b16 %v1498
      %v2187 = vunpack.c.h.b16 %v1498
      %v2188 = vunpack.c.l.b16 %v1499
      %v2189 = vunpack.c.h.b16 %v1499
      %v2190 = vunpack.c.l.b16 %v1500
      %v2191 = vunpack.c.h.b16 %v1500
      %v2192 = vunpack.c.l.b16 %v1501
      %v2193 = vunpack.c.h.b16 %v1501
      %v2194 = vunpack.c.l.b16 %v1502
      %v2195 = vunpack.c.h.b16 %v1502
      %v2196 = vunpack.c.l.b16 %v1503
      %v2197 = vunpack.c.h.b16 %v1503
      %v2198 = vunpack.c.l.b16 %v1504
      %v2199 = vunpack.c.h.b16 %v1504
      %v2200 = vunpack.c.l.b16 %v1505
      %v2201 = vunpack.c.h.b16 %v1505
      %v2202 = vunpack.c.l.b16 %v1506
      %v2203 = vunpack.c.h.b16 %v1506
      %v2204 = vunpack.c.l.b16 %v1507
      %v2205 = vunpack.c.h.b16 %v1507
      %v2206 = vunpack.c.l.b16 %v1508
      %v2207 = vunpack.c.h.b16 %v1508
      %v2208 = vunpack.c.l.b16 %v1509
      %v2209 = vunpack.c.h.b16 %v1509
      %v2210 = vunpack.c.l.b16 %v1510
      %v2211 = vunpack.c.h.b16 %v1510
      %v2212 = vunpack.c.l.b16 %v1511
      %v2213 = vunpack.c.h.b16 %v1511
      %v2214 = vunpack.c.l.b16 %v1512
      %v2215 = vunpack.c.h.b16 %v1512
      %v2216 = vunpack.c.l.b16 %v1513
      %v2217 = vunpack.c.h.b16 %v1513
      %v2218 = vunpack.c.l.b16 %v1514
      %v2219 = vunpack.c.h.b16 %v1514
      %v2220 = vunpack.c.l.b16 %v1515
      %v2221 = vunpack.c.h.b16 %v1515
      %v2222 = vunpack.c.l.b16 %v1516
      %v2223 = vunpack.c.h.b16 %v1516
      %v2224 = vunpack.c.l.b16 %v1517
      %v2225 = vunpack.c.h.b16 %v1517
      %v2226 = vunpack.c.l.b16 %v1518
      %v2227 = vunpack.c.h.b16 %v1518
      %v2228 = vunpack.c.l.b16 %v1519
      %v2229 = vunpack.c.h.b16 %v1519
      %v2230 = vunpack.c.l.b16 %v1520
      %v2231 = vunpack.c.h.b16 %v1520
      %v2232 = vunpack.c.l.b16 %v1521
      %v2233 = vunpack.c.h.b16 %v1521
      %v2234 = vunpack.c.l.b16 %v1522
      %v2235 = vunpack.c.h.b16 %v1522
      %v2236 = vunpack.c.l.b16 %v1523
      %v2237 = vunpack.c.h.b16 %v1523
      %v2238 = vunpack.c.l.b16 %v1524
      %v2239 = vunpack.c.h.b16 %v1524
      %v2240 = vunpack.c.l.b16 %v1525
      %v2241 = vunpack.c.h.b16 %v1525
      %v2242 = vunpack.c.l.b16 %v1526
      %v2243 = vunpack.c.h.b16 %v1526
      %v2244 = vunpack.c.l.b16 %v1527
      %v2245 = vunpack.c.h.b16 %v1527
      %v2246 = vunpack.c.l.b16 %v1528
      %v2247 = vunpack.c.h.b16 %v1528
      %v2248 = vunpack.c.l.b16 %v1529
      %v2249 = vunpack.c.h.b16 %v1529
      %v2250 = vunpack.c.l.b16 %v1530
      %v2251 = vunpack.c.h.b16 %v1530
      %v2252 = vunpack.c.l.b16 %v1531
      %v2253 = vunpack.c.h.b16 %v1531
      %v2254 = vunpack.c.l.b16 %v1532
      %v2255 = vunpack.c.h.b16 %v1532
      %v2256 = vunpack.c.l.b16 %v1533
      %v2257 = vunpack.c.h.b16 %v1533
      %v2258 = vunpack.c.l.b16 %v1534
      %v2259 = vunpack.c.h.b16 %v1534
      %v2260 = vunpack.c.l.b16 %v1535
      %v2261 = vunpack.c.h.b16 %v1535
      %v2262 = vunpack.c.l.b16 %v1536
      %v2263 = vunpack.c.h.b16 %v1536
      %v2264 = vunpack.c.l.b16 %v1537
      %v2265 = vunpack.c.h.b16 %v1537
      %v2266 = vunpack.c.l.b16 %v1538
      %v2267 = vunpack.c.h.b16 %v1538
      %v2268 = vunpack.c.l.b16 %v1539
      %v2269 = vunpack.c.h.b16 %v1539
      %v2270 = vunpack.c.l.b16 %v1540
      %v2271 = vunpack.c.h.b16 %v1540
      %v2272 = vunpack.c.l.b16 %v1541
      %v2273 = vunpack.c.h.b16 %v1541
      %v2274 = vunpack.c.l.b16 %v1542
      %v2275 = vunpack.c.h.b16 %v1542
      %v2276 = vunpack.c.l.b16 %v1543
      %v2277 = vunpack.c.h.b16 %v1543
      %v2278 = vunpack.c.l.b16 %v1544
      %v2279 = vunpack.c.h.b16 %v1544
      %v2280 = vunpack.c.l.b16 %v1545
      %v2281 = vunpack.c.h.b16 %v1545
      %v2282 = vunpack.c.l.b16 %v1546
      %v2283 = vunpack.c.h.b16 %v1546
      %v2284 = vunpack.c.l.b16 %v1547
      %v2285 = vunpack.c.h.b16 %v1547
      %v2286 = vunpack.c.l.b16 %v1548
      %v2287 = vunpack.c.h.b16 %v1548
      %v2288 = vunpack.c.l.b16 %v1549
      %v2289 = vunpack.c.h.b16 %v1549
      %v2290 = vunpack.c.l.b16 %v1550
      %v2291 = vunpack.c.h.b16 %v1550
      %v2292 = vunpack.c.l.b16 %v1551
      %v2293 = vunpack.c.h.b16 %v1551
      %v2294 = vunpack.c.l.b16 %v1552
      %v2295 = vunpack.c.h.b16 %v1552
      %v2296 = vunpack.c.l.b16 %v1553
      %v2297 = vunpack.c.h.b16 %v1553
      %v2298 = vunpack.c.l.b16 %v1554
      %v2299 = vunpack.c.h.b16 %v1554
      %v2300 = vunpack.c.l.b16 %v1555
      %v2301 = vunpack.c.h.b16 %v1555
      %v2302 = vunpack.c.l.b16 %v1556
      %v2303 = vunpack.c.h.b16 %v1556
      %v2304 = vunpack.c.l.b16 %v1557
      %v2305 = vunpack.c.h.b16 %v1557
      %v2306 = vunpack.c.l.b16 %v1558
      %v2307 = vunpack.c.h.b16 %v1558
      %v2308 = vunpack.c.l.b16 %v1559
      %v2309 = vunpack.c.h.b16 %v1559
      %v2310 = vunpack.c.l.b16 %v1560
      %v2311 = vunpack.c.h.b16 %v1560
      %v2312 = vunpack.c.l.b16 %v1561
      %v2313 = vunpack.c.h.b16 %v1561
      %v2314 = vunpack.c.l.b16 %v1562
      %v2315 = vunpack.c.h.b16 %v1562
      %v2316 = vunpack.c.l.b16 %v1563
      %v2317 = vunpack.c.h.b16 %v1563
      %v2318 = vunpack.c.l.b16 %v1564
      %v2319 = vunpack.c.h.b16 %v1564
      %v2320 = vunpack.c.l.b16 %v1565
      %v2321 = vunpack.c.h.b16 %v1565
      %v2322 = vunpack.c.l.b16 %v1566
      %v2323 = vunpack.c.h.b16 %v1566
      %v2324 = vunpack.c.l.b16 %v1567
      %v2325 = vunpack.c.h.b16 %v1567
      %v2326 = vunpack.c.l.b16 %v1568
      %v2327 = vunpack.c.h.b16 %v1568
      %v2328 = vunpack.c.l.b16 %v1569
      %v2329 = vunpack.c.h.b16 %v1569
      %v2330 = vunpack.c.l.b16 %v1570
      %v2331 = vunpack.c.h.b16 %v1570
      %v2332 = vunpack.c.l.b16 %v1571
      %v2333 = vunpack.c.h.b16 %v1571
      %v2334 = vunpack.c.l.b16 %v1572
      %v2335 = vunpack.c.h.b16 %v1572
      %v2336 = vunpack.c.l.b16 %v1573
      %v2337 = vunpack.c.h.b16 %v1573
      %v2338 = vunpack.c.l.b16 %v1574
      %v2339 = vunpack.c.h.b16 %v1574
      %v2340 = vunpack.c.l.b16 %v1575
      %v2341 = vunpack.c.h.b16 %v1575
      %v2342 = vunpack.c.l.b16 %v1576
      %v2343 = vunpack.c.h.b16 %v1576
      %v2344 = vunpack.c.l.b16 %v1577
      %v2345 = vunpack.c.h.b16 %v1577
      %v2346 = vpack.c.b16 %v1842, %v1834
      %v2347 = vpack.c.b16 %v1843, %v1835
      %v2348 = vpack.c.b16 %v1844, %v1836
      %v2349 = vpack.c.b16 %v1845, %v1837
      %v2350 = vpack.c.b16 %v1846, %v1838
      %v2351 = vpack.c.b16 %v1847, %v1839
      %v2352 = vpack.c.b16 %v1848, %v1840
      %v2353 = vpack.c.b16 %v1849, %v1841
      %v2354 = vpack.c.b16 %v1858, %v1850
      %v2355 = vpack.c.b16 %v1859, %v1851
      %v2356 = vpack.c.b16 %v1860, %v1852
      %v2357 = vpack.c.b16 %v1861, %v1853
      %v2358 = vpack.c.b16 %v1862, %v1854
      %v2359 = vpack.c.b16 %v1863, %v1855
      %v2360 = vpack.c.b16 %v1864, %v1856
      %v2361 = vpack.c.b16 %v1865, %v1857
      %v2362 = vpack.c.b16 %v1874, %v1866
      %v2363 = vpack.c.b16 %v1875, %v1867
      %v2364 = vpack.c.b16 %v1876, %v1868
      %v2365 = vpack.c.b16 %v1877, %v1869
      %v2366 = vpack.c.b16 %v1878, %v1870
      %v2367 = vpack.c.b16 %v1879, %v1871
      %v2368 = vpack.c.b16 %v1880, %v1872
      %v2369 = vpack.c.b16 %v1881, %v1873
      %v2370 = vpack.c.b16 %v1890, %v1882
      %v2371 = vpack.c.b16 %v1891, %v1883
      %v2372 = vpack.c.b16 %v1892, %v1884
      %v2373 = vpack.c.b16 %v1893, %v1885
      %v2374 = vpack.c.b16 %v1894, %v1886
      %v2375 = vpack.c.b16 %v1895, %v1887
      %v2376 = vpack.c.b16 %v1896, %v1888
      %v2377 = vpack.c.b16 %v1897, %v1889
      %v2378 = vpack.c.b16 %v1906, %v1898
      %v2379 = vpack.c.b16 %v1907, %v1899
      %v2380 = vpack.c.b16 %v1908, %v1900
      %v2381 = vpack.c.b16 %v1909, %v1901
      %v2382 = vpack.c.b16 %v1910, %v1902
      %v2383 = vpack.c.b16 %v1911, %v1903
      %v2384 = vpack.c.b16 %v1912, %v1904
      %v2385 = vpack.c.b16 %v1913, %v1905
      %v2386 = vpack.c.b16 %v1922, %v1914
      %v2387 = vpack.c.b16 %v1923, %v1915
      %v2388 = vpack.c.b16 %v1924, %v1916
      %v2389 = vpack.c.b16 %v1925, %v1917
      %v2390 = vpack.c.b16 %v1926, %v1918
      %v2391 = vpack.c.b16 %v1927, %v1919
      %v2392 = vpack.c.b16 %v1928, %v1920
      %v2393 = vpack.c.b16 %v1929, %v1921
      %v2394 = vpack.c.b16 %v1938, %v1930
      %v2395 = vpack.c.b16 %v1939, %v1931
      %v2396 = vpack.c.b16 %v1940, %v1932
      %v2397 = vpack.c.b16 %v1941, %v1933
      %v2398 = vpack.c.b16 %v1942, %v1934
      %v2399 = vpack.c.b16 %v1943, %v1935
      %v2400 = vpack.c.b16 %v1944, %v1936
      %v2401 = vpack.c.b16 %v1945, %v1937
      %v2402 = vpack.c.b16 %v1954, %v1946
      %v2403 = vpack.c.b16 %v1955, %v1947
      %v2404 = vpack.c.b16 %v1956, %v1948
      %v2405 = vpack.c.b16 %v1957, %v1949
      %v2406 = vpack.c.b16 %v1958, %v1950
      %v2407 = vpack.c.b16 %v1959, %v1951
      %v2408 = vpack.c.b16 %v1960, %v1952
      %v2409 = vpack.c.b16 %v1961, %v1953
      %v2410 = vpack.c.b16 %v1970, %v1962
      %v2411 = vpack.c.b16 %v1971, %v1963
      %v2412 = vpack.c.b16 %v1972, %v1964
      %v2413 = vpack.c.b16 %v1973, %v1965
      %v2414 = vpack.c.b16 %v1974, %v1966
      %v2415 = vpack.c.b16 %v1975, %v1967
      %v2416 = vpack.c.b16 %v1976, %v1968
      %v2417 = vpack.c.b16 %v1977, %v1969
      %v2418 = vpack.c.b16 %v1986, %v1978
      %v2419 = vpack.c.b16 %v1987, %v1979
      %v2420 = vpack.c.b16 %v1988, %v1980
      %v2421 = vpack.c.b16 %v1989, %v1981
      %v2422 = vpack.c.b16 %v1990, %v1982
      %v2423 = vpack.c.b16 %v1991, %v1983
      %v2424 = vpack.c.b16 %v1992, %v1984
      %v2425 = vpack.c.b16 %v1993, %v1985
      %v2426 = vpack.c.b16 %v2002, %v1994
      %v2427 = vpack.c.b16 %v2003, %v1995
      %v2428 = vpack.c.b16 %v2004, %v1996
      %v2429 = vpack.c.b16 %v2005, %v1997
      %v2430 = vpack.c.b16 %v2006, %v1998
      %v2431 = vpack.c.b16 %v2007, %v1999
      %v2432 = vpack.c.b16 %v2008, %v2000
      %v2433 = vpack.c.b16 %v2009, %v2001
      %v2434 = vpack.c.b16 %v2018, %v2010
      %v2435 = vpack.c.b16 %v2019, %v2011
      %v2436 = vpack.c.b16 %v2020, %v2012
      %v2437 = vpack.c.b16 %v2021, %v2013
      %v2438 = vpack.c.b16 %v2022, %v2014
      %v2439 = vpack.c.b16 %v2023, %v2015
      %v2440 = vpack.c.b16 %v2024, %v2016
      %v2441 = vpack.c.b16 %v2025, %v2017
      %v2442 = vpack.c.b16 %v2034, %v2026
      %v2443 = vpack.c.b16 %v2035, %v2027
      %v2444 = vpack.c.b16 %v2036, %v2028
      %v2445 = vpack.c.b16 %v2037, %v2029
      %v2446 = vpack.c.b16 %v2038, %v2030
      %v2447 = vpack.c.b16 %v2039, %v2031
      %v2448 = vpack.c.b16 %v2040, %v2032
      %v2449 = vpack.c.b16 %v2041, %v2033
      %v2450 = vpack.c.b16 %v2050, %v2042
      %v2451 = vpack.c.b16 %v2051, %v2043
      %v2452 = vpack.c.b16 %v2052, %v2044
      %v2453 = vpack.c.b16 %v2053, %v2045
      %v2454 = vpack.c.b16 %v2054, %v2046
      %v2455 = vpack.c.b16 %v2055, %v2047
      %v2456 = vpack.c.b16 %v2056, %v2048
      %v2457 = vpack.c.b16 %v2057, %v2049
      %v2458 = vpack.c.b16 %v2066, %v2058
      %v2459 = vpack.c.b16 %v2067, %v2059
      %v2460 = vpack.c.b16 %v2068, %v2060
      %v2461 = vpack.c.b16 %v2069, %v2061
      %v2462 = vpack.c.b16 %v2070, %v2062
      %v2463 = vpack.c.b16 %v2071, %v2063
      %v2464 = vpack.c.b16 %v2072, %v2064
      %v2465 = vpack.c.b16 %v2073, %v2065
      %v2466 = vpack.c.b16 %v2082, %v2074
      %v2467 = vpack.c.b16 %v2083, %v2075
      %v2468 = vpack.c.b16 %v2084, %v2076
      %v2469 = vpack.c.b16 %v2085, %v2077
      %v2470 = vpack.c.b16 %v2086, %v2078
      %v2471 = vpack.c.b16 %v2087, %v2079
      %v2472 = vpack.c.b16 %v2088, %v2080
      %v2473 = vpack.c.b16 %v2089, %v2081
      %v2474 = vpack.c.b16 %v2098, %v2090
      %v2475 = vpack.c.b16 %v2099, %v2091
      %v2476 = vpack.c.b16 %v2100, %v2092
      %v2477 = vpack.c.b16 %v2101, %v2093
      %v2478 = vpack.c.b16 %v2102, %v2094
      %v2479 = vpack.c.b16 %v2103, %v2095
      %v2480 = vpack.c.b16 %v2104, %v2096
      %v2481 = vpack.c.b16 %v2105, %v2097
      %v2482 = vpack.c.b16 %v2114, %v2106
      %v2483 = vpack.c.b16 %v2115, %v2107
      %v2484 = vpack.c.b16 %v2116, %v2108
      %v2485 = vpack.c.b16 %v2117, %v2109
      %v2486 = vpack.c.b16 %v2118, %v2110
      %v2487 = vpack.c.b16 %v2119, %v2111
      %v2488 = vpack.c.b16 %v2120, %v2112
      %v2489 = vpack.c.b16 %v2121, %v2113
      %v2490 = vpack.c.b16 %v2130, %v2122
      %v2491 = vpack.c.b16 %v2131, %v2123
      %v2492 = vpack.c.b16 %v2132, %v2124
      %v2493 = vpack.c.b16 %v2133, %v2125
      %v2494 = vpack.c.b16 %v2134, %v2126
      %v2495 = vpack.c.b16 %v2135, %v2127
      %v2496 = vpack.c.b16 %v2136, %v2128
      %v2497 = vpack.c.b16 %v2137, %v2129
      %v2498 = vpack.c.b16 %v2146, %v2138
      %v2499 = vpack.c.b16 %v2147, %v2139
      %v2500 = vpack.c.b16 %v2148, %v2140
      %v2501 = vpack.c.b16 %v2149, %v2141
      %v2502 = vpack.c.b16 %v2150, %v2142
      %v2503 = vpack.c.b16 %v2151, %v2143
      %v2504 = vpack.c.b16 %v2152, %v2144
      %v2505 = vpack.c.b16 %v2153, %v2145
      %v2506 = vpack.c.b16 %v2162, %v2154
      %v2507 = vpack.c.b16 %v2163, %v2155
      %v2508 = vpack.c.b16 %v2164, %v2156
      %v2509 = vpack.c.b16 %v2165, %v2157
      %v2510 = vpack.c.b16 %v2166, %v2158
      %v2511 = vpack.c.b16 %v2167, %v2159
      %v2512 = vpack.c.b16 %v2168, %v2160
      %v2513 = vpack.c.b16 %v2169, %v2161
      %v2514 = vpack.c.b16 %v2178, %v2170
      %v2515 = vpack.c.b16 %v2179, %v2171
      %v2516 = vpack.c.b16 %v2180, %v2172
      %v2517 = vpack.c.b16 %v2181, %v2173
      %v2518 = vpack.c.b16 %v2182, %v2174
      %v2519 = vpack.c.b16 %v2183, %v2175
      %v2520 = vpack.c.b16 %v2184, %v2176
      %v2521 = vpack.c.b16 %v2185, %v2177
      %v2522 = vpack.c.b16 %v2194, %v2186
      %v2523 = vpack.c.b16 %v2195, %v2187
      %v2524 = vpack.c.b16 %v2196, %v2188
      %v2525 = vpack.c.b16 %v2197, %v2189
      %v2526 = vpack.c.b16 %v2198, %v2190
      %v2527 = vpack.c.b16 %v2199, %v2191
      %v2528 = vpack.c.b16 %v2200, %v2192
      %v2529 = vpack.c.b16 %v2201, %v2193
      %v2530 = vpack.c.b16 %v2210, %v2202
      %v2531 = vpack.c.b16 %v2211, %v2203
      %v2532 = vpack.c.b16 %v2212, %v2204
      %v2533 = vpack.c.b16 %v2213, %v2205
      %v2534 = vpack.c.b16 %v2214, %v2206
      %v2535 = vpack.c.b16 %v2215, %v2207
      %v2536 = vpack.c.b16 %v2216, %v2208
      %v2537 = vpack.c.b16 %v2217, %v2209
      %v2538 = vpack.c.b16 %v2226, %v2218
      %v2539 = vpack.c.b16 %v2227, %v2219
      %v2540 = vpack.c.b16 %v2228, %v2220
      %v2541 = vpack.c.b16 %v2229, %v2221
      %v2542 = vpack.c.b16 %v2230, %v2222
      %v2543 = vpack.c.b16 %v2231, %v2223
      %v2544 = vpack.c.b16 %v2232, %v2224
      %v2545 = vpack.c.b16 %v2233, %v2225
      %v2546 = vpack.c.b16 %v2242, %v2234
      %v2547 = vpack.c.b16 %v2243, %v2235
      %v2548 = vpack.c.b16 %v2244, %v2236
      %v2549 = vpack.c.b16 %v2245, %v2237
      %v2550 = vpack.c.b16 %v2246, %v2238
      %v2551 = vpack.c.b16 %v2247, %v2239
      %v2552 = vpack.c.b16 %v2248, %v2240
      %v2553 = vpack.c.b16 %v2249, %v2241
      %v2554 = vpack.c.b16 %v2258, %v2250
      %v2555 = vpack.c.b16 %v2259, %v2251
      %v2556 = vpack.c.b16 %v2260, %v2252
      %v2557 = vpack.c.b16 %v2261, %v2253
      %v2558 = vpack.c.b16 %v2262, %v2254
      %v2559 = vpack.c.b16 %v2263, %v2255
      %v2560 = vpack.c.b16 %v2264, %v2256
      %v2561 = vpack.c.b16 %v2265, %v2257
      %v2562 = vpack.c.b16 %v2274, %v2266
      %v2563 = vpack.c.b16 %v2275, %v2267
      %v2564 = vpack.c.b16 %v2276, %v2268
      %v2565 = vpack.c.b16 %v2277, %v2269
      %v2566 = vpack.c.b16 %v2278, %v2270
      %v2567 = vpack.c.b16 %v2279, %v2271
      %v2568 = vpack.c.b16 %v2280, %v2272
      %v2569 = vpack.c.b16 %v2281, %v2273
      %v2570 = vpack.c.b16 %v2290, %v2282
      %v2571 = vpack.c.b16 %v2291, %v2283
      %v2572 = vpack.c.b16 %v2292, %v2284
      %v2573 = vpack.c.b16 %v2293, %v2285
      %v2574 = vpack.c.b16 %v2294, %v2286
      %v2575 = vpack.c.b16 %v2295, %v2287
      %v2576 = vpack.c.b16 %v2296, %v2288
      %v2577 = vpack.c.b16 %v2297, %v2289
      %v2578 = vpack.c.b16 %v2306, %v2298
      %v2579 = vpack.c.b16 %v2307, %v2299
      %v2580 = vpack.c.b16 %v2308, %v2300
      %v2581 = vpack.c.b16 %v2309, %v2301
      %v2582 = vpack.c.b16 %v2310, %v2302
      %v2583 = vpack.c.b16 %v2311, %v2303
      %v2584 = vpack.c.b16 %v2312, %v2304
      %v2585 = vpack.c.b16 %v2313, %v2305
      %v2586 = vpack.c.b16 %v2322, %v2314
      %v2587 = vpack.c.b16 %v2323, %v2315
      %v2588 = vpack.c.b16 %v2324, %v2316
      %v2589 = vpack.c.b16 %v2325, %v2317
      %v2590 = vpack.c.b16 %v2326, %v2318
      %v2591 = vpack.c.b16 %v2327, %v2319
      %v2592 = vpack.c.b16 %v2328, %v2320
      %v2593 = vpack.c.b16 %v2329, %v2321
      %v2594 = vpack.c.b16 %v2338, %v2330
      %v2595 = vpack.c.b16 %v2339, %v2331
      %v2596 = vpack.c.b16 %v2340, %v2332
      %v2597 = vpack.c.b16 %v2341, %v2333
      %v2598 = vpack.c.b16 %v2342, %v2334
      %v2599 = vpack.c.b16 %v2343, %v2335
      %v2600 = vpack.c.b16 %v2344, %v2336
      %v2601 = vpack.c.b16 %v2345, %v2337
      %2858 = vmatprep.subr.bf16.mxu0 %v2403
      %2859 = vmatpush1.bf16.msra.mxu0 %v2402
      %2860 = vmatprep.subr.bf16.mxu0 %v2395
      %2861 = vmatpush1.bf16.msra.mxu0 %v2394
      %2862 = vmatprep.subr.bf16.mxu0 %v2387
      %2863 = vmatpush1.bf16.msra.mxu0 %v2386
      %2864 = vmatprep.subr.bf16.mxu0 %v2379
      %2865 = vmatpush1.bf16.msra.mxu0 %v2378
      %2866 = vmatprep.subr.bf16.mxu0 %v2371
      %2867 = vmatpush1.bf16.msra.mxu0 %v2370
      %2868 = vmatprep.subr.bf16.mxu0 %v2363
      %2869 = vmatpush1.bf16.msra.mxu0 %v2362
      %2870 = vmatprep.subr.bf16.mxu0 %v2355
      %2871 = vmatpush1.bf16.msra.mxu0 %v2354
      %2872 = vmatprep.subr.bf16.mxu0 %v2347
      %2873 = vmatpush1.bf16.msra.mxu0 %v2346
      %2874 = vmatprep.subr.bf16.mxu0 %v2467
      %2875 = vmatpush2.bf16.msra.mxu0 %v2466
      %2876 = vmatprep.subr.bf16.mxu0 %v2459
      %2877 = vmatpush2.bf16.msra.mxu0 %v2458
      %2878 = vmatprep.subr.bf16.mxu0 %v2451
      %2879 = vmatpush2.bf16.msra.mxu0 %v2450
      %2880 = vmatprep.subr.bf16.mxu0 %v2443
      %2881 = vmatpush2.bf16.msra.mxu0 %v2442
      %2882 = vmatprep.subr.bf16.mxu0 %v2435
      %2883 = vmatpush2.bf16.msra.mxu0 %v2434
      %2884 = vmatprep.subr.bf16.mxu0 %v2427
      %2885 = vmatpush2.bf16.msra.mxu0 %v2426
      %2886 = vmatprep.subr.bf16.mxu0 %v2419
      %2887 = vmatpush2.bf16.msra.mxu0 %v2418
      %2888 = vmatprep.subr.bf16.mxu0 %v2411
      %2889 = vmatpush2.bf16.msra.mxu0 %v2410
      %2890 = vmatprep.mubr.bf16.mxu0 %v1315
      %2891 = vmatmul.mubr.bf16.gmra.mxu0 %v1314
      %v2892 = vpop.f32.mrf.mxu0
      %v2893 = vadd.f32 0.0, %v2892
      %v2894 = vpop.f32.mrf.mxu0
      %v2895 = vadd.f32 0.0, %v2894
      %v2896 = vpop.f32.mrf.mxu0
      %v2897 = vadd.f32 0.0, %v2896
      %v2898 = vpop.f32.mrf.mxu0
      %v2899 = vadd.f32 0.0, %v2898
      %2900 = vmatprep.mubr.bf16.mxu0 %v1319
      %2901 = vmatmul.mubr.bf16.gmra.mxu0 %v1318
      %v2902 = vpop.f32.mrf.mxu0
      %v2903 = vadd.f32 0.0, %v2902
      %v2904 = vpop.f32.mrf.mxu0
      %v2905 = vadd.f32 0.0, %v2904
      %v2906 = vpop.f32.mrf.mxu0
      %v2907 = vadd.f32 0.0, %v2906
      %v2908 = vpop.f32.mrf.mxu0
      %v2909 = vadd.f32 0.0, %v2908
      %2910 = vdwg.mxu0
      %2911 = vmatprep.subr.bf16.mxu0 %v2531
      %2912 = vmatpush1.bf16.msra.mxu0 %v2530
      %2913 = vmatprep.subr.bf16.mxu0 %v2523
      %2914 = vmatpush1.bf16.msra.mxu0 %v2522
      %2915 = vmatprep.subr.bf16.mxu0 %v2515
      %2916 = vmatpush1.bf16.msra.mxu0 %v2514
      %2917 = vmatprep.subr.bf16.mxu0 %v2507
      %2918 = vmatpush1.bf16.msra.mxu0 %v2506
      %2919 = vmatprep.subr.bf16.mxu0 %v2499
      %2920 = vmatpush1.bf16.msra.mxu0 %v2498
      %2921 = vmatprep.subr.bf16.mxu0 %v2491
      %2922 = vmatpush1.bf16.msra.mxu0 %v2490
      %2923 = vmatprep.subr.bf16.mxu0 %v2483
      %2924 = vmatpush1.bf16.msra.mxu0 %v2482
      %2925 = vmatprep.subr.bf16.mxu0 %v2475
      %2926 = vmatpush1.bf16.msra.mxu0 %v2474
      %2927 = vmatprep.subr.bf16.mxu0 %v2595
      %2928 = vmatpush2.bf16.msra.mxu0 %v2594
      %2929 = vmatprep.subr.bf16.mxu0 %v2587
      %2930 = vmatpush2.bf16.msra.mxu0 %v2586
      %2931 = vmatprep.subr.bf16.mxu0 %v2579
      %2932 = vmatpush2.bf16.msra.mxu0 %v2578
      %2933 = vmatprep.subr.bf16.mxu0 %v2571
      %2934 = vmatpush2.bf16.msra.mxu0 %v2570
      %2935 = vmatprep.subr.bf16.mxu0 %v2563
      %2936 = vmatpush2.bf16.msra.mxu0 %v2562
      %2937 = vmatprep.subr.bf16.mxu0 %v2555
      %2938 = vmatpush2.bf16.msra.mxu0 %v2554
      %2939 = vmatprep.subr.bf16.mxu0 %v2547
      %2940 = vmatpush2.bf16.msra.mxu0 %v2546
      %2941 = vmatprep.subr.bf16.mxu0 %v2539
      %2942 = vmatpush2.bf16.msra.mxu0 %v2538
      %2943 = vmatprep.mubr.bf16.mxu0 %v1317
      %2944 = vmatmul.mubr.bf16.gmra.mxu0 %v1316
      %v2945 = vpop.f32.mrf.mxu0
      %v2946 = vadd.f32 %v2893, %v2945
      %v2947 = vpop.f32.mrf.mxu0
      %v2948 = vadd.f32 %v2895, %v2947
      %v2949 = vpop.f32.mrf.mxu0
      %v2950 = vadd.f32 %v2897, %v2949
      %v2951 = vpop.f32.mrf.mxu0
      %v2952 = vadd.f32 %v2899, %v2951
      %2953 = vmatprep.mubr.bf16.mxu0 %v1321
      %2954 = vmatmul.mubr.bf16.gmra.mxu0 %v1320
      %v2955 = vpop.f32.mrf.mxu0
      %v2956 = vadd.f32 %v2903, %v2955
      %v2957 = vpop.f32.mrf.mxu0
      %v2958 = vadd.f32 %v2905, %v2957
      %v2959 = vpop.f32.mrf.mxu0
      %v2960 = vadd.f32 %v2907, %v2959
      %v2961 = vpop.f32.mrf.mxu0
      %v2962 = vadd.f32 %v2909, %v2961
      %2963 = vdwg.mxu0
      %2964 = vmatprep.subr.bf16.mxu0 %v2405
      %2965 = vmatpush1.bf16.msra.mxu0 %v2404
      %2966 = vmatprep.subr.bf16.mxu0 %v2397
      %2967 = vmatpush1.bf16.msra.mxu0 %v2396
      %2968 = vmatprep.subr.bf16.mxu0 %v2389
      %2969 = vmatpush1.bf16.msra.mxu0 %v2388
      %2970 = vmatprep.subr.bf16.mxu0 %v2381
      %2971 = vmatpush1.bf16.msra.mxu0 %v2380
      %2972 = vmatprep.subr.bf16.mxu0 %v2373
      %2973 = vmatpush1.bf16.msra.mxu0 %v2372
      %2974 = vmatprep.subr.bf16.mxu0 %v2365
      %2975 = vmatpush1.bf16.msra.mxu0 %v2364
      %2976 = vmatprep.subr.bf16.mxu0 %v2357
      %2977 = vmatpush1.bf16.msra.mxu0 %v2356
      %2978 = vmatprep.subr.bf16.mxu0 %v2349
      %2979 = vmatpush1.bf16.msra.mxu0 %v2348
      %2980 = vmatprep.subr.bf16.mxu0 %v2469
      %2981 = vmatpush2.bf16.msra.mxu0 %v2468
      %2982 = vmatprep.subr.bf16.mxu0 %v2461
      %2983 = vmatpush2.bf16.msra.mxu0 %v2460
      %2984 = vmatprep.subr.bf16.mxu0 %v2453
      %2985 = vmatpush2.bf16.msra.mxu0 %v2452
      %2986 = vmatprep.subr.bf16.mxu0 %v2445
      %2987 = vmatpush2.bf16.msra.mxu0 %v2444
      %2988 = vmatprep.subr.bf16.mxu0 %v2437
      %2989 = vmatpush2.bf16.msra.mxu0 %v2436
      %2990 = vmatprep.subr.bf16.mxu0 %v2429
      %2991 = vmatpush2.bf16.msra.mxu0 %v2428
      %2992 = vmatprep.subr.bf16.mxu0 %v2421
      %2993 = vmatpush2.bf16.msra.mxu0 %v2420
      %2994 = vmatprep.subr.bf16.mxu0 %v2413
      %2995 = vmatpush2.bf16.msra.mxu0 %v2412
      %2996 = vmatprep.mubr.bf16.mxu0 %v1315
      %2997 = vmatmul.mubr.bf16.gmra.mxu0 %v1314
      %v2998 = vpop.f32.mrf.mxu0
      %v2999 = vadd.f32 0.0, %v2998
      %v3000 = vpop.f32.mrf.mxu0
      %v3001 = vadd.f32 0.0, %v3000
      %v3002 = vpop.f32.mrf.mxu0
      %v3003 = vadd.f32 0.0, %v3002
      %v3004 = vpop.f32.mrf.mxu0
      %v3005 = vadd.f32 0.0, %v3004
      %3006 = vmatprep.mubr.bf16.mxu0 %v1319
      %3007 = vmatmul.mubr.bf16.gmra.mxu0 %v1318
      %v3008 = vpop.f32.mrf.mxu0
      %v3009 = vadd.f32 0.0, %v3008
      %v3010 = vpop.f32.mrf.mxu0
      %v3011 = vadd.f32 0.0, %v3010
      %v3012 = vpop.f32.mrf.mxu0
      %v3013 = vadd.f32 0.0, %v3012
      %v3014 = vpop.f32.mrf.mxu0
      %v3015 = vadd.f32 0.0, %v3014
      %3016 = vdwg.mxu0
      %3017 = vmatprep.subr.bf16.mxu0 %v2533
      %3018 = vmatpush1.bf16.msra.mxu0 %v2532
      %3019 = vmatprep.subr.bf16.mxu0 %v2525
      %3020 = vmatpush1.bf16.msra.mxu0 %v2524
      %3021 = vmatprep.subr.bf16.mxu0 %v2517
      %3022 = vmatpush1.bf16.msra.mxu0 %v2516
      %3023 = vmatprep.subr.bf16.mxu0 %v2509
      %3024 = vmatpush1.bf16.msra.mxu0 %v2508
      %3025 = vmatprep.subr.bf16.mxu0 %v2501
      %3026 = vmatpush1.bf16.msra.mxu0 %v2500
      %3027 = vmatprep.subr.bf16.mxu0 %v2493
      %3028 = vmatpush1.bf16.msra.mxu0 %v2492
      %3029 = vmatprep.subr.bf16.mxu0 %v2485
      %3030 = vmatpush1.bf16.msra.mxu0 %v2484
      %3031 = vmatprep.subr.bf16.mxu0 %v2477
      %3032 = vmatpush1.bf16.msra.mxu0 %v2476
      %3033 = vmatprep.subr.bf16.mxu0 %v2597
      %3034 = vmatpush2.bf16.msra.mxu0 %v2596
      %3035 = vmatprep.subr.bf16.mxu0 %v2589
      %3036 = vmatpush2.bf16.msra.mxu0 %v2588
      %3037 = vmatprep.subr.bf16.mxu0 %v2581
      %3038 = vmatpush2.bf16.msra.mxu0 %v2580
      %3039 = vmatprep.subr.bf16.mxu0 %v2573
      %3040 = vmatpush2.bf16.msra.mxu0 %v2572
      %3041 = vmatprep.subr.bf16.mxu0 %v2565
      %3042 = vmatpush2.bf16.msra.mxu0 %v2564
      %3043 = vmatprep.subr.bf16.mxu0 %v2557
      %3044 = vmatpush2.bf16.msra.mxu0 %v2556
      %3045 = vmatprep.subr.bf16.mxu0 %v2549
      %3046 = vmatpush2.bf16.msra.mxu0 %v2548
      %3047 = vmatprep.subr.bf16.mxu0 %v2541
      %3048 = vmatpush2.bf16.msra.mxu0 %v2540
      %3049 = vmatprep.mubr.bf16.mxu0 %v1317
      %3050 = vmatmul.mubr.bf16.gmra.mxu0 %v1316
      %v3051 = vpop.f32.mrf.mxu0
      %v3052 = vadd.f32 %v2999, %v3051
      %v3053 = vpop.f32.mrf.mxu0
      %v3054 = vadd.f32 %v3001, %v3053
      %v3055 = vpop.f32.mrf.mxu0
      %v3056 = vadd.f32 %v3003, %v3055
      %v3057 = vpop.f32.mrf.mxu0
      %v3058 = vadd.f32 %v3005, %v3057
      %3059 = vmatprep.mubr.bf16.mxu0 %v1321
      %3060 = vmatmul.mubr.bf16.gmra.mxu0 %v1320
      %v3061 = vpop.f32.mrf.mxu0
      %v3062 = vadd.f32 %v3009, %v3061
      %v3063 = vpop.f32.mrf.mxu0
      %v3064 = vadd.f32 %v3011, %v3063
      %v3065 = vpop.f32.mrf.mxu0
      %v3066 = vadd.f32 %v3013, %v3065
      %v3067 = vpop.f32.mrf.mxu0
      %v3068 = vadd.f32 %v3015, %v3067
      %3069 = vdwg.mxu0
      %3070 = vmatprep.subr.bf16.mxu0 %v2407
      %3071 = vmatpush1.bf16.msra.mxu0 %v2406
      %3072 = vmatprep.subr.bf16.mxu0 %v2399
      %3073 = vmatpush1.bf16.msra.mxu0 %v2398
      %3074 = vmatprep.subr.bf16.mxu0 %v2391
      %3075 = vmatpush1.bf16.msra.mxu0 %v2390
      %3076 = vmatprep.subr.bf16.mxu0 %v2383
      %3077 = vmatpush1.bf16.msra.mxu0 %v2382
      %3078 = vmatprep.subr.bf16.mxu0 %v2375
      %3079 = vmatpush1.bf16.msra.mxu0 %v2374
      %3080 = vmatprep.subr.bf16.mxu0 %v2367
      %3081 = vmatpush1.bf16.msra.mxu0 %v2366
      %3082 = vmatprep.subr.bf16.mxu0 %v2359
      %3083 = vmatpush1.bf16.msra.mxu0 %v2358
      %3084 = vmatprep.subr.bf16.mxu0 %v2351
      %3085 = vmatpush1.bf16.msra.mxu0 %v2350
      %3086 = vmatprep.subr.bf16.mxu0 %v2471
      %3087 = vmatpush2.bf16.msra.mxu0 %v2470
      %3088 = vmatprep.subr.bf16.mxu0 %v2463
      %3089 = vmatpush2.bf16.msra.mxu0 %v2462
      %3090 = vmatprep.subr.bf16.mxu0 %v2455
      %3091 = vmatpush2.bf16.msra.mxu0 %v2454
      %3092 = vmatprep.subr.bf16.mxu0 %v2447
      %3093 = vmatpush2.bf16.msra.mxu0 %v2446
      %3094 = vmatprep.subr.bf16.mxu0 %v2439
      %3095 = vmatpush2.bf16.msra.mxu0 %v2438
      %3096 = vmatprep.subr.bf16.mxu0 %v2431
      %3097 = vmatpush2.bf16.msra.mxu0 %v2430
      %3098 = vmatprep.subr.bf16.mxu0 %v2423
      %3099 = vmatpush2.bf16.msra.mxu0 %v2422
      %3100 = vmatprep.subr.bf16.mxu0 %v2415
      %3101 = vmatpush2.bf16.msra.mxu0 %v2414
      %3102 = vmatprep.mubr.bf16.mxu0 %v1315
      %3103 = vmatmul.mubr.bf16.gmra.mxu0 %v1314
      %v3104 = vpop.f32.mrf.mxu0
      %v3105 = vadd.f32 0.0, %v3104
      %v3106 = vpop.f32.mrf.mxu0
      %v3107 = vadd.f32 0.0, %v3106
      %v3108 = vpop.f32.mrf.mxu0
      %v3109 = vadd.f32 0.0, %v3108
      %v3110 = vpop.f32.mrf.mxu0
      %v3111 = vadd.f32 0.0, %v3110
      %3112 = vmatprep.mubr.bf16.mxu0 %v1319
      %3113 = vmatmul.mubr.bf16.gmra.mxu0 %v1318
      %v3114 = vpop.f32.mrf.mxu0
      %v3115 = vadd.f32 0.0, %v3114
      %v3116 = vpop.f32.mrf.mxu0
      %v3117 = vadd.f32 0.0, %v3116
      %v3118 = vpop.f32.mrf.mxu0
      %v3119 = vadd.f32 0.0, %v3118
      %v3120 = vpop.f32.mrf.mxu0
      %v3121 = vadd.f32 0.0, %v3120
      %3122 = vdwg.mxu0
      %3123 = vmatprep.subr.bf16.mxu0 %v2535
      %3124 = vmatpush1.bf16.msra.mxu0 %v2534
      %3125 = vmatprep.subr.bf16.mxu0 %v2527
      %3126 = vmatpush1.bf16.msra.mxu0 %v2526
      %3127 = vmatprep.subr.bf16.mxu0 %v2519
      %3128 = vmatpush1.bf16.msra.mxu0 %v2518
      %3129 = vmatprep.subr.bf16.mxu0 %v2511
      %3130 = vmatpush1.bf16.msra.mxu0 %v2510
      %3131 = vmatprep.subr.bf16.mxu0 %v2503
      %3132 = vmatpush1.bf16.msra.mxu0 %v2502
      %3133 = vmatprep.subr.bf16.mxu0 %v2495
      %3134 = vmatpush1.bf16.msra.mxu0 %v2494
      %3135 = vmatprep.subr.bf16.mxu0 %v2487
      %3136 = vmatpush1.bf16.msra.mxu0 %v2486
      %3137 = vmatprep.subr.bf16.mxu0 %v2479
      %3138 = vmatpush1.bf16.msra.mxu0 %v2478
      %3139 = vmatprep.subr.bf16.mxu0 %v2599
      %3140 = vmatpush2.bf16.msra.mxu0 %v2598
      %3141 = vmatprep.subr.bf16.mxu0 %v2591
      %3142 = vmatpush2.bf16.msra.mxu0 %v2590
      %3143 = vmatprep.subr.bf16.mxu0 %v2583
      %3144 = vmatpush2.bf16.msra.mxu0 %v2582
      %3145 = vmatprep.subr.bf16.mxu0 %v2575
      %3146 = vmatpush2.bf16.msra.mxu0 %v2574
      %3147 = vmatprep.subr.bf16.mxu0 %v2567
      %3148 = vmatpush2.bf16.msra.mxu0 %v2566
      %3149 = vmatprep.subr.bf16.mxu0 %v2559
      %3150 = vmatpush2.bf16.msra.mxu0 %v2558
      %3151 = vmatprep.subr.bf16.mxu0 %v2551
      %3152 = vmatpush2.bf16.msra.mxu0 %v2550
      %3153 = vmatprep.subr.bf16.mxu0 %v2543
      %3154 = vmatpush2.bf16.msra.mxu0 %v2542
      %3155 = vmatprep.mubr.bf16.mxu0 %v1317
      %3156 = vmatmul.mubr.bf16.gmra.mxu0 %v1316
      %v3157 = vpop.f32.mrf.mxu0
      %v3158 = vadd.f32 %v3105, %v3157
      %v3159 = vpop.f32.mrf.mxu0
      %v3160 = vadd.f32 %v3107, %v3159
      %v3161 = vpop.f32.mrf.mxu0
      %v3162 = vadd.f32 %v3109, %v3161
      %v3163 = vpop.f32.mrf.mxu0
      %v3164 = vadd.f32 %v3111, %v3163
      %3165 = vmatprep.mubr.bf16.mxu0 %v1321
      %3166 = vmatmul.mubr.bf16.gmra.mxu0 %v1320
      %v3167 = vpop.f32.mrf.mxu0
      %v3168 = vadd.f32 %v3115, %v3167
      %v3169 = vpop.f32.mrf.mxu0
      %v3170 = vadd.f32 %v3117, %v3169
      %v3171 = vpop.f32.mrf.mxu0
      %v3172 = vadd.f32 %v3119, %v3171
      %v3173 = vpop.f32.mrf.mxu0
      %v3174 = vadd.f32 %v3121, %v3173
      %3175 = vdwg.mxu0
      %3176 = vmatprep.subr.bf16.mxu0 %v2409
      %3177 = vmatpush1.bf16.msra.mxu0 %v2408
      %3178 = vmatprep.subr.bf16.mxu0 %v2401
      %3179 = vmatpush1.bf16.msra.mxu0 %v2400
      %3180 = vmatprep.subr.bf16.mxu0 %v2393
      %3181 = vmatpush1.bf16.msra.mxu0 %v2392
      %3182 = vmatprep.subr.bf16.mxu0 %v2385
      %3183 = vmatpush1.bf16.msra.mxu0 %v2384
      %3184 = vmatprep.subr.bf16.mxu0 %v2377
      %3185 = vmatpush1.bf16.msra.mxu0 %v2376
      %3186 = vmatprep.subr.bf16.mxu0 %v2369
      %3187 = vmatpush1.bf16.msra.mxu0 %v2368
      %3188 = vmatprep.subr.bf16.mxu0 %v2361
      %3189 = vmatpush1.bf16.msra.mxu0 %v2360
      %3190 = vmatprep.subr.bf16.mxu0 %v2353
      %3191 = vmatpush1.bf16.msra.mxu0 %v2352
      %3192 = vmatprep.subr.bf16.mxu0 %v2473
      %3193 = vmatpush2.bf16.msra.mxu0 %v2472
      %3194 = vmatprep.subr.bf16.mxu0 %v2465
      %3195 = vmatpush2.bf16.msra.mxu0 %v2464
      %3196 = vmatprep.subr.bf16.mxu0 %v2457
      %3197 = vmatpush2.bf16.msra.mxu0 %v2456
      %3198 = vmatprep.subr.bf16.mxu0 %v2449
      %3199 = vmatpush2.bf16.msra.mxu0 %v2448
      %3200 = vmatprep.subr.bf16.mxu0 %v2441
      %3201 = vmatpush2.bf16.msra.mxu0 %v2440
      %3202 = vmatprep.subr.bf16.mxu0 %v2433
      %3203 = vmatpush2.bf16.msra.mxu0 %v2432
      %3204 = vmatprep.subr.bf16.mxu0 %v2425
      %3205 = vmatpush2.bf16.msra.mxu0 %v2424
      %3206 = vmatprep.subr.bf16.mxu0 %v2417
      %3207 = vmatpush2.bf16.msra.mxu0 %v2416
      %3208 = vmatprep.mubr.bf16.mxu0 %v1315
      %3209 = vmatmul.mubr.bf16.gmra.mxu0 %v1314
      %v3210 = vpop.f32.mrf.mxu0
      %v3211 = vadd.f32 0.0, %v3210
      %v3212 = vpop.f32.mrf.mxu0
      %v3213 = vadd.f32 0.0, %v3212
      %v3214 = vpop.f32.mrf.mxu0
      %v3215 = vadd.f32 0.0, %v3214
      %v3216 = vpop.f32.mrf.mxu0
      %v3217 = vadd.f32 0.0, %v3216
      %3218 = vmatprep.mubr.bf16.mxu0 %v1319
      %3219 = vmatmul.mubr.bf16.gmra.mxu0 %v1318
      %v3220 = vpop.f32.mrf.mxu0
      %v3221 = vadd.f32 0.0, %v3220
      %v3222 = vpop.f32.mrf.mxu0
      %v3223 = vadd.f32 0.0, %v3222
      %v3224 = vpop.f32.mrf.mxu0
      %v3225 = vadd.f32 0.0, %v3224
      %v3226 = vpop.f32.mrf.mxu0
      %v3227 = vadd.f32 0.0, %v3226
      %3228 = vdwg.mxu0
      %3229 = vmatprep.subr.bf16.mxu0 %v2537
      %3230 = vmatpush1.bf16.msra.mxu0 %v2536
      %3231 = vmatprep.subr.bf16.mxu0 %v2529
      %3232 = vmatpush1.bf16.msra.mxu0 %v2528
      %3233 = vmatprep.subr.bf16.mxu0 %v2521
      %3234 = vmatpush1.bf16.msra.mxu0 %v2520
      %3235 = vmatprep.subr.bf16.mxu0 %v2513
      %3236 = vmatpush1.bf16.msra.mxu0 %v2512
      %3237 = vmatprep.subr.bf16.mxu0 %v2505
      %3238 = vmatpush1.bf16.msra.mxu0 %v2504
      %3239 = vmatprep.subr.bf16.mxu0 %v2497
      %3240 = vmatpush1.bf16.msra.mxu0 %v2496
      %3241 = vmatprep.subr.bf16.mxu0 %v2489
      %3242 = vmatpush1.bf16.msra.mxu0 %v2488
      %3243 = vmatprep.subr.bf16.mxu0 %v2481
      %3244 = vmatpush1.bf16.msra.mxu0 %v2480
      %3245 = vmatprep.subr.bf16.mxu0 %v2601
      %3246 = vmatpush2.bf16.msra.mxu0 %v2600
      %3247 = vmatprep.subr.bf16.mxu0 %v2593
      %3248 = vmatpush2.bf16.msra.mxu0 %v2592
      %3249 = vmatprep.subr.bf16.mxu0 %v2585
      %3250 = vmatpush2.bf16.msra.mxu0 %v2584
      %3251 = vmatprep.subr.bf16.mxu0 %v2577
      %3252 = vmatpush2.bf16.msra.mxu0 %v2576
      %3253 = vmatprep.subr.bf16.mxu0 %v2569
      %3254 = vmatpush2.bf16.msra.mxu0 %v2568
      %3255 = vmatprep.subr.bf16.mxu0 %v2561
      %3256 = vmatpush2.bf16.msra.mxu0 %v2560
      %3257 = vmatprep.subr.bf16.mxu0 %v2553
      %3258 = vmatpush2.bf16.msra.mxu0 %v2552
      %3259 = vmatprep.subr.bf16.mxu0 %v2545
      %3260 = vmatpush2.bf16.msra.mxu0 %v2544
      %3261 = vmatprep.mubr.bf16.mxu0 %v1317
      %3262 = vmatmul.mubr.bf16.gmra.mxu0 %v1316
      %v3263 = vpop.f32.mrf.mxu0
      %v3264 = vadd.f32 %v3211, %v3263
      %v3265 = vpop.f32.mrf.mxu0
      %v3266 = vadd.f32 %v3213, %v3265
      %v3267 = vpop.f32.mrf.mxu0
      %v3268 = vadd.f32 %v3215, %v3267
      %v3269 = vpop.f32.mrf.mxu0
      %v3270 = vadd.f32 %v3217, %v3269
      %3271 = vmatprep.mubr.bf16.mxu0 %v1321
      %3272 = vmatmul.mubr.bf16.gmra.mxu0 %v1320
      %v3273 = vpop.f32.mrf.mxu0
      %v3274 = vadd.f32 %v3221, %v3273
      %v3275 = vpop.f32.mrf.mxu0
      %v3276 = vadd.f32 %v3223, %v3275
      %v3277 = vpop.f32.mrf.mxu0
      %v3278 = vadd.f32 %v3225, %v3277
      %v3279 = vpop.f32.mrf.mxu0
      %v3280 = vadd.f32 %v3227, %v3279
      %3281 = vdwg.mxu0
      %3282 = vmatprep.subr.bf16.mxu0 %v2403
      %3283 = vmatpush1.bf16.msra.mxu0 %v2402
      %3284 = vmatprep.subr.bf16.mxu0 %v2395
      %3285 = vmatpush1.bf16.msra.mxu0 %v2394
      %3286 = vmatprep.subr.bf16.mxu0 %v2387
      %3287 = vmatpush1.bf16.msra.mxu0 %v2386
      %3288 = vmatprep.subr.bf16.mxu0 %v2379
      %3289 = vmatpush1.bf16.msra.mxu0 %v2378
      %3290 = vmatprep.subr.bf16.mxu0 %v2371
      %3291 = vmatpush1.bf16.msra.mxu0 %v2370
      %3292 = vmatprep.subr.bf16.mxu0 %v2363
      %3293 = vmatpush1.bf16.msra.mxu0 %v2362
      %3294 = vmatprep.subr.bf16.mxu0 %v2355
      %3295 = vmatpush1.bf16.msra.mxu0 %v2354
      %3296 = vmatprep.subr.bf16.mxu0 %v2347
      %3297 = vmatpush1.bf16.msra.mxu0 %v2346
      %3298 = vmatprep.subr.bf16.mxu0 %v2467
      %3299 = vmatpush2.bf16.msra.mxu0 %v2466
      %3300 = vmatprep.subr.bf16.mxu0 %v2459
      %3301 = vmatpush2.bf16.msra.mxu0 %v2458
      %3302 = vmatprep.subr.bf16.mxu0 %v2451
      %3303 = vmatpush2.bf16.msra.mxu0 %v2450
      %3304 = vmatprep.subr.bf16.mxu0 %v2443
      %3305 = vmatpush2.bf16.msra.mxu0 %v2442
      %3306 = vmatprep.subr.bf16.mxu0 %v2435
      %3307 = vmatpush2.bf16.msra.mxu0 %v2434
      %3308 = vmatprep.subr.bf16.mxu0 %v2427
      %3309 = vmatpush2.bf16.msra.mxu0 %v2426
      %3310 = vmatprep.subr.bf16.mxu0 %v2419
      %3311 = vmatpush2.bf16.msra.mxu0 %v2418
      %3312 = vmatprep.subr.bf16.mxu0 %v2411
      %3313 = vmatpush2.bf16.msra.mxu0 %v2410
      %3314 = vmatprep.mubr.bf16.mxu0 %v1275
      %3315 = vmatmul.mubr.bf16.gmra.mxu0 %v1274
      %v3316 = vpop.f32.mrf.mxu0
      %v3317 = vadd.f32 %v2946, %v3316
      %v3318 = vpop.f32.mrf.mxu0
      %v3319 = vadd.f32 %v2948, %v3318
      %v3320 = vpop.f32.mrf.mxu0
      %v3321 = vadd.f32 %v2950, %v3320
      %v3322 = vpop.f32.mrf.mxu0
      %v3323 = vadd.f32 %v2952, %v3322
      %3324 = vmatprep.mubr.bf16.mxu0 %v1279
      %3325 = vmatmul.mubr.bf16.gmra.mxu0 %v1278
      %v3326 = vpop.f32.mrf.mxu0
      %v3327 = vadd.f32 %v2956, %v3326
      %v3328 = vpop.f32.mrf.mxu0
      %v3329 = vadd.f32 %v2958, %v3328
      %v3330 = vpop.f32.mrf.mxu0
      %v3331 = vadd.f32 %v2960, %v3330
      %v3332 = vpop.f32.mrf.mxu0
      %v3333 = vadd.f32 %v2962, %v3332
      %3334 = vdwg.mxu0
      %3335 = vmatprep.subr.bf16.mxu0 %v2531
      %3336 = vmatpush1.bf16.msra.mxu0 %v2530
      %3337 = vmatprep.subr.bf16.mxu0 %v2523
      %3338 = vmatpush1.bf16.msra.mxu0 %v2522
      %3339 = vmatprep.subr.bf16.mxu0 %v2515
      %3340 = vmatpush1.bf16.msra.mxu0 %v2514
      %3341 = vmatprep.subr.bf16.mxu0 %v2507
      %3342 = vmatpush1.bf16.msra.mxu0 %v2506
      %3343 = vmatprep.subr.bf16.mxu0 %v2499
      %3344 = vmatpush1.bf16.msra.mxu0 %v2498
      %3345 = vmatprep.subr.bf16.mxu0 %v2491
      %3346 = vmatpush1.bf16.msra.mxu0 %v2490
      %3347 = vmatprep.subr.bf16.mxu0 %v2483
      %3348 = vmatpush1.bf16.msra.mxu0 %v2482
      %3349 = vmatprep.subr.bf16.mxu0 %v2475
      %3350 = vmatpush1.bf16.msra.mxu0 %v2474
      %3351 = vmatprep.subr.bf16.mxu0 %v2595
      %3352 = vmatpush2.bf16.msra.mxu0 %v2594
      %3353 = vmatprep.subr.bf16.mxu0 %v2587
      %3354 = vmatpush2.bf16.msra.mxu0 %v2586
      %3355 = vmatprep.subr.bf16.mxu0 %v2579
      %3356 = vmatpush2.bf16.msra.mxu0 %v2578
      %3357 = vmatprep.subr.bf16.mxu0 %v2571
      %3358 = vmatpush2.bf16.msra.mxu0 %v2570
      %3359 = vmatprep.subr.bf16.mxu0 %v2563
      %3360 = vmatpush2.bf16.msra.mxu0 %v2562
      %3361 = vmatprep.subr.bf16.mxu0 %v2555
      %3362 = vmatpush2.bf16.msra.mxu0 %v2554
      %3363 = vmatprep.subr.bf16.mxu0 %v2547
      %3364 = vmatpush2.bf16.msra.mxu0 %v2546
      %3365 = vmatprep.subr.bf16.mxu0 %v2539
      %3366 = vmatpush2.bf16.msra.mxu0 %v2538
      %3367 = vmatprep.mubr.bf16.mxu0 %v1277
      %3368 = vmatmul.mubr.bf16.gmra.mxu0 %v1276
      %v3369 = vpop.f32.mrf.mxu0
      %v3370 = vadd.f32 %v3317, %v3369
      %v3371 = vpop.f32.mrf.mxu0
      %v3372 = vadd.f32 %v3319, %v3371
      %v3373 = vpop.f32.mrf.mxu0
      %v3374 = vadd.f32 %v3321, %v3373
      %v3375 = vpop.f32.mrf.mxu0
      %v3376 = vadd.f32 %v3323, %v3375
      %3377 = vmatprep.mubr.bf16.mxu0 %v1281
      %3378 = vmatmul.mubr.bf16.gmra.mxu0 %v1280
      %v3379 = vpop.f32.mrf.mxu0
      %v3380 = vadd.f32 %v3327, %v3379
      %v3381 = vpop.f32.mrf.mxu0
      %v3382 = vadd.f32 %v3329, %v3381
      %v3383 = vpop.f32.mrf.mxu0
      %v3384 = vadd.f32 %v3331, %v3383
      %v3385 = vpop.f32.mrf.mxu0
      %v3386 = vadd.f32 %v3333, %v3385
      %3387 = vdwg.mxu0
      %3388 = vmatprep.subr.bf16.mxu0 %v2405
      %3389 = vmatpush1.bf16.msra.mxu0 %v2404
      %3390 = vmatprep.subr.bf16.mxu0 %v2397
      %3391 = vmatpush1.bf16.msra.mxu0 %v2396
      %3392 = vmatprep.subr.bf16.mxu0 %v2389
      %3393 = vmatpush1.bf16.msra.mxu0 %v2388
      %3394 = vmatprep.subr.bf16.mxu0 %v2381
      %3395 = vmatpush1.bf16.msra.mxu0 %v2380
      %3396 = vmatprep.subr.bf16.mxu0 %v2373
      %3397 = vmatpush1.bf16.msra.mxu0 %v2372
      %3398 = vmatprep.subr.bf16.mxu0 %v2365
      %3399 = vmatpush1.bf16.msra.mxu0 %v2364
      %3400 = vmatprep.subr.bf16.mxu0 %v2357
      %3401 = vmatpush1.bf16.msra.mxu0 %v2356
      %3402 = vmatprep.subr.bf16.mxu0 %v2349
      %3403 = vmatpush1.bf16.msra.mxu0 %v2348
      %3404 = vmatprep.subr.bf16.mxu0 %v2469
      %3405 = vmatpush2.bf16.msra.mxu0 %v2468
      %3406 = vmatprep.subr.bf16.mxu0 %v2461
      %3407 = vmatpush2.bf16.msra.mxu0 %v2460
      %3408 = vmatprep.subr.bf16.mxu0 %v2453
      %3409 = vmatpush2.bf16.msra.mxu0 %v2452
      %3410 = vmatprep.subr.bf16.mxu0 %v2445
      %3411 = vmatpush2.bf16.msra.mxu0 %v2444
      %3412 = vmatprep.subr.bf16.mxu0 %v2437
      %3413 = vmatpush2.bf16.msra.mxu0 %v2436
      %3414 = vmatprep.subr.bf16.mxu0 %v2429
      %3415 = vmatpush2.bf16.msra.mxu0 %v2428
      %3416 = vmatprep.subr.bf16.mxu0 %v2421
      %3417 = vmatpush2.bf16.msra.mxu0 %v2420
      %3418 = vmatprep.subr.bf16.mxu0 %v2413
      %3419 = vmatpush2.bf16.msra.mxu0 %v2412
      %3420 = vmatprep.mubr.bf16.mxu0 %v1275
      %3421 = vmatmul.mubr.bf16.gmra.mxu0 %v1274
      %v3422 = vpop.f32.mrf.mxu0
      %v3423 = vadd.f32 %v3052, %v3422
      %v3424 = vpop.f32.mrf.mxu0
      %v3425 = vadd.f32 %v3054, %v3424
      %v3426 = vpop.f32.mrf.mxu0
      %v3427 = vadd.f32 %v3056, %v3426
      %v3428 = vpop.f32.mrf.mxu0
      %v3429 = vadd.f32 %v3058, %v3428
      %3430 = vmatprep.mubr.bf16.mxu0 %v1279
      %3431 = vmatmul.mubr.bf16.gmra.mxu0 %v1278
      %v3432 = vpop.f32.mrf.mxu0
      %v3433 = vadd.f32 %v3062, %v3432
      %v3434 = vpop.f32.mrf.mxu0
      %v3435 = vadd.f32 %v3064, %v3434
      %v3436 = vpop.f32.mrf.mxu0
      %v3437 = vadd.f32 %v3066, %v3436
      %v3438 = vpop.f32.mrf.mxu0
      %v3439 = vadd.f32 %v3068, %v3438
      %3440 = vdwg.mxu0
      %3441 = vmatprep.subr.bf16.mxu0 %v2533
      %3442 = vmatpush1.bf16.msra.mxu0 %v2532
      %3443 = vmatprep.subr.bf16.mxu0 %v2525
      %3444 = vmatpush1.bf16.msra.mxu0 %v2524
      %3445 = vmatprep.subr.bf16.mxu0 %v2517
      %3446 = vmatpush1.bf16.msra.mxu0 %v2516
      %3447 = vmatprep.subr.bf16.mxu0 %v2509
      %3448 = vmatpush1.bf16.msra.mxu0 %v2508
      %3449 = vmatprep.subr.bf16.mxu0 %v2501
      %3450 = vmatpush1.bf16.msra.mxu0 %v2500
      %3451 = vmatprep.subr.bf16.mxu0 %v2493
      %3452 = vmatpush1.bf16.msra.mxu0 %v2492
      %3453 = vmatprep.subr.bf16.mxu0 %v2485
      %3454 = vmatpush1.bf16.msra.mxu0 %v2484
      %3455 = vmatprep.subr.bf16.mxu0 %v2477
      %3456 = vmatpush1.bf16.msra.mxu0 %v2476
      %3457 = vmatprep.subr.bf16.mxu0 %v2597
      %3458 = vmatpush2.bf16.msra.mxu0 %v2596
      %3459 = vmatprep.subr.bf16.mxu0 %v2589
      %3460 = vmatpush2.bf16.msra.mxu0 %v2588
      %3461 = vmatprep.subr.bf16.mxu0 %v2581
      %3462 = vmatpush2.bf16.msra.mxu0 %v2580
      %3463 = vmatprep.subr.bf16.mxu0 %v2573
      %3464 = vmatpush2.bf16.msra.mxu0 %v2572
      %3465 = vmatprep.subr.bf16.mxu0 %v2565
      %3466 = vmatpush2.bf16.msra.mxu0 %v2564
      %3467 = vmatprep.subr.bf16.mxu0 %v2557
      %3468 = vmatpush2.bf16.msra.mxu0 %v2556
      %3469 = vmatprep.subr.bf16.mxu0 %v2549
      %3470 = vmatpush2.bf16.msra.mxu0 %v2548
      %3471 = vmatprep.subr.bf16.mxu0 %v2541
      %3472 = vmatpush2.bf16.msra.mxu0 %v2540
      %3473 = vmatprep.mubr.bf16.mxu0 %v1277
      %3474 = vmatmul.mubr.bf16.gmra.mxu0 %v1276
      %v3475 = vpop.f32.mrf.mxu0
      %v3476 = vadd.f32 %v3423, %v3475
      %v3477 = vpop.f32.mrf.mxu0
      %v3478 = vadd.f32 %v3425, %v3477
      %v3479 = vpop.f32.mrf.mxu0
      %v3480 = vadd.f32 %v3427, %v3479
      %v3481 = vpop.f32.mrf.mxu0
      %v3482 = vadd.f32 %v3429, %v3481
      %3483 = vmatprep.mubr.bf16.mxu0 %v1281
      %3484 = vmatmul.mubr.bf16.gmra.mxu0 %v1280
      %v3485 = vpop.f32.mrf.mxu0
      %v3486 = vadd.f32 %v3433, %v3485
      %v3487 = vpop.f32.mrf.mxu0
      %v3488 = vadd.f32 %v3435, %v3487
      %v3489 = vpop.f32.mrf.mxu0
      %v3490 = vadd.f32 %v3437, %v3489
      %v3491 = vpop.f32.mrf.mxu0
      %v3492 = vadd.f32 %v3439, %v3491
      %3493 = vdwg.mxu0
      %3494 = vmatprep.subr.bf16.mxu0 %v2407
      %3495 = vmatpush1.bf16.msra.mxu0 %v2406
      %3496 = vmatprep.subr.bf16.mxu0 %v2399
      %3497 = vmatpush1.bf16.msra.mxu0 %v2398
      %3498 = vmatprep.subr.bf16.mxu0 %v2391
      %3499 = vmatpush1.bf16.msra.mxu0 %v2390
      %3500 = vmatprep.subr.bf16.mxu0 %v2383
      %3501 = vmatpush1.bf16.msra.mxu0 %v2382
      %3502 = vmatprep.subr.bf16.mxu0 %v2375
      %3503 = vmatpush1.bf16.msra.mxu0 %v2374
      %3504 = vmatprep.subr.bf16.mxu0 %v2367
      %3505 = vmatpush1.bf16.msra.mxu0 %v2366
      %3506 = vmatprep.subr.bf16.mxu0 %v2359
      %3507 = vmatpush1.bf16.msra.mxu0 %v2358
      %3508 = vmatprep.subr.bf16.mxu0 %v2351
      %3509 = vmatpush1.bf16.msra.mxu0 %v2350
      %3510 = vmatprep.subr.bf16.mxu0 %v2471
      %3511 = vmatpush2.bf16.msra.mxu0 %v2470
      %3512 = vmatprep.subr.bf16.mxu0 %v2463
      %3513 = vmatpush2.bf16.msra.mxu0 %v2462
      %3514 = vmatprep.subr.bf16.mxu0 %v2455
      %3515 = vmatpush2.bf16.msra.mxu0 %v2454
      %3516 = vmatprep.subr.bf16.mxu0 %v2447
      %3517 = vmatpush2.bf16.msra.mxu0 %v2446
      %3518 = vmatprep.subr.bf16.mxu0 %v2439
      %3519 = vmatpush2.bf16.msra.mxu0 %v2438
      %3520 = vmatprep.subr.bf16.mxu0 %v2431
      %3521 = vmatpush2.bf16.msra.mxu0 %v2430
      %3522 = vmatprep.subr.bf16.mxu0 %v2423
      %3523 = vmatpush2.bf16.msra.mxu0 %v2422
      %3524 = vmatprep.subr.bf16.mxu0 %v2415
      %3525 = vmatpush2.bf16.msra.mxu0 %v2414
      %3526 = vmatprep.mubr.bf16.mxu0 %v1275
      %3527 = vmatmul.mubr.bf16.gmra.mxu0 %v1274
      %v3528 = vpop.f32.mrf.mxu0
      %v3529 = vadd.f32 %v3158, %v3528
      %v3530 = vpop.f32.mrf.mxu0
      %v3531 = vadd.f32 %v3160, %v3530
      %v3532 = vpop.f32.mrf.mxu0
      %v3533 = vadd.f32 %v3162, %v3532
      %v3534 = vpop.f32.mrf.mxu0
      %v3535 = vadd.f32 %v3164, %v3534
      %3536 = vmatprep.mubr.bf16.mxu0 %v1279
      %3537 = vmatmul.mubr.bf16.gmra.mxu0 %v1278
      %v3538 = vpop.f32.mrf.mxu0
      %v3539 = vadd.f32 %v3168, %v3538
      %v3540 = vpop.f32.mrf.mxu0
      %v3541 = vadd.f32 %v3170, %v3540
      %v3542 = vpop.f32.mrf.mxu0
      %v3543 = vadd.f32 %v3172, %v3542
      %v3544 = vpop.f32.mrf.mxu0
      %v3545 = vadd.f32 %v3174, %v3544
      %3546 = vdwg.mxu0
      %3547 = vmatprep.subr.bf16.mxu0 %v2535
      %3548 = vmatpush1.bf16.msra.mxu0 %v2534
      %3549 = vmatprep.subr.bf16.mxu0 %v2527
      %3550 = vmatpush1.bf16.msra.mxu0 %v2526
      %3551 = vmatprep.subr.bf16.mxu0 %v2519
      %3552 = vmatpush1.bf16.msra.mxu0 %v2518
      %3553 = vmatprep.subr.bf16.mxu0 %v2511
      %3554 = vmatpush1.bf16.msra.mxu0 %v2510
      %3555 = vmatprep.subr.bf16.mxu0 %v2503
      %3556 = vmatpush1.bf16.msra.mxu0 %v2502
      %3557 = vmatprep.subr.bf16.mxu0 %v2495
      %3558 = vmatpush1.bf16.msra.mxu0 %v2494
      %3559 = vmatprep.subr.bf16.mxu0 %v2487
      %3560 = vmatpush1.bf16.msra.mxu0 %v2486
      %3561 = vmatprep.subr.bf16.mxu0 %v2479
      %3562 = vmatpush1.bf16.msra.mxu0 %v2478
      %3563 = vmatprep.subr.bf16.mxu0 %v2599
      %3564 = vmatpush2.bf16.msra.mxu0 %v2598
      %3565 = vmatprep.subr.bf16.mxu0 %v2591
      %3566 = vmatpush2.bf16.msra.mxu0 %v2590
      %3567 = vmatprep.subr.bf16.mxu0 %v2583
      %3568 = vmatpush2.bf16.msra.mxu0 %v2582
      %3569 = vmatprep.subr.bf16.mxu0 %v2575
      %3570 = vmatpush2.bf16.msra.mxu0 %v2574
      %3571 = vmatprep.subr.bf16.mxu0 %v2567
      %3572 = vmatpush2.bf16.msra.mxu0 %v2566
      %3573 = vmatprep.subr.bf16.mxu0 %v2559
      %3574 = vmatpush2.bf16.msra.mxu0 %v2558
      %3575 = vmatprep.subr.bf16.mxu0 %v2551
      %3576 = vmatpush2.bf16.msra.mxu0 %v2550
      %3577 = vmatprep.subr.bf16.mxu0 %v2543
      %3578 = vmatpush2.bf16.msra.mxu0 %v2542
      %3579 = vmatprep.mubr.bf16.mxu0 %v1277
      %3580 = vmatmul.mubr.bf16.gmra.mxu0 %v1276
      %v3581 = vpop.f32.mrf.mxu0
      %v3582 = vadd.f32 %v3529, %v3581
      %v3583 = vpop.f32.mrf.mxu0
      %v3584 = vadd.f32 %v3531, %v3583
      %v3585 = vpop.f32.mrf.mxu0
      %v3586 = vadd.f32 %v3533, %v3585
      %v3587 = vpop.f32.mrf.mxu0
      %v3588 = vadd.f32 %v3535, %v3587
      %3589 = vmatprep.mubr.bf16.mxu0 %v1281
      %3590 = vmatmul.mubr.bf16.gmra.mxu0 %v1280
      %v3591 = vpop.f32.mrf.mxu0
      %v3592 = vadd.f32 %v3539, %v3591
      %v3593 = vpop.f32.mrf.mxu0
      %v3594 = vadd.f32 %v3541, %v3593
      %v3595 = vpop.f32.mrf.mxu0
      %v3596 = vadd.f32 %v3543, %v3595
      %v3597 = vpop.f32.mrf.mxu0
      %v3598 = vadd.f32 %v3545, %v3597
      %3599 = vdwg.mxu0
      %3600 = vmatprep.subr.bf16.mxu0 %v2409
      %3601 = vmatpush1.bf16.msra.mxu0 %v2408
      %3602 = vmatprep.subr.bf16.mxu0 %v2401
      %3603 = vmatpush1.bf16.msra.mxu0 %v2400
      %3604 = vmatprep.subr.bf16.mxu0 %v2393
      %3605 = vmatpush1.bf16.msra.mxu0 %v2392
      %3606 = vmatprep.subr.bf16.mxu0 %v2385
      %3607 = vmatpush1.bf16.msra.mxu0 %v2384
      %3608 = vmatprep.subr.bf16.mxu0 %v2377
      %3609 = vmatpush1.bf16.msra.mxu0 %v2376
      %3610 = vmatprep.subr.bf16.mxu0 %v2369
      %3611 = vmatpush1.bf16.msra.mxu0 %v2368
      %3612 = vmatprep.subr.bf16.mxu0 %v2361
      %3613 = vmatpush1.bf16.msra.mxu0 %v2360
      %3614 = vmatprep.subr.bf16.mxu0 %v2353
      %3615 = vmatpush1.bf16.msra.mxu0 %v2352
      %3616 = vmatprep.subr.bf16.mxu0 %v2473
      %3617 = vmatpush2.bf16.msra.mxu0 %v2472
      %3618 = vmatprep.subr.bf16.mxu0 %v2465
      %3619 = vmatpush2.bf16.msra.mxu0 %v2464
      %3620 = vmatprep.subr.bf16.mxu0 %v2457
      %3621 = vmatpush2.bf16.msra.mxu0 %v2456
      %3622 = vmatprep.subr.bf16.mxu0 %v2449
      %3623 = vmatpush2.bf16.msra.mxu0 %v2448
      %3624 = vmatprep.subr.bf16.mxu0 %v2441
      %3625 = vmatpush2.bf16.msra.mxu0 %v2440
      %3626 = vmatprep.subr.bf16.mxu0 %v2433
      %3627 = vmatpush2.bf16.msra.mxu0 %v2432
      %3628 = vmatprep.subr.bf16.mxu0 %v2425
      %3629 = vmatpush2.bf16.msra.mxu0 %v2424
      %3630 = vmatprep.subr.bf16.mxu0 %v2417
      %3631 = vmatpush2.bf16.msra.mxu0 %v2416
      %3632 = vmatprep.mubr.bf16.mxu0 %v1275
      %3633 = vmatmul.mubr.bf16.gmra.mxu0 %v1274
      %v3634 = vpop.f32.mrf.mxu0
      %v3635 = vadd.f32 %v3264, %v3634
      %v3636 = vpop.f32.mrf.mxu0
      %v3637 = vadd.f32 %v3266, %v3636
      %v3638 = vpop.f32.mrf.mxu0
      %v3639 = vadd.f32 %v3268, %v3638
      %v3640 = vpop.f32.mrf.mxu0
      %v3641 = vadd.f32 %v3270, %v3640
      %3642 = vmatprep.mubr.bf16.mxu0 %v1279
      %3643 = vmatmul.mubr.bf16.gmra.mxu0 %v1278
      %v3644 = vpop.f32.mrf.mxu0
      %v3645 = vadd.f32 %v3274, %v3644
      %v3646 = vpop.f32.mrf.mxu0
      %v3647 = vadd.f32 %v3276, %v3646
      %v3648 = vpop.f32.mrf.mxu0
      %v3649 = vadd.f32 %v3278, %v3648
      %v3650 = vpop.f32.mrf.mxu0
      %v3651 = vadd.f32 %v3280, %v3650
      %3652 = vdwg.mxu0
      %3653 = vmatprep.subr.bf16.mxu0 %v2537
      %3654 = vmatpush1.bf16.msra.mxu0 %v2536
      %3655 = vmatprep.subr.bf16.mxu0 %v2529
      %3656 = vmatpush1.bf16.msra.mxu0 %v2528
      %3657 = vmatprep.subr.bf16.mxu0 %v2521
      %3658 = vmatpush1.bf16.msra.mxu0 %v2520
      %3659 = vmatprep.subr.bf16.mxu0 %v2513
      %3660 = vmatpush1.bf16.msra.mxu0 %v2512
      %3661 = vmatprep.subr.bf16.mxu0 %v2505
      %3662 = vmatpush1.bf16.msra.mxu0 %v2504
      %3663 = vmatprep.subr.bf16.mxu0 %v2497
      %3664 = vmatpush1.bf16.msra.mxu0 %v2496
      %3665 = vmatprep.subr.bf16.mxu0 %v2489
      %3666 = vmatpush1.bf16.msra.mxu0 %v2488
      %3667 = vmatprep.subr.bf16.mxu0 %v2481
      %3668 = vmatpush1.bf16.msra.mxu0 %v2480
      %3669 = vmatprep.subr.bf16.mxu0 %v2601
      %3670 = vmatpush2.bf16.msra.mxu0 %v2600
      %3671 = vmatprep.subr.bf16.mxu0 %v2593
      %3672 = vmatpush2.bf16.msra.mxu0 %v2592
      %3673 = vmatprep.subr.bf16.mxu0 %v2585
      %3674 = vmatpush2.bf16.msra.mxu0 %v2584
      %3675 = vmatprep.subr.bf16.mxu0 %v2577
      %3676 = vmatpush2.bf16.msra.mxu0 %v2576
      %3677 = vmatprep.subr.bf16.mxu0 %v2569
      %3678 = vmatpush2.bf16.msra.mxu0 %v2568
      %3679 = vmatprep.subr.bf16.mxu0 %v2561
      %3680 = vmatpush2.bf16.msra.mxu0 %v2560
      %3681 = vmatprep.subr.bf16.mxu0 %v2553
      %3682 = vmatpush2.bf16.msra.mxu0 %v2552
      %3683 = vmatprep.subr.bf16.mxu0 %v2545
      %3684 = vmatpush2.bf16.msra.mxu0 %v2544
      %3685 = vmatprep.mubr.bf16.mxu0 %v1277
      %3686 = vmatmul.mubr.bf16.gmra.mxu0 %v1276
      %v3687 = vpop.f32.mrf.mxu0
      %v3688 = vadd.f32 %v3635, %v3687
      %v3689 = vpop.f32.mrf.mxu0
      %v3690 = vadd.f32 %v3637, %v3689
      %v3691 = vpop.f32.mrf.mxu0
      %v3692 = vadd.f32 %v3639, %v3691
      %v3693 = vpop.f32.mrf.mxu0
      %v3694 = vadd.f32 %v3641, %v3693
      %3695 = vmatprep.mubr.bf16.mxu0 %v1281
      %3696 = vmatmul.mubr.bf16.gmra.mxu0 %v1280
      %v3697 = vpop.f32.mrf.mxu0
      %v3698 = vadd.f32 %v3645, %v3697
      %v3699 = vpop.f32.mrf.mxu0
      %v3700 = vadd.f32 %v3647, %v3699
      %v3701 = vpop.f32.mrf.mxu0
      %v3702 = vadd.f32 %v3649, %v3701
      %v3703 = vpop.f32.mrf.mxu0
      %v3704 = vadd.f32 %v3651, %v3703
      %3705 = vdwg.mxu0
      %3706 = vst [vmem:[%s240] sm:$0xff] %v3370
      %3707 = vst [vmem:[%s240 + $0x8] sm:$0xff] %v3372
      %3708 = vst [vmem:[%s240 + $0x10] sm:$0xff] %v3476
      %3709 = vst [vmem:[%s240 + $0x18] sm:$0xff] %v3478
      %3710 = vst [vmem:[%s240 + $0x20] sm:$0xff] %v3582
      %3711 = vst [vmem:[%s240 + $0x28] sm:$0xff] %v3584
      %3712 = vst [vmem:[%s240 + $0x30] sm:$0xff] %v3688
      %3713 = vst [vmem:[%s240 + $0x38] sm:$0xff] %v3690
      %3714 = vst [vmem:[%s240 + $0x40] sm:$0xff] %v3374
      %3715 = vst [vmem:[%s240 + $0x48] sm:$0xff] %v3376
      %3716 = vst [vmem:[%s240 + $0x50] sm:$0xff] %v3480
      %3717 = vst [vmem:[%s240 + $0x58] sm:$0xff] %v3482
      %3718 = vst [vmem:[%s240 + $0x60] sm:$0xff] %v3586
      %3719 = vst [vmem:[%s240 + $0x68] sm:$0xff] %v3588
      %3720 = vst [vmem:[%s240 + $0x70] sm:$0xff] %v3692
      %3721 = vst [vmem:[%s240 + $0x78] sm:$0xff] %v3694
      %3722 = vst [vmem:[%s240 + $0x80] sm:$0xff] %v3380
      %3723 = vst [vmem:[%s240 + $0x88] sm:$0xff] %v3382
      %3724 = vst [vmem:[%s240 + $0x90] sm:$0xff] %v3486
      %3725 = vst [vmem:[%s240 + $0x98] sm:$0xff] %v3488
      %3726 = vst [vmem:[%s240 + $0xa0] sm:$0xff] %v3592
      %3727 = vst [vmem:[%s240 + $0xa8] sm:$0xff] %v3594
      %3728 = vst [vmem:[%s240 + $0xb0] sm:$0xff] %v3698
      %3729 = vst [vmem:[%s240 + $0xb8] sm:$0xff] %v3700
      %3730 = vst [vmem:[%s240 + $0xc0] sm:$0xff] %v3384
      %3731 = vst [vmem:[%s240 + $0xc8] sm:$0xff] %v3386
      %3732 = vst [vmem:[%s240 + $0xd0] sm:$0xff] %v3490
      %3733 = vst [vmem:[%s240 + $0xd8] sm:$0xff] %v3492
      %3734 = vst [vmem:[%s240 + $0xe0] sm:$0xff] %v3596
      %3735 = vst [vmem:[%s240 + $0xe8] sm:$0xff] %v3598
      %3736 = vst [vmem:[%s240 + $0xf0] sm:$0xff] %v3702
      %3737 = vst [vmem:[%s240 + $0xf8] sm:$0xff] %v3704
      %v3738 = vld [vmem:[%s3] sm:$0xff]
      %v3739 = vld [vmem:[%s3 + $0x8] sm:$0xff]
      %v3740 = vld [vmem:[%s3 + $0x10] sm:$0xff]
      %v3741 = vld [vmem:[%s3 + $0x18] sm:$0xff]
      %v3742 = vld [vmem:[%s3 + $0x20] sm:$0xff]
      %v3743 = vld [vmem:[%s3 + $0x28] sm:$0xff]
      %v3744 = vld [vmem:[%s3 + $0x30] sm:$0xff]
      %v3745 = vld [vmem:[%s3 + $0x38] sm:$0xff]
      %v3746 = vld [vmem:[%s3 + $0x40] sm:$0xff]
      %v3747 = vld [vmem:[%s3 + $0x48] sm:$0xff]
      %v3748 = vld [vmem:[%s3 + $0x50] sm:$0xff]
      %v3749 = vld [vmem:[%s3 + $0x58] sm:$0xff]
      %v3750 = vld [vmem:[%s3 + $0x60] sm:$0xff]
      %v3751 = vld [vmem:[%s3 + $0x68] sm:$0xff]
      %v3752 = vld [vmem:[%s3 + $0x70] sm:$0xff]
      %v3753 = vld [vmem:[%s3 + $0x78] sm:$0xff]
      %v3754 = vld [vmem:[%s3 + $0x80] sm:$0xff]
      %v3755 = vld [vmem:[%s3 + $0x88] sm:$0xff]
      %v3756 = vld [vmem:[%s3 + $0x90] sm:$0xff]
      %v3757 = vld [vmem:[%s3 + $0x98] sm:$0xff]
      %v3758 = vld [vmem:[%s3 + $0xa0] sm:$0xff]
      %v3759 = vld [vmem:[%s3 + $0xa8] sm:$0xff]
      %v3760 = vld [vmem:[%s3 + $0xb0] sm:$0xff]
      %v3761 = vld [vmem:[%s3 + $0xb8] sm:$0xff]
      %v3762 = vld [vmem:[%s3 + $0xc0] sm:$0xff]
      %v3763 = vld [vmem:[%s3 + $0xc8] sm:$0xff]
      %v3764 = vld [vmem:[%s3 + $0xd0] sm:$0xff]
      %v3765 = vld [vmem:[%s3 + $0xd8] sm:$0xff]
      %v3766 = vld [vmem:[%s3 + $0xe0] sm:$0xff]
      %v3767 = vld [vmem:[%s3 + $0xe8] sm:$0xff]
      %v3768 = vld [vmem:[%s3 + $0xf0] sm:$0xff]
      %v3769 = vld [vmem:[%s3 + $0xf8] sm:$0xff]
      %v3770 = vld [vmem:[%s3 + $0x100] sm:$0xff]
      %v3771 = vld [vmem:[%s3 + $0x108] sm:$0xff]
      %v3772 = vld [vmem:[%s3 + $0x110] sm:$0xff]
      %v3773 = vld [vmem:[%s3 + $0x118] sm:$0xff]
      %v3774 = vld [vmem:[%s3 + $0x120] sm:$0xff]
      %v3775 = vld [vmem:[%s3 + $0x128] sm:$0xff]
      %v3776 = vld [vmem:[%s3 + $0x130] sm:$0xff]
      %v3777 = vld [vmem:[%s3 + $0x138] sm:$0xff]
      %v3778 = vld [vmem:[%s3 + $0x140] sm:$0xff]
      %v3779 = vld [vmem:[%s3 + $0x148] sm:$0xff]
      %v3780 = vld [vmem:[%s3 + $0x150] sm:$0xff]
      %v3781 = vld [vmem:[%s3 + $0x158] sm:$0xff]
      %v3782 = vld [vmem:[%s3 + $0x160] sm:$0xff]
      %v3783 = vld [vmem:[%s3 + $0x168] sm:$0xff]
      %v3784 = vld [vmem:[%s3 + $0x170] sm:$0xff]
      %v3785 = vld [vmem:[%s3 + $0x178] sm:$0xff]
      %v3786 = vld [vmem:[%s3 + $0x180] sm:$0xff]
      %v3787 = vld [vmem:[%s3 + $0x188] sm:$0xff]
      %v3788 = vld [vmem:[%s3 + $0x190] sm:$0xff]
      %v3789 = vld [vmem:[%s3 + $0x198] sm:$0xff]
      %v3790 = vld [vmem:[%s3 + $0x1a0] sm:$0xff]
      %v3791 = vld [vmem:[%s3 + $0x1a8] sm:$0xff]
      %v3792 = vld [vmem:[%s3 + $0x1b0] sm:$0xff]
      %v3793 = vld [vmem:[%s3 + $0x1b8] sm:$0xff]
      %v3794 = vld [vmem:[%s3 + $0x1c0] sm:$0xff]
      %v3795 = vld [vmem:[%s3 + $0x1c8] sm:$0xff]
      %v3796 = vld [vmem:[%s3 + $0x1d0] sm:$0xff]
      %v3797 = vld [vmem:[%s3 + $0x1d8] sm:$0xff]
      %v3798 = vld [vmem:[%s3 + $0x1e0] sm:$0xff]
      %v3799 = vld [vmem:[%s3 + $0x1e8] sm:$0xff]
      %v3800 = vld [vmem:[%s3 + $0x1f0] sm:$0xff]
      %v3801 = vld [vmem:[%s3 + $0x1f8] sm:$0xff]
      %v3802 = vld [vmem:[%s3 + $0x200] sm:$0xff]
      %v3803 = vld [vmem:[%s3 + $0x208] sm:$0xff]
      %v3804 = vld [vmem:[%s3 + $0x210] sm:$0xff]
      %v3805 = vld [vmem:[%s3 + $0x218] sm:$0xff]
      %v3806 = vld [vmem:[%s3 + $0x220] sm:$0xff]
      %v3807 = vld [vmem:[%s3 + $0x228] sm:$0xff]
      %v3808 = vld [vmem:[%s3 + $0x230] sm:$0xff]
      %v3809 = vld [vmem:[%s3 + $0x238] sm:$0xff]
      %v3810 = vld [vmem:[%s3 + $0x240] sm:$0xff]
      %v3811 = vld [vmem:[%s3 + $0x248] sm:$0xff]
      %v3812 = vld [vmem:[%s3 + $0x250] sm:$0xff]
      %v3813 = vld [vmem:[%s3 + $0x258] sm:$0xff]
      %v3814 = vld [vmem:[%s3 + $0x260] sm:$0xff]
      %v3815 = vld [vmem:[%s3 + $0x268] sm:$0xff]
      %v3816 = vld [vmem:[%s3 + $0x270] sm:$0xff]
      %v3817 = vld [vmem:[%s3 + $0x278] sm:$0xff]
      %v3818 = vld [vmem:[%s3 + $0x280] sm:$0xff]
      %v3819 = vld [vmem:[%s3 + $0x288] sm:$0xff]
      %v3820 = vld [vmem:[%s3 + $0x290] sm:$0xff]
      %v3821 = vld [vmem:[%s3 + $0x298] sm:$0xff]
      %v3822 = vld [vmem:[%s3 + $0x2a0] sm:$0xff]
      %v3823 = vld [vmem:[%s3 + $0x2a8] sm:$0xff]
      %v3824 = vld [vmem:[%s3 + $0x2b0] sm:$0xff]
      %v3825 = vld [vmem:[%s3 + $0x2b8] sm:$0xff]
      %v3826 = vld [vmem:[%s3 + $0x2c0] sm:$0xff]
      %v3827 = vld [vmem:[%s3 + $0x2c8] sm:$0xff]
      %v3828 = vld [vmem:[%s3 + $0x2d0] sm:$0xff]
      %v3829 = vld [vmem:[%s3 + $0x2d8] sm:$0xff]
      %v3830 = vld [vmem:[%s3 + $0x2e0] sm:$0xff]
      %v3831 = vld [vmem:[%s3 + $0x2e8] sm:$0xff]
      %v3832 = vld [vmem:[%s3 + $0x2f0] sm:$0xff]
      %v3833 = vld [vmem:[%s3 + $0x2f8] sm:$0xff]
      %v3834 = vld [vmem:[%s3 + $0x300] sm:$0xff]
      %v3835 = vld [vmem:[%s3 + $0x308] sm:$0xff]
      %v3836 = vld [vmem:[%s3 + $0x310] sm:$0xff]
      %v3837 = vld [vmem:[%s3 + $0x318] sm:$0xff]
      %v3838 = vld [vmem:[%s3 + $0x320] sm:$0xff]
      %v3839 = vld [vmem:[%s3 + $0x328] sm:$0xff]
      %v3840 = vld [vmem:[%s3 + $0x330] sm:$0xff]
      %v3841 = vld [vmem:[%s3 + $0x338] sm:$0xff]
      %v3842 = vld [vmem:[%s3 + $0x340] sm:$0xff]
      %v3843 = vld [vmem:[%s3 + $0x348] sm:$0xff]
      %v3844 = vld [vmem:[%s3 + $0x350] sm:$0xff]
      %v3845 = vld [vmem:[%s3 + $0x358] sm:$0xff]
      %v3846 = vld [vmem:[%s3 + $0x360] sm:$0xff]
      %v3847 = vld [vmem:[%s3 + $0x368] sm:$0xff]
      %v3848 = vld [vmem:[%s3 + $0x370] sm:$0xff]
      %v3849 = vld [vmem:[%s3 + $0x378] sm:$0xff]
      %v3850 = vld [vmem:[%s3 + $0x380] sm:$0xff]
      %v3851 = vld [vmem:[%s3 + $0x388] sm:$0xff]
      %v3852 = vld [vmem:[%s3 + $0x390] sm:$0xff]
      %v3853 = vld [vmem:[%s3 + $0x398] sm:$0xff]
      %v3854 = vld [vmem:[%s3 + $0x3a0] sm:$0xff]
      %v3855 = vld [vmem:[%s3 + $0x3a8] sm:$0xff]
      %v3856 = vld [vmem:[%s3 + $0x3b0] sm:$0xff]
      %v3857 = vld [vmem:[%s3 + $0x3b8] sm:$0xff]
      %v3858 = vld [vmem:[%s3 + $0x3c0] sm:$0xff]
      %v3859 = vld [vmem:[%s3 + $0x3c8] sm:$0xff]
      %v3860 = vld [vmem:[%s3 + $0x3d0] sm:$0xff]
      %v3861 = vld [vmem:[%s3 + $0x3d8] sm:$0xff]
      %v3862 = vld [vmem:[%s3 + $0x3e0] sm:$0xff]
      %v3863 = vld [vmem:[%s3 + $0x3e8] sm:$0xff]
      %v3864 = vld [vmem:[%s3 + $0x3f0] sm:$0xff]
      %v3865 = vld [vmem:[%s3 + $0x3f8] sm:$0xff]
      %v3866 = vld [vmem:[%s3 + $0x400] sm:$0xff]
      %v3867 = vld [vmem:[%s3 + $0x408] sm:$0xff]
      %v3868 = vld [vmem:[%s3 + $0x410] sm:$0xff]
      %v3869 = vld [vmem:[%s3 + $0x418] sm:$0xff]
      %v3870 = vld [vmem:[%s3 + $0x420] sm:$0xff]
      %v3871 = vld [vmem:[%s3 + $0x428] sm:$0xff]
      %v3872 = vld [vmem:[%s3 + $0x430] sm:$0xff]
      %v3873 = vld [vmem:[%s3 + $0x438] sm:$0xff]
      %v3874 = vld [vmem:[%s3 + $0x440] sm:$0xff]
      %v3875 = vld [vmem:[%s3 + $0x448] sm:$0xff]
      %v3876 = vld [vmem:[%s3 + $0x450] sm:$0xff]
      %v3877 = vld [vmem:[%s3 + $0x458] sm:$0xff]
      %v3878 = vld [vmem:[%s3 + $0x460] sm:$0xff]
      %v3879 = vld [vmem:[%s3 + $0x468] sm:$0xff]
      %v3880 = vld [vmem:[%s3 + $0x470] sm:$0xff]
      %v3881 = vld [vmem:[%s3 + $0x478] sm:$0xff]
      %v3882 = vld [vmem:[%s3 + $0x480] sm:$0xff]
      %v3883 = vld [vmem:[%s3 + $0x488] sm:$0xff]
      %v3884 = vld [vmem:[%s3 + $0x490] sm:$0xff]
      %v3885 = vld [vmem:[%s3 + $0x498] sm:$0xff]
      %v3886 = vld [vmem:[%s3 + $0x4a0] sm:$0xff]
      %v3887 = vld [vmem:[%s3 + $0x4a8] sm:$0xff]
      %v3888 = vld [vmem:[%s3 + $0x4b0] sm:$0xff]
      %v3889 = vld [vmem:[%s3 + $0x4b8] sm:$0xff]
      %v3890 = vld [vmem:[%s3 + $0x4c0] sm:$0xff]
      %v3891 = vld [vmem:[%s3 + $0x4c8] sm:$0xff]
      %v3892 = vld [vmem:[%s3 + $0x4d0] sm:$0xff]
      %v3893 = vld [vmem:[%s3 + $0x4d8] sm:$0xff]
      %v3894 = vld [vmem:[%s3 + $0x4e0] sm:$0xff]
      %v3895 = vld [vmem:[%s3 + $0x4e8] sm:$0xff]
      %v3896 = vld [vmem:[%s3 + $0x4f0] sm:$0xff]
      %v3897 = vld [vmem:[%s3 + $0x4f8] sm:$0xff]
      %v3898 = vld [vmem:[%s3 + $0x500] sm:$0xff]
      %v3899 = vld [vmem:[%s3 + $0x508] sm:$0xff]
      %v3900 = vld [vmem:[%s3 + $0x510] sm:$0xff]
      %v3901 = vld [vmem:[%s3 + $0x518] sm:$0xff]
      %v3902 = vld [vmem:[%s3 + $0x520] sm:$0xff]
      %v3903 = vld [vmem:[%s3 + $0x528] sm:$0xff]
      %v3904 = vld [vmem:[%s3 + $0x530] sm:$0xff]
      %v3905 = vld [vmem:[%s3 + $0x538] sm:$0xff]
      %v3906 = vld [vmem:[%s3 + $0x540] sm:$0xff]
      %v3907 = vld [vmem:[%s3 + $0x548] sm:$0xff]
      %v3908 = vld [vmem:[%s3 + $0x550] sm:$0xff]
      %v3909 = vld [vmem:[%s3 + $0x558] sm:$0xff]
      %v3910 = vld [vmem:[%s3 + $0x560] sm:$0xff]
      %v3911 = vld [vmem:[%s3 + $0x568] sm:$0xff]
      %v3912 = vld [vmem:[%s3 + $0x570] sm:$0xff]
      %v3913 = vld [vmem:[%s3 + $0x578] sm:$0xff]
      %v3914 = vld [vmem:[%s3 + $0x580] sm:$0xff]
      %v3915 = vld [vmem:[%s3 + $0x588] sm:$0xff]
      %v3916 = vld [vmem:[%s3 + $0x590] sm:$0xff]
      %v3917 = vld [vmem:[%s3 + $0x598] sm:$0xff]
      %v3918 = vld [vmem:[%s3 + $0x5a0] sm:$0xff]
      %v3919 = vld [vmem:[%s3 + $0x5a8] sm:$0xff]
      %v3920 = vld [vmem:[%s3 + $0x5b0] sm:$0xff]
      %v3921 = vld [vmem:[%s3 + $0x5b8] sm:$0xff]
      %v3922 = vld [vmem:[%s3 + $0x5c0] sm:$0xff]
      %v3923 = vld [vmem:[%s3 + $0x5c8] sm:$0xff]
      %v3924 = vld [vmem:[%s3 + $0x5d0] sm:$0xff]
      %v3925 = vld [vmem:[%s3 + $0x5d8] sm:$0xff]
      %v3926 = vld [vmem:[%s3 + $0x5e0] sm:$0xff]
      %v3927 = vld [vmem:[%s3 + $0x5e8] sm:$0xff]
      %v3928 = vld [vmem:[%s3 + $0x5f0] sm:$0xff]
      %v3929 = vld [vmem:[%s3 + $0x5f8] sm:$0xff]
      %v3930 = vld [vmem:[%s3 + $0x600] sm:$0xff]
      %v3931 = vld [vmem:[%s3 + $0x608] sm:$0xff]
      %v3932 = vld [vmem:[%s3 + $0x610] sm:$0xff]
      %v3933 = vld [vmem:[%s3 + $0x618] sm:$0xff]
      %v3934 = vld [vmem:[%s3 + $0x620] sm:$0xff]
      %v3935 = vld [vmem:[%s3 + $0x628] sm:$0xff]
      %v3936 = vld [vmem:[%s3 + $0x630] sm:$0xff]
      %v3937 = vld [vmem:[%s3 + $0x638] sm:$0xff]
      %v3938 = vld [vmem:[%s3 + $0x640] sm:$0xff]
      %v3939 = vld [vmem:[%s3 + $0x648] sm:$0xff]
      %v3940 = vld [vmem:[%s3 + $0x650] sm:$0xff]
      %v3941 = vld [vmem:[%s3 + $0x658] sm:$0xff]
      %v3942 = vld [vmem:[%s3 + $0x660] sm:$0xff]
      %v3943 = vld [vmem:[%s3 + $0x668] sm:$0xff]
      %v3944 = vld [vmem:[%s3 + $0x670] sm:$0xff]
      %v3945 = vld [vmem:[%s3 + $0x678] sm:$0xff]
      %v3946 = vld [vmem:[%s3 + $0x680] sm:$0xff]
      %v3947 = vld [vmem:[%s3 + $0x688] sm:$0xff]
      %v3948 = vld [vmem:[%s3 + $0x690] sm:$0xff]
      %v3949 = vld [vmem:[%s3 + $0x698] sm:$0xff]
      %v3950 = vld [vmem:[%s3 + $0x6a0] sm:$0xff]
      %v3951 = vld [vmem:[%s3 + $0x6a8] sm:$0xff]
      %v3952 = vld [vmem:[%s3 + $0x6b0] sm:$0xff]
      %v3953 = vld [vmem:[%s3 + $0x6b8] sm:$0xff]
      %v3954 = vld [vmem:[%s3 + $0x6c0] sm:$0xff]
      %v3955 = vld [vmem:[%s3 + $0x6c8] sm:$0xff]
      %v3956 = vld [vmem:[%s3 + $0x6d0] sm:$0xff]
      %v3957 = vld [vmem:[%s3 + $0x6d8] sm:$0xff]
      %v3958 = vld [vmem:[%s3 + $0x6e0] sm:$0xff]
      %v3959 = vld [vmem:[%s3 + $0x6e8] sm:$0xff]
      %v3960 = vld [vmem:[%s3 + $0x6f0] sm:$0xff]
      %v3961 = vld [vmem:[%s3 + $0x6f8] sm:$0xff]
      %v3962 = vld [vmem:[%s3 + $0x700] sm:$0xff]
      %v3963 = vld [vmem:[%s3 + $0x708] sm:$0xff]
      %v3964 = vld [vmem:[%s3 + $0x710] sm:$0xff]
      %v3965 = vld [vmem:[%s3 + $0x718] sm:$0xff]
      %v3966 = vld [vmem:[%s3 + $0x720] sm:$0xff]
      %v3967 = vld [vmem:[%s3 + $0x728] sm:$0xff]
      %v3968 = vld [vmem:[%s3 + $0x730] sm:$0xff]
      %v3969 = vld [vmem:[%s3 + $0x738] sm:$0xff]
      %v3970 = vld [vmem:[%s3 + $0x740] sm:$0xff]
      %v3971 = vld [vmem:[%s3 + $0x748] sm:$0xff]
      %v3972 = vld [vmem:[%s3 + $0x750] sm:$0xff]
      %v3973 = vld [vmem:[%s3 + $0x758] sm:$0xff]
      %v3974 = vld [vmem:[%s3 + $0x760] sm:$0xff]
      %v3975 = vld [vmem:[%s3 + $0x768] sm:$0xff]
      %v3976 = vld [vmem:[%s3 + $0x770] sm:$0xff]
      %v3977 = vld [vmem:[%s3 + $0x778] sm:$0xff]
      %v3978 = vld [vmem:[%s3 + $0x780] sm:$0xff]
      %v3979 = vld [vmem:[%s3 + $0x788] sm:$0xff]
      %v3980 = vld [vmem:[%s3 + $0x790] sm:$0xff]
      %v3981 = vld [vmem:[%s3 + $0x798] sm:$0xff]
      %v3982 = vld [vmem:[%s3 + $0x7a0] sm:$0xff]
      %v3983 = vld [vmem:[%s3 + $0x7a8] sm:$0xff]
      %v3984 = vld [vmem:[%s3 + $0x7b0] sm:$0xff]
      %v3985 = vld [vmem:[%s3 + $0x7b8] sm:$0xff]
      %v3986 = vld [vmem:[%s3 + $0x7c0] sm:$0xff]
      %v3987 = vld [vmem:[%s3 + $0x7c8] sm:$0xff]
      %v3988 = vld [vmem:[%s3 + $0x7d0] sm:$0xff]
      %v3989 = vld [vmem:[%s3 + $0x7d8] sm:$0xff]
      %v3990 = vld [vmem:[%s3 + $0x7e0] sm:$0xff]
      %v3991 = vld [vmem:[%s3 + $0x7e8] sm:$0xff]
      %v3992 = vld [vmem:[%s3 + $0x7f0] sm:$0xff]
      %v3993 = vld [vmem:[%s3 + $0x7f8] sm:$0xff]
      %v4250 = vunpack.c.l.b16 %v3738
      %v4251 = vunpack.c.h.b16 %v3738
      %v4252 = vunpack.c.l.b16 %v3739
      %v4253 = vunpack.c.h.b16 %v3739
      %v4254 = vunpack.c.l.b16 %v3740
      %v4255 = vunpack.c.h.b16 %v3740
      %v4256 = vunpack.c.l.b16 %v3741
      %v4257 = vunpack.c.h.b16 %v3741
      %v4258 = vunpack.c.l.b16 %v3742
      %v4259 = vunpack.c.h.b16 %v3742
      %v4260 = vunpack.c.l.b16 %v3743
      %v4261 = vunpack.c.h.b16 %v3743
      %v4262 = vunpack.c.l.b16 %v3744
      %v4263 = vunpack.c.h.b16 %v3744
      %v4264 = vunpack.c.l.b16 %v3745
      %v4265 = vunpack.c.h.b16 %v3745
      %v4266 = vunpack.c.l.b16 %v3746
      %v4267 = vunpack.c.h.b16 %v3746
      %v4268 = vunpack.c.l.b16 %v3747
      %v4269 = vunpack.c.h.b16 %v3747
      %v4270 = vunpack.c.l.b16 %v3748
      %v4271 = vunpack.c.h.b16 %v3748
      %v4272 = vunpack.c.l.b16 %v3749
      %v4273 = vunpack.c.h.b16 %v3749
      %v4274 = vunpack.c.l.b16 %v3750
      %v4275 = vunpack.c.h.b16 %v3750
      %v4276 = vunpack.c.l.b16 %v3751
      %v4277 = vunpack.c.h.b16 %v3751
      %v4278 = vunpack.c.l.b16 %v3752
      %v4279 = vunpack.c.h.b16 %v3752
      %v4280 = vunpack.c.l.b16 %v3753
      %v4281 = vunpack.c.h.b16 %v3753
      %v4282 = vunpack.c.l.b16 %v3754
      %v4283 = vunpack.c.h.b16 %v3754
      %v4284 = vunpack.c.l.b16 %v3755
      %v4285 = vunpack.c.h.b16 %v3755
      %v4286 = vunpack.c.l.b16 %v3756
      %v4287 = vunpack.c.h.b16 %v3756
      %v4288 = vunpack.c.l.b16 %v3757
      %v4289 = vunpack.c.h.b16 %v3757
      %v4290 = vunpack.c.l.b16 %v3758
      %v4291 = vunpack.c.h.b16 %v3758
      %v4292 = vunpack.c.l.b16 %v3759
      %v4293 = vunpack.c.h.b16 %v3759
      %v4294 = vunpack.c.l.b16 %v3760
      %v4295 = vunpack.c.h.b16 %v3760
      %v4296 = vunpack.c.l.b16 %v3761
      %v4297 = vunpack.c.h.b16 %v3761
      %v4298 = vunpack.c.l.b16 %v3762
      %v4299 = vunpack.c.h.b16 %v3762
      %v4300 = vunpack.c.l.b16 %v3763
      %v4301 = vunpack.c.h.b16 %v3763
      %v4302 = vunpack.c.l.b16 %v3764
      %v4303 = vunpack.c.h.b16 %v3764
      %v4304 = vunpack.c.l.b16 %v3765
      %v4305 = vunpack.c.h.b16 %v3765
      %v4306 = vunpack.c.l.b16 %v3766
      %v4307 = vunpack.c.h.b16 %v3766
      %v4308 = vunpack.c.l.b16 %v3767
      %v4309 = vunpack.c.h.b16 %v3767
      %v4310 = vunpack.c.l.b16 %v3768
      %v4311 = vunpack.c.h.b16 %v3768
      %v4312 = vunpack.c.l.b16 %v3769
      %v4313 = vunpack.c.h.b16 %v3769
      %v4314 = vunpack.c.l.b16 %v3770
      %v4315 = vunpack.c.h.b16 %v3770
      %v4316 = vunpack.c.l.b16 %v3771
      %v4317 = vunpack.c.h.b16 %v3771
      %v4318 = vunpack.c.l.b16 %v3772
      %v4319 = vunpack.c.h.b16 %v3772
      %v4320 = vunpack.c.l.b16 %v3773
      %v4321 = vunpack.c.h.b16 %v3773
      %v4322 = vunpack.c.l.b16 %v3774
      %v4323 = vunpack.c.h.b16 %v3774
      %v4324 = vunpack.c.l.b16 %v3775
      %v4325 = vunpack.c.h.b16 %v3775
      %v4326 = vunpack.c.l.b16 %v3776
      %v4327 = vunpack.c.h.b16 %v3776
      %v4328 = vunpack.c.l.b16 %v3777
      %v4329 = vunpack.c.h.b16 %v3777
      %v4330 = vunpack.c.l.b16 %v3778
      %v4331 = vunpack.c.h.b16 %v3778
      %v4332 = vunpack.c.l.b16 %v3779
      %v4333 = vunpack.c.h.b16 %v3779
      %v4334 = vunpack.c.l.b16 %v3780
      %v4335 = vunpack.c.h.b16 %v3780
      %v4336 = vunpack.c.l.b16 %v3781
      %v4337 = vunpack.c.h.b16 %v3781
      %v4338 = vunpack.c.l.b16 %v3782
      %v4339 = vunpack.c.h.b16 %v3782
      %v4340 = vunpack.c.l.b16 %v3783
      %v4341 = vunpack.c.h.b16 %v3783
      %v4342 = vunpack.c.l.b16 %v3784
      %v4343 = vunpack.c.h.b16 %v3784
      %v4344 = vunpack.c.l.b16 %v3785
      %v4345 = vunpack.c.h.b16 %v3785
      %v4346 = vunpack.c.l.b16 %v3786
      %v4347 = vunpack.c.h.b16 %v3786
      %v4348 = vunpack.c.l.b16 %v3787
      %v4349 = vunpack.c.h.b16 %v3787
      %v4350 = vunpack.c.l.b16 %v3788
      %v4351 = vunpack.c.h.b16 %v3788
      %v4352 = vunpack.c.l.b16 %v3789
      %v4353 = vunpack.c.h.b16 %v3789
      %v4354 = vunpack.c.l.b16 %v3790
      %v4355 = vunpack.c.h.b16 %v3790
      %v4356 = vunpack.c.l.b16 %v3791
      %v4357 = vunpack.c.h.b16 %v3791
      %v4358 = vunpack.c.l.b16 %v3792
      %v4359 = vunpack.c.h.b16 %v3792
      %v4360 = vunpack.c.l.b16 %v3793
      %v4361 = vunpack.c.h.b16 %v3793
      %v4362 = vunpack.c.l.b16 %v3794
      %v4363 = vunpack.c.h.b16 %v3794
      %v4364 = vunpack.c.l.b16 %v3795
      %v4365 = vunpack.c.h.b16 %v3795
      %v4366 = vunpack.c.l.b16 %v3796
      %v4367 = vunpack.c.h.b16 %v3796
      %v4368 = vunpack.c.l.b16 %v3797
      %v4369 = vunpack.c.h.b16 %v3797
      %v4370 = vunpack.c.l.b16 %v3798
      %v4371 = vunpack.c.h.b16 %v3798
      %v4372 = vunpack.c.l.b16 %v3799
      %v4373 = vunpack.c.h.b16 %v3799
      %v4374 = vunpack.c.l.b16 %v3800
      %v4375 = vunpack.c.h.b16 %v3800
      %v4376 = vunpack.c.l.b16 %v3801
      %v4377 = vunpack.c.h.b16 %v3801
      %v4378 = vunpack.c.l.b16 %v3802
      %v4379 = vunpack.c.h.b16 %v3802
      %v4380 = vunpack.c.l.b16 %v3803
      %v4381 = vunpack.c.h.b16 %v3803
      %v4382 = vunpack.c.l.b16 %v3804
      %v4383 = vunpack.c.h.b16 %v3804
      %v4384 = vunpack.c.l.b16 %v3805
      %v4385 = vunpack.c.h.b16 %v3805
      %v4386 = vunpack.c.l.b16 %v3806
      %v4387 = vunpack.c.h.b16 %v3806
      %v4388 = vunpack.c.l.b16 %v3807
      %v4389 = vunpack.c.h.b16 %v3807
      %v4390 = vunpack.c.l.b16 %v3808
      %v4391 = vunpack.c.h.b16 %v3808
      %v4392 = vunpack.c.l.b16 %v3809
      %v4393 = vunpack.c.h.b16 %v3809
      %v4394 = vunpack.c.l.b16 %v3810
      %v4395 = vunpack.c.h.b16 %v3810
      %v4396 = vunpack.c.l.b16 %v3811
      %v4397 = vunpack.c.h.b16 %v3811
      %v4398 = vunpack.c.l.b16 %v3812
      %v4399 = vunpack.c.h.b16 %v3812
      %v4400 = vunpack.c.l.b16 %v3813
      %v4401 = vunpack.c.h.b16 %v3813
      %v4402 = vunpack.c.l.b16 %v3814
      %v4403 = vunpack.c.h.b16 %v3814
      %v4404 = vunpack.c.l.b16 %v3815
      %v4405 = vunpack.c.h.b16 %v3815
      %v4406 = vunpack.c.l.b16 %v3816
      %v4407 = vunpack.c.h.b16 %v3816
      %v4408 = vunpack.c.l.b16 %v3817
      %v4409 = vunpack.c.h.b16 %v3817
      %v4410 = vunpack.c.l.b16 %v3818
      %v4411 = vunpack.c.h.b16 %v3818
      %v4412 = vunpack.c.l.b16 %v3819
      %v4413 = vunpack.c.h.b16 %v3819
      %v4414 = vunpack.c.l.b16 %v3820
      %v4415 = vunpack.c.h.b16 %v3820
      %v4416 = vunpack.c.l.b16 %v3821
      %v4417 = vunpack.c.h.b16 %v3821
      %v4418 = vunpack.c.l.b16 %v3822
      %v4419 = vunpack.c.h.b16 %v3822
      %v4420 = vunpack.c.l.b16 %v3823
      %v4421 = vunpack.c.h.b16 %v3823
      %v4422 = vunpack.c.l.b16 %v3824
      %v4423 = vunpack.c.h.b16 %v3824
      %v4424 = vunpack.c.l.b16 %v3825
      %v4425 = vunpack.c.h.b16 %v3825
      %v4426 = vunpack.c.l.b16 %v3826
      %v4427 = vunpack.c.h.b16 %v3826
      %v4428 = vunpack.c.l.b16 %v3827
      %v4429 = vunpack.c.h.b16 %v3827
      %v4430 = vunpack.c.l.b16 %v3828
      %v4431 = vunpack.c.h.b16 %v3828
      %v4432 = vunpack.c.l.b16 %v3829
      %v4433 = vunpack.c.h.b16 %v3829
      %v4434 = vunpack.c.l.b16 %v3830
      %v4435 = vunpack.c.h.b16 %v3830
      %v4436 = vunpack.c.l.b16 %v3831
      %v4437 = vunpack.c.h.b16 %v3831
      %v4438 = vunpack.c.l.b16 %v3832
      %v4439 = vunpack.c.h.b16 %v3832
      %v4440 = vunpack.c.l.b16 %v3833
      %v4441 = vunpack.c.h.b16 %v3833
      %v4442 = vunpack.c.l.b16 %v3834
      %v4443 = vunpack.c.h.b16 %v3834
      %v4444 = vunpack.c.l.b16 %v3835
      %v4445 = vunpack.c.h.b16 %v3835
      %v4446 = vunpack.c.l.b16 %v3836
      %v4447 = vunpack.c.h.b16 %v3836
      %v4448 = vunpack.c.l.b16 %v3837
      %v4449 = vunpack.c.h.b16 %v3837
      %v4450 = vunpack.c.l.b16 %v3838
      %v4451 = vunpack.c.h.b16 %v3838
      %v4452 = vunpack.c.l.b16 %v3839
      %v4453 = vunpack.c.h.b16 %v3839
      %v4454 = vunpack.c.l.b16 %v3840
      %v4455 = vunpack.c.h.b16 %v3840
      %v4456 = vunpack.c.l.b16 %v3841
      %v4457 = vunpack.c.h.b16 %v3841
      %v4458 = vunpack.c.l.b16 %v3842
      %v4459 = vunpack.c.h.b16 %v3842
      %v4460 = vunpack.c.l.b16 %v3843
      %v4461 = vunpack.c.h.b16 %v3843
      %v4462 = vunpack.c.l.b16 %v3844
      %v4463 = vunpack.c.h.b16 %v3844
      %v4464 = vunpack.c.l.b16 %v3845
      %v4465 = vunpack.c.h.b16 %v3845
      %v4466 = vunpack.c.l.b16 %v3846
      %v4467 = vunpack.c.h.b16 %v3846
      %v4468 = vunpack.c.l.b16 %v3847
      %v4469 = vunpack.c.h.b16 %v3847
      %v4470 = vunpack.c.l.b16 %v3848
      %v4471 = vunpack.c.h.b16 %v3848
      %v4472 = vunpack.c.l.b16 %v3849
      %v4473 = vunpack.c.h.b16 %v3849
      %v4474 = vunpack.c.l.b16 %v3850
      %v4475 = vunpack.c.h.b16 %v3850
      %v4476 = vunpack.c.l.b16 %v3851
      %v4477 = vunpack.c.h.b16 %v3851
      %v4478 = vunpack.c.l.b16 %v3852
      %v4479 = vunpack.c.h.b16 %v3852
      %v4480 = vunpack.c.l.b16 %v3853
      %v4481 = vunpack.c.h.b16 %v3853
      %v4482 = vunpack.c.l.b16 %v3854
      %v4483 = vunpack.c.h.b16 %v3854
      %v4484 = vunpack.c.l.b16 %v3855
      %v4485 = vunpack.c.h.b16 %v3855
      %v4486 = vunpack.c.l.b16 %v3856
      %v4487 = vunpack.c.h.b16 %v3856
      %v4488 = vunpack.c.l.b16 %v3857
      %v4489 = vunpack.c.h.b16 %v3857
      %v4490 = vunpack.c.l.b16 %v3858
      %v4491 = vunpack.c.h.b16 %v3858
      %v4492 = vunpack.c.l.b16 %v3859
      %v4493 = vunpack.c.h.b16 %v3859
      %v4494 = vunpack.c.l.b16 %v3860
      %v4495 = vunpack.c.h.b16 %v3860
      %v4496 = vunpack.c.l.b16 %v3861
      %v4497 = vunpack.c.h.b16 %v3861
      %v4498 = vunpack.c.l.b16 %v3862
      %v4499 = vunpack.c.h.b16 %v3862
      %v4500 = vunpack.c.l.b16 %v3863
      %v4501 = vunpack.c.h.b16 %v3863
      %v4502 = vunpack.c.l.b16 %v3864
      %v4503 = vunpack.c.h.b16 %v3864
      %v4504 = vunpack.c.l.b16 %v3865
      %v4505 = vunpack.c.h.b16 %v3865
      %v4506 = vunpack.c.l.b16 %v3866
      %v4507 = vunpack.c.h.b16 %v3866
      %v4508 = vunpack.c.l.b16 %v3867
      %v4509 = vunpack.c.h.b16 %v3867
      %v4510 = vunpack.c.l.b16 %v3868
      %v4511 = vunpack.c.h.b16 %v3868
      %v4512 = vunpack.c.l.b16 %v3869
      %v4513 = vunpack.c.h.b16 %v3869
      %v4514 = vunpack.c.l.b16 %v3870
      %v4515 = vunpack.c.h.b16 %v3870
      %v4516 = vunpack.c.l.b16 %v3871
      %v4517 = vunpack.c.h.b16 %v3871
      %v4518 = vunpack.c.l.b16 %v3872
      %v4519 = vunpack.c.h.b16 %v3872
      %v4520 = vunpack.c.l.b16 %v3873
      %v4521 = vunpack.c.h.b16 %v3873
      %v4522 = vunpack.c.l.b16 %v3874
      %v4523 = vunpack.c.h.b16 %v3874
      %v4524 = vunpack.c.l.b16 %v3875
      %v4525 = vunpack.c.h.b16 %v3875
      %v4526 = vunpack.c.l.b16 %v3876
      %v4527 = vunpack.c.h.b16 %v3876
      %v4528 = vunpack.c.l.b16 %v3877
      %v4529 = vunpack.c.h.b16 %v3877
      %v4530 = vunpack.c.l.b16 %v3878
      %v4531 = vunpack.c.h.b16 %v3878
      %v4532 = vunpack.c.l.b16 %v3879
      %v4533 = vunpack.c.h.b16 %v3879
      %v4534 = vunpack.c.l.b16 %v3880
      %v4535 = vunpack.c.h.b16 %v3880
      %v4536 = vunpack.c.l.b16 %v3881
      %v4537 = vunpack.c.h.b16 %v3881
      %v4538 = vunpack.c.l.b16 %v3882
      %v4539 = vunpack.c.h.b16 %v3882
      %v4540 = vunpack.c.l.b16 %v3883
      %v4541 = vunpack.c.h.b16 %v3883
      %v4542 = vunpack.c.l.b16 %v3884
      %v4543 = vunpack.c.h.b16 %v3884
      %v4544 = vunpack.c.l.b16 %v3885
      %v4545 = vunpack.c.h.b16 %v3885
      %v4546 = vunpack.c.l.b16 %v3886
      %v4547 = vunpack.c.h.b16 %v3886
      %v4548 = vunpack.c.l.b16 %v3887
      %v4549 = vunpack.c.h.b16 %v3887
      %v4550 = vunpack.c.l.b16 %v3888
      %v4551 = vunpack.c.h.b16 %v3888
      %v4552 = vunpack.c.l.b16 %v3889
      %v4553 = vunpack.c.h.b16 %v3889
      %v4554 = vunpack.c.l.b16 %v3890
      %v4555 = vunpack.c.h.b16 %v3890
      %v4556 = vunpack.c.l.b16 %v3891
      %v4557 = vunpack.c.h.b16 %v3891
      %v4558 = vunpack.c.l.b16 %v3892
      %v4559 = vunpack.c.h.b16 %v3892
      %v4560 = vunpack.c.l.b16 %v3893
      %v4561 = vunpack.c.h.b16 %v3893
      %v4562 = vunpack.c.l.b16 %v3894
      %v4563 = vunpack.c.h.b16 %v3894
      %v4564 = vunpack.c.l.b16 %v3895
      %v4565 = vunpack.c.h.b16 %v3895
      %v4566 = vunpack.c.l.b16 %v3896
      %v4567 = vunpack.c.h.b16 %v3896
      %v4568 = vunpack.c.l.b16 %v3897
      %v4569 = vunpack.c.h.b16 %v3897
      %v4570 = vunpack.c.l.b16 %v3898
      %v4571 = vunpack.c.h.b16 %v3898
      %v4572 = vunpack.c.l.b16 %v3899
      %v4573 = vunpack.c.h.b16 %v3899
      %v4574 = vunpack.c.l.b16 %v3900
      %v4575 = vunpack.c.h.b16 %v3900
      %v4576 = vunpack.c.l.b16 %v3901
      %v4577 = vunpack.c.h.b16 %v3901
      %v4578 = vunpack.c.l.b16 %v3902
      %v4579 = vunpack.c.h.b16 %v3902
      %v4580 = vunpack.c.l.b16 %v3903
      %v4581 = vunpack.c.h.b16 %v3903
      %v4582 = vunpack.c.l.b16 %v3904
      %v4583 = vunpack.c.h.b16 %v3904
      %v4584 = vunpack.c.l.b16 %v3905
      %v4585 = vunpack.c.h.b16 %v3905
      %v4586 = vunpack.c.l.b16 %v3906
      %v4587 = vunpack.c.h.b16 %v3906
      %v4588 = vunpack.c.l.b16 %v3907
      %v4589 = vunpack.c.h.b16 %v3907
      %v4590 = vunpack.c.l.b16 %v3908
      %v4591 = vunpack.c.h.b16 %v3908
      %v4592 = vunpack.c.l.b16 %v3909
      %v4593 = vunpack.c.h.b16 %v3909
      %v4594 = vunpack.c.l.b16 %v3910
      %v4595 = vunpack.c.h.b16 %v3910
      %v4596 = vunpack.c.l.b16 %v3911
      %v4597 = vunpack.c.h.b16 %v3911
      %v4598 = vunpack.c.l.b16 %v3912
      %v4599 = vunpack.c.h.b16 %v3912
      %v4600 = vunpack.c.l.b16 %v3913
      %v4601 = vunpack.c.h.b16 %v3913
      %v4602 = vunpack.c.l.b16 %v3914
      %v4603 = vunpack.c.h.b16 %v3914
      %v4604 = vunpack.c.l.b16 %v3915
      %v4605 = vunpack.c.h.b16 %v3915
      %v4606 = vunpack.c.l.b16 %v3916
      %v4607 = vunpack.c.h.b16 %v3916
      %v4608 = vunpack.c.l.b16 %v3917
      %v4609 = vunpack.c.h.b16 %v3917
      %v4610 = vunpack.c.l.b16 %v3918
      %v4611 = vunpack.c.h.b16 %v3918
      %v4612 = vunpack.c.l.b16 %v3919
      %v4613 = vunpack.c.h.b16 %v3919
      %v4614 = vunpack.c.l.b16 %v3920
      %v4615 = vunpack.c.h.b16 %v3920
      %v4616 = vunpack.c.l.b16 %v3921
      %v4617 = vunpack.c.h.b16 %v3921
      %v4618 = vunpack.c.l.b16 %v3922
      %v4619 = vunpack.c.h.b16 %v3922
      %v4620 = vunpack.c.l.b16 %v3923
      %v4621 = vunpack.c.h.b16 %v3923
      %v4622 = vunpack.c.l.b16 %v3924
      %v4623 = vunpack.c.h.b16 %v3924
      %v4624 = vunpack.c.l.b16 %v3925
      %v4625 = vunpack.c.h.b16 %v3925
      %v4626 = vunpack.c.l.b16 %v3926
      %v4627 = vunpack.c.h.b16 %v3926
      %v4628 = vunpack.c.l.b16 %v3927
      %v4629 = vunpack.c.h.b16 %v3927
      %v4630 = vunpack.c.l.b16 %v3928
      %v4631 = vunpack.c.h.b16 %v3928
      %v4632 = vunpack.c.l.b16 %v3929
      %v4633 = vunpack.c.h.b16 %v3929
      %v4634 = vunpack.c.l.b16 %v3930
      %v4635 = vunpack.c.h.b16 %v3930
      %v4636 = vunpack.c.l.b16 %v3931
      %v4637 = vunpack.c.h.b16 %v3931
      %v4638 = vunpack.c.l.b16 %v3932
      %v4639 = vunpack.c.h.b16 %v3932
      %v4640 = vunpack.c.l.b16 %v3933
      %v4641 = vunpack.c.h.b16 %v3933
      %v4642 = vunpack.c.l.b16 %v3934
      %v4643 = vunpack.c.h.b16 %v3934
      %v4644 = vunpack.c.l.b16 %v3935
      %v4645 = vunpack.c.h.b16 %v3935
      %v4646 = vunpack.c.l.b16 %v3936
      %v4647 = vunpack.c.h.b16 %v3936
      %v4648 = vunpack.c.l.b16 %v3937
      %v4649 = vunpack.c.h.b16 %v3937
      %v4650 = vunpack.c.l.b16 %v3938
      %v4651 = vunpack.c.h.b16 %v3938
      %v4652 = vunpack.c.l.b16 %v3939
      %v4653 = vunpack.c.h.b16 %v3939
      %v4654 = vunpack.c.l.b16 %v3940
      %v4655 = vunpack.c.h.b16 %v3940
      %v4656 = vunpack.c.l.b16 %v3941
      %v4657 = vunpack.c.h.b16 %v3941
      %v4658 = vunpack.c.l.b16 %v3942
      %v4659 = vunpack.c.h.b16 %v3942
      %v4660 = vunpack.c.l.b16 %v3943
      %v4661 = vunpack.c.h.b16 %v3943
      %v4662 = vunpack.c.l.b16 %v3944
      %v4663 = vunpack.c.h.b16 %v3944
      %v4664 = vunpack.c.l.b16 %v3945
      %v4665 = vunpack.c.h.b16 %v3945
      %v4666 = vunpack.c.l.b16 %v3946
      %v4667 = vunpack.c.h.b16 %v3946
      %v4668 = vunpack.c.l.b16 %v3947
      %v4669 = vunpack.c.h.b16 %v3947
      %v4670 = vunpack.c.l.b16 %v3948
      %v4671 = vunpack.c.h.b16 %v3948
      %v4672 = vunpack.c.l.b16 %v3949
      %v4673 = vunpack.c.h.b16 %v3949
      %v4674 = vunpack.c.l.b16 %v3950
      %v4675 = vunpack.c.h.b16 %v3950
      %v4676 = vunpack.c.l.b16 %v3951
      %v4677 = vunpack.c.h.b16 %v3951
      %v4678 = vunpack.c.l.b16 %v3952
      %v4679 = vunpack.c.h.b16 %v3952
      %v4680 = vunpack.c.l.b16 %v3953
      %v4681 = vunpack.c.h.b16 %v3953
      %v4682 = vunpack.c.l.b16 %v3954
      %v4683 = vunpack.c.h.b16 %v3954
      %v4684 = vunpack.c.l.b16 %v3955
      %v4685 = vunpack.c.h.b16 %v3955
      %v4686 = vunpack.c.l.b16 %v3956
      %v4687 = vunpack.c.h.b16 %v3956
      %v4688 = vunpack.c.l.b16 %v3957
      %v4689 = vunpack.c.h.b16 %v3957
      %v4690 = vunpack.c.l.b16 %v3958
      %v4691 = vunpack.c.h.b16 %v3958
      %v4692 = vunpack.c.l.b16 %v3959
      %v4693 = vunpack.c.h.b16 %v3959
      %v4694 = vunpack.c.l.b16 %v3960
      %v4695 = vunpack.c.h.b16 %v3960
      %v4696 = vunpack.c.l.b16 %v3961
      %v4697 = vunpack.c.h.b16 %v3961
      %v4698 = vunpack.c.l.b16 %v3962
      %v4699 = vunpack.c.h.b16 %v3962
      %v4700 = vunpack.c.l.b16 %v3963
      %v4701 = vunpack.c.h.b16 %v3963
      %v4702 = vunpack.c.l.b16 %v3964
      %v4703 = vunpack.c.h.b16 %v3964
      %v4704 = vunpack.c.l.b16 %v3965
      %v4705 = vunpack.c.h.b16 %v3965
      %v4706 = vunpack.c.l.b16 %v3966
      %v4707 = vunpack.c.h.b16 %v3966
      %v4708 = vunpack.c.l.b16 %v3967
      %v4709 = vunpack.c.h.b16 %v3967
      %v4710 = vunpack.c.l.b16 %v3968
      %v4711 = vunpack.c.h.b16 %v3968
      %v4712 = vunpack.c.l.b16 %v3969
      %v4713 = vunpack.c.h.b16 %v3969
      %v4714 = vunpack.c.l.b16 %v3970
      %v4715 = vunpack.c.h.b16 %v3970
      %v4716 = vunpack.c.l.b16 %v3971
      %v4717 = vunpack.c.h.b16 %v3971
      %v4718 = vunpack.c.l.b16 %v3972
      %v4719 = vunpack.c.h.b16 %v3972
      %v4720 = vunpack.c.l.b16 %v3973
      %v4721 = vunpack.c.h.b16 %v3973
      %v4722 = vunpack.c.l.b16 %v3974
      %v4723 = vunpack.c.h.b16 %v3974
      %v4724 = vunpack.c.l.b16 %v3975
      %v4725 = vunpack.c.h.b16 %v3975
      %v4726 = vunpack.c.l.b16 %v3976
      %v4727 = vunpack.c.h.b16 %v3976
      %v4728 = vunpack.c.l.b16 %v3977
      %v4729 = vunpack.c.h.b16 %v3977
      %v4730 = vunpack.c.l.b16 %v3978
      %v4731 = vunpack.c.h.b16 %v3978
      %v4732 = vunpack.c.l.b16 %v3979
      %v4733 = vunpack.c.h.b16 %v3979
      %v4734 = vunpack.c.l.b16 %v3980
      %v4735 = vunpack.c.h.b16 %v3980
      %v4736 = vunpack.c.l.b16 %v3981
      %v4737 = vunpack.c.h.b16 %v3981
      %v4738 = vunpack.c.l.b16 %v3982
      %v4739 = vunpack.c.h.b16 %v3982
      %v4740 = vunpack.c.l.b16 %v3983
      %v4741 = vunpack.c.h.b16 %v3983
      %v4742 = vunpack.c.l.b16 %v3984
      %v4743 = vunpack.c.h.b16 %v3984
      %v4744 = vunpack.c.l.b16 %v3985
      %v4745 = vunpack.c.h.b16 %v3985
      %v4746 = vunpack.c.l.b16 %v3986
      %v4747 = vunpack.c.h.b16 %v3986
      %v4748 = vunpack.c.l.b16 %v3987
      %v4749 = vunpack.c.h.b16 %v3987
      %v4750 = vunpack.c.l.b16 %v3988
      %v4751 = vunpack.c.h.b16 %v3988
      %v4752 = vunpack.c.l.b16 %v3989
      %v4753 = vunpack.c.h.b16 %v3989
      %v4754 = vunpack.c.l.b16 %v3990
      %v4755 = vunpack.c.h.b16 %v3990
      %v4756 = vunpack.c.l.b16 %v3991
      %v4757 = vunpack.c.h.b16 %v3991
      %v4758 = vunpack.c.l.b16 %v3992
      %v4759 = vunpack.c.h.b16 %v3992
      %v4760 = vunpack.c.l.b16 %v3993
      %v4761 = vunpack.c.h.b16 %v3993
      %v4762 = vpack.c.b16 %v4258, %v4250
      %v4763 = vpack.c.b16 %v4259, %v4251
      %v4764 = vpack.c.b16 %v4260, %v4252
      %v4765 = vpack.c.b16 %v4261, %v4253
      %v4766 = vpack.c.b16 %v4262, %v4254
      %v4767 = vpack.c.b16 %v4263, %v4255
      %v4768 = vpack.c.b16 %v4264, %v4256
      %v4769 = vpack.c.b16 %v4265, %v4257
      %v4770 = vpack.c.b16 %v4274, %v4266
      %v4771 = vpack.c.b16 %v4275, %v4267
      %v4772 = vpack.c.b16 %v4276, %v4268
      %v4773 = vpack.c.b16 %v4277, %v4269
      %v4774 = vpack.c.b16 %v4278, %v4270
      %v4775 = vpack.c.b16 %v4279, %v4271
      %v4776 = vpack.c.b16 %v4280, %v4272
      %v4777 = vpack.c.b16 %v4281, %v4273
      %v4778 = vpack.c.b16 %v4290, %v4282
      %v4779 = vpack.c.b16 %v4291, %v4283
      %v4780 = vpack.c.b16 %v4292, %v4284
      %v4781 = vpack.c.b16 %v4293, %v4285
      %v4782 = vpack.c.b16 %v4294, %v4286
      %v4783 = vpack.c.b16 %v4295, %v4287
      %v4784 = vpack.c.b16 %v4296, %v4288
      %v4785 = vpack.c.b16 %v4297, %v4289
      %v4786 = vpack.c.b16 %v4306, %v4298
      %v4787 = vpack.c.b16 %v4307, %v4299
      %v4788 = vpack.c.b16 %v4308, %v4300
      %v4789 = vpack.c.b16 %v4309, %v4301
      %v4790 = vpack.c.b16 %v4310, %v4302
      %v4791 = vpack.c.b16 %v4311, %v4303
      %v4792 = vpack.c.b16 %v4312, %v4304
      %v4793 = vpack.c.b16 %v4313, %v4305
      %v4794 = vpack.c.b16 %v4322, %v4314
      %v4795 = vpack.c.b16 %v4323, %v4315
      %v4796 = vpack.c.b16 %v4324, %v4316
      %v4797 = vpack.c.b16 %v4325, %v4317
      %v4798 = vpack.c.b16 %v4326, %v4318
      %v4799 = vpack.c.b16 %v4327, %v4319
      %v4800 = vpack.c.b16 %v4328, %v4320
      %v4801 = vpack.c.b16 %v4329, %v4321
      %v4802 = vpack.c.b16 %v4338, %v4330
      %v4803 = vpack.c.b16 %v4339, %v4331
      %v4804 = vpack.c.b16 %v4340, %v4332
      %v4805 = vpack.c.b16 %v4341, %v4333
      %v4806 = vpack.c.b16 %v4342, %v4334
      %v4807 = vpack.c.b16 %v4343, %v4335
      %v4808 = vpack.c.b16 %v4344, %v4336
      %v4809 = vpack.c.b16 %v4345, %v4337
      %v4810 = vpack.c.b16 %v4354, %v4346
      %v4811 = vpack.c.b16 %v4355, %v4347
      %v4812 = vpack.c.b16 %v4356, %v4348
      %v4813 = vpack.c.b16 %v4357, %v4349
      %v4814 = vpack.c.b16 %v4358, %v4350
      %v4815 = vpack.c.b16 %v4359, %v4351
      %v4816 = vpack.c.b16 %v4360, %v4352
      %v4817 = vpack.c.b16 %v4361, %v4353
      %v4818 = vpack.c.b16 %v4370, %v4362
      %v4819 = vpack.c.b16 %v4371, %v4363
      %v4820 = vpack.c.b16 %v4372, %v4364
      %v4821 = vpack.c.b16 %v4373, %v4365
      %v4822 = vpack.c.b16 %v4374, %v4366
      %v4823 = vpack.c.b16 %v4375, %v4367
      %v4824 = vpack.c.b16 %v4376, %v4368
      %v4825 = vpack.c.b16 %v4377, %v4369
      %v4826 = vpack.c.b16 %v4386, %v4378
      %v4827 = vpack.c.b16 %v4387, %v4379
      %v4828 = vpack.c.b16 %v4388, %v4380
      %v4829 = vpack.c.b16 %v4389, %v4381
      %v4830 = vpack.c.b16 %v4390, %v4382
      %v4831 = vpack.c.b16 %v4391, %v4383
      %v4832 = vpack.c.b16 %v4392, %v4384
      %v4833 = vpack.c.b16 %v4393, %v4385
      %v4834 = vpack.c.b16 %v4402, %v4394
      %v4835 = vpack.c.b16 %v4403, %v4395
      %v4836 = vpack.c.b16 %v4404, %v4396
      %v4837 = vpack.c.b16 %v4405, %v4397
      %v4838 = vpack.c.b16 %v4406, %v4398
      %v4839 = vpack.c.b16 %v4407, %v4399
      %v4840 = vpack.c.b16 %v4408, %v4400
      %v4841 = vpack.c.b16 %v4409, %v4401
      %v4842 = vpack.c.b16 %v4418, %v4410
      %v4843 = vpack.c.b16 %v4419, %v4411
      %v4844 = vpack.c.b16 %v4420, %v4412
      %v4845 = vpack.c.b16 %v4421, %v4413
      %v4846 = vpack.c.b16 %v4422, %v4414
      %v4847 = vpack.c.b16 %v4423, %v4415
      %v4848 = vpack.c.b16 %v4424, %v4416
      %v4849 = vpack.c.b16 %v4425, %v4417
      %v4850 = vpack.c.b16 %v4434, %v4426
      %v4851 = vpack.c.b16 %v4435, %v4427
      %v4852 = vpack.c.b16 %v4436, %v4428
      %v4853 = vpack.c.b16 %v4437, %v4429
      %v4854 = vpack.c.b16 %v4438, %v4430
      %v4855 = vpack.c.b16 %v4439, %v4431
      %v4856 = vpack.c.b16 %v4440, %v4432
      %v4857 = vpack.c.b16 %v4441, %v4433
      %v4858 = vpack.c.b16 %v4450, %v4442
      %v4859 = vpack.c.b16 %v4451, %v4443
      %v4860 = vpack.c.b16 %v4452, %v4444
      %v4861 = vpack.c.b16 %v4453, %v4445
      %v4862 = vpack.c.b16 %v4454, %v4446
      %v4863 = vpack.c.b16 %v4455, %v4447
      %v4864 = vpack.c.b16 %v4456, %v4448
      %v4865 = vpack.c.b16 %v4457, %v4449
      %v4866 = vpack.c.b16 %v4466, %v4458
      %v4867 = vpack.c.b16 %v4467, %v4459
      %v4868 = vpack.c.b16 %v4468, %v4460
      %v4869 = vpack.c.b16 %v4469, %v4461
      %v4870 = vpack.c.b16 %v4470, %v4462
      %v4871 = vpack.c.b16 %v4471, %v4463
      %v4872 = vpack.c.b16 %v4472, %v4464
      %v4873 = vpack.c.b16 %v4473, %v4465
      %v4874 = vpack.c.b16 %v4482, %v4474
      %v4875 = vpack.c.b16 %v4483, %v4475
      %v4876 = vpack.c.b16 %v4484, %v4476
      %v4877 = vpack.c.b16 %v4485, %v4477
      %v4878 = vpack.c.b16 %v4486, %v4478
      %v4879 = vpack.c.b16 %v4487, %v4479
      %v4880 = vpack.c.b16 %v4488, %v4480
      %v4881 = vpack.c.b16 %v4489, %v4481
      %v4882 = vpack.c.b16 %v4498, %v4490
      %v4883 = vpack.c.b16 %v4499, %v4491
      %v4884 = vpack.c.b16 %v4500, %v4492
      %v4885 = vpack.c.b16 %v4501, %v4493
      %v4886 = vpack.c.b16 %v4502, %v4494
      %v4887 = vpack.c.b16 %v4503, %v4495
      %v4888 = vpack.c.b16 %v4504, %v4496
      %v4889 = vpack.c.b16 %v4505, %v4497
      %v4890 = vpack.c.b16 %v4514, %v4506
      %v4891 = vpack.c.b16 %v4515, %v4507
      %v4892 = vpack.c.b16 %v4516, %v4508
      %v4893 = vpack.c.b16 %v4517, %v4509
      %v4894 = vpack.c.b16 %v4518, %v4510
      %v4895 = vpack.c.b16 %v4519, %v4511
      %v4896 = vpack.c.b16 %v4520, %v4512
      %v4897 = vpack.c.b16 %v4521, %v4513
      %v4898 = vpack.c.b16 %v4530, %v4522
      %v4899 = vpack.c.b16 %v4531, %v4523
      %v4900 = vpack.c.b16 %v4532, %v4524
      %v4901 = vpack.c.b16 %v4533, %v4525
      %v4902 = vpack.c.b16 %v4534, %v4526
      %v4903 = vpack.c.b16 %v4535, %v4527
      %v4904 = vpack.c.b16 %v4536, %v4528
      %v4905 = vpack.c.b16 %v4537, %v4529
      %v4906 = vpack.c.b16 %v4546, %v4538
      %v4907 = vpack.c.b16 %v4547, %v4539
      %v4908 = vpack.c.b16 %v4548, %v4540
      %v4909 = vpack.c.b16 %v4549, %v4541
      %v4910 = vpack.c.b16 %v4550, %v4542
      %v4911 = vpack.c.b16 %v4551, %v4543
      %v4912 = vpack.c.b16 %v4552, %v4544
      %v4913 = vpack.c.b16 %v4553, %v4545
      %v4914 = vpack.c.b16 %v4562, %v4554
      %v4915 = vpack.c.b16 %v4563, %v4555
      %v4916 = vpack.c.b16 %v4564, %v4556
      %v4917 = vpack.c.b16 %v4565, %v4557
      %v4918 = vpack.c.b16 %v4566, %v4558
      %v4919 = vpack.c.b16 %v4567, %v4559
      %v4920 = vpack.c.b16 %v4568, %v4560
      %v4921 = vpack.c.b16 %v4569, %v4561
      %v4922 = vpack.c.b16 %v4578, %v4570
      %v4923 = vpack.c.b16 %v4579, %v4571
      %v4924 = vpack.c.b16 %v4580, %v4572
      %v4925 = vpack.c.b16 %v4581, %v4573
      %v4926 = vpack.c.b16 %v4582, %v4574
      %v4927 = vpack.c.b16 %v4583, %v4575
      %v4928 = vpack.c.b16 %v4584, %v4576
      %v4929 = vpack.c.b16 %v4585, %v4577
      %v4930 = vpack.c.b16 %v4594, %v4586
      %v4931 = vpack.c.b16 %v4595, %v4587
      %v4932 = vpack.c.b16 %v4596, %v4588
      %v4933 = vpack.c.b16 %v4597, %v4589
      %v4934 = vpack.c.b16 %v4598, %v4590
      %v4935 = vpack.c.b16 %v4599, %v4591
      %v4936 = vpack.c.b16 %v4600, %v4592
      %v4937 = vpack.c.b16 %v4601, %v4593
      %v4938 = vpack.c.b16 %v4610, %v4602
      %v4939 = vpack.c.b16 %v4611, %v4603
      %v4940 = vpack.c.b16 %v4612, %v4604
      %v4941 = vpack.c.b16 %v4613, %v4605
      %v4942 = vpack.c.b16 %v4614, %v4606
      %v4943 = vpack.c.b16 %v4615, %v4607
      %v4944 = vpack.c.b16 %v4616, %v4608
      %v4945 = vpack.c.b16 %v4617, %v4609
      %v4946 = vpack.c.b16 %v4626, %v4618
      %v4947 = vpack.c.b16 %v4627, %v4619
      %v4948 = vpack.c.b16 %v4628, %v4620
      %v4949 = vpack.c.b16 %v4629, %v4621
      %v4950 = vpack.c.b16 %v4630, %v4622
      %v4951 = vpack.c.b16 %v4631, %v4623
      %v4952 = vpack.c.b16 %v4632, %v4624
      %v4953 = vpack.c.b16 %v4633, %v4625
      %v4954 = vpack.c.b16 %v4642, %v4634
      %v4955 = vpack.c.b16 %v4643, %v4635
      %v4956 = vpack.c.b16 %v4644, %v4636
      %v4957 = vpack.c.b16 %v4645, %v4637
      %v4958 = vpack.c.b16 %v4646, %v4638
      %v4959 = vpack.c.b16 %v4647, %v4639
      %v4960 = vpack.c.b16 %v4648, %v4640
      %v4961 = vpack.c.b16 %v4649, %v4641
      %v4962 = vpack.c.b16 %v4658, %v4650
      %v4963 = vpack.c.b16 %v4659, %v4651
      %v4964 = vpack.c.b16 %v4660, %v4652
      %v4965 = vpack.c.b16 %v4661, %v4653
      %v4966 = vpack.c.b16 %v4662, %v4654
      %v4967 = vpack.c.b16 %v4663, %v4655
      %v4968 = vpack.c.b16 %v4664, %v4656
      %v4969 = vpack.c.b16 %v4665, %v4657
      %v4970 = vpack.c.b16 %v4674, %v4666
      %v4971 = vpack.c.b16 %v4675, %v4667
      %v4972 = vpack.c.b16 %v4676, %v4668
      %v4973 = vpack.c.b16 %v4677, %v4669
      %v4974 = vpack.c.b16 %v4678, %v4670
      %v4975 = vpack.c.b16 %v4679, %v4671
      %v4976 = vpack.c.b16 %v4680, %v4672
      %v4977 = vpack.c.b16 %v4681, %v4673
      %v4978 = vpack.c.b16 %v4690, %v4682
      %v4979 = vpack.c.b16 %v4691, %v4683
      %v4980 = vpack.c.b16 %v4692, %v4684
      %v4981 = vpack.c.b16 %v4693, %v4685
      %v4982 = vpack.c.b16 %v4694, %v4686
      %v4983 = vpack.c.b16 %v4695, %v4687
      %v4984 = vpack.c.b16 %v4696, %v4688
      %v4985 = vpack.c.b16 %v4697, %v4689
      %v4986 = vpack.c.b16 %v4706, %v4698
      %v4987 = vpack.c.b16 %v4707, %v4699
      %v4988 = vpack.c.b16 %v4708, %v4700
      %v4989 = vpack.c.b16 %v4709, %v4701
      %v4990 = vpack.c.b16 %v4710, %v4702
      %v4991 = vpack.c.b16 %v4711, %v4703
      %v4992 = vpack.c.b16 %v4712, %v4704
      %v4993 = vpack.c.b16 %v4713, %v4705
      %v4994 = vpack.c.b16 %v4722, %v4714
      %v4995 = vpack.c.b16 %v4723, %v4715
      %v4996 = vpack.c.b16 %v4724, %v4716
      %v4997 = vpack.c.b16 %v4725, %v4717
      %v4998 = vpack.c.b16 %v4726, %v4718
      %v4999 = vpack.c.b16 %v4727, %v4719
      %v5000 = vpack.c.b16 %v4728, %v4720
      %v5001 = vpack.c.b16 %v4729, %v4721
      %v5002 = vpack.c.b16 %v4738, %v4730
      %v5003 = vpack.c.b16 %v4739, %v4731
      %v5004 = vpack.c.b16 %v4740, %v4732
      %v5005 = vpack.c.b16 %v4741, %v4733
      %v5006 = vpack.c.b16 %v4742, %v4734
      %v5007 = vpack.c.b16 %v4743, %v4735
      %v5008 = vpack.c.b16 %v4744, %v4736
      %v5009 = vpack.c.b16 %v4745, %v4737
      %v5010 = vpack.c.b16 %v4754, %v4746
      %v5011 = vpack.c.b16 %v4755, %v4747
      %v5012 = vpack.c.b16 %v4756, %v4748
      %v5013 = vpack.c.b16 %v4757, %v4749
      %v5014 = vpack.c.b16 %v4758, %v4750
      %v5015 = vpack.c.b16 %v4759, %v4751
      %v5016 = vpack.c.b16 %v4760, %v4752
      %v5017 = vpack.c.b16 %v4761, %v4753
      %5274 = vmatprep.subr.bf16.mxu0 %v4819
      %5275 = vmatpush1.bf16.msra.mxu0 %v4818
      %5276 = vmatprep.subr.bf16.mxu0 %v4811
      %5277 = vmatpush1.bf16.msra.mxu0 %v4810
      %5278 = vmatprep.subr.bf16.mxu0 %v4803
      %5279 = vmatpush1.bf16.msra.mxu0 %v4802
      %5280 = vmatprep.subr.bf16.mxu0 %v4795
      %5281 = vmatpush1.bf16.msra.mxu0 %v4794
      %5282 = vmatprep.subr.bf16.mxu0 %v4787
      %5283 = vmatpush1.bf16.msra.mxu0 %v4786
      %5284 = vmatprep.subr.bf16.mxu0 %v4779
      %5285 = vmatpush1.bf16.msra.mxu0 %v4778
      %5286 = vmatprep.subr.bf16.mxu0 %v4771
      %5287 = vmatpush1.bf16.msra.mxu0 %v4770
      %5288 = vmatprep.subr.bf16.mxu0 %v4763
      %5289 = vmatpush1.bf16.msra.mxu0 %v4762
      %5290 = vmatprep.subr.bf16.mxu0 %v4883
      %5291 = vmatpush2.bf16.msra.mxu0 %v4882
      %5292 = vmatprep.subr.bf16.mxu0 %v4875
      %5293 = vmatpush2.bf16.msra.mxu0 %v4874
      %5294 = vmatprep.subr.bf16.mxu0 %v4867
      %5295 = vmatpush2.bf16.msra.mxu0 %v4866
      %5296 = vmatprep.subr.bf16.mxu0 %v4859
      %5297 = vmatpush2.bf16.msra.mxu0 %v4858
      %5298 = vmatprep.subr.bf16.mxu0 %v4851
      %5299 = vmatpush2.bf16.msra.mxu0 %v4850
      %5300 = vmatprep.subr.bf16.mxu0 %v4843
      %5301 = vmatpush2.bf16.msra.mxu0 %v4842
      %5302 = vmatprep.subr.bf16.mxu0 %v4835
      %5303 = vmatpush2.bf16.msra.mxu0 %v4834
      %5304 = vmatprep.subr.bf16.mxu0 %v4827
      %5305 = vmatpush2.bf16.msra.mxu0 %v4826
      %5306 = vmatprep.mubr.bf16.mxu0 %v1315
      %5307 = vmatmul.mubr.bf16.gmra.mxu0 %v1314
      %v5308 = vpop.f32.mrf.mxu0
      %v5309 = vadd.f32 0.0, %v5308
      %v5310 = vpop.f32.mrf.mxu0
      %v5311 = vadd.f32 0.0, %v5310
      %v5312 = vpop.f32.mrf.mxu0
      %v5313 = vadd.f32 0.0, %v5312
      %v5314 = vpop.f32.mrf.mxu0
      %v5315 = vadd.f32 0.0, %v5314
      %5316 = vmatprep.mubr.bf16.mxu0 %v1319
      %5317 = vmatmul.mubr.bf16.gmra.mxu0 %v1318
      %v5318 = vpop.f32.mrf.mxu0
      %v5319 = vadd.f32 0.0, %v5318
      %v5320 = vpop.f32.mrf.mxu0
      %v5321 = vadd.f32 0.0, %v5320
      %v5322 = vpop.f32.mrf.mxu0
      %v5323 = vadd.f32 0.0, %v5322
      %v5324 = vpop.f32.mrf.mxu0
      %v5325 = vadd.f32 0.0, %v5324
      %5326 = vdwg.mxu0
      %5327 = vmatprep.subr.bf16.mxu0 %v4947
      %5328 = vmatpush1.bf16.msra.mxu0 %v4946
      %5329 = vmatprep.subr.bf16.mxu0 %v4939
      %5330 = vmatpush1.bf16.msra.mxu0 %v4938
      %5331 = vmatprep.subr.bf16.mxu0 %v4931
      %5332 = vmatpush1.bf16.msra.mxu0 %v4930
      %5333 = vmatprep.subr.bf16.mxu0 %v4923
      %5334 = vmatpush1.bf16.msra.mxu0 %v4922
      %5335 = vmatprep.subr.bf16.mxu0 %v4915
      %5336 = vmatpush1.bf16.msra.mxu0 %v4914
      %5337 = vmatprep.subr.bf16.mxu0 %v4907
      %5338 = vmatpush1.bf16.msra.mxu0 %v4906
      %5339 = vmatprep.subr.bf16.mxu0 %v4899
      %5340 = vmatpush1.bf16.msra.mxu0 %v4898
      %5341 = vmatprep.subr.bf16.mxu0 %v4891
      %5342 = vmatpush1.bf16.msra.mxu0 %v4890
      %5343 = vmatprep.subr.bf16.mxu0 %v5011
      %5344 = vmatpush2.bf16.msra.mxu0 %v5010
      %5345 = vmatprep.subr.bf16.mxu0 %v5003
      %5346 = vmatpush2.bf16.msra.mxu0 %v5002
      %5347 = vmatprep.subr.bf16.mxu0 %v4995
      %5348 = vmatpush2.bf16.msra.mxu0 %v4994
      %5349 = vmatprep.subr.bf16.mxu0 %v4987
      %5350 = vmatpush2.bf16.msra.mxu0 %v4986
      %5351 = vmatprep.subr.bf16.mxu0 %v4979
      %5352 = vmatpush2.bf16.msra.mxu0 %v4978
      %5353 = vmatprep.subr.bf16.mxu0 %v4971
      %5354 = vmatpush2.bf16.msra.mxu0 %v4970
      %5355 = vmatprep.subr.bf16.mxu0 %v4963
      %5356 = vmatpush2.bf16.msra.mxu0 %v4962
      %5357 = vmatprep.subr.bf16.mxu0 %v4955
      %5358 = vmatpush2.bf16.msra.mxu0 %v4954
      %5359 = vmatprep.mubr.bf16.mxu0 %v1317
      %5360 = vmatmul.mubr.bf16.gmra.mxu0 %v1316
      %v5361 = vpop.f32.mrf.mxu0
      %v5362 = vadd.f32 %v5309, %v5361
      %v5363 = vpop.f32.mrf.mxu0
      %v5364 = vadd.f32 %v5311, %v5363
      %v5365 = vpop.f32.mrf.mxu0
      %v5366 = vadd.f32 %v5313, %v5365
      %v5367 = vpop.f32.mrf.mxu0
      %v5368 = vadd.f32 %v5315, %v5367
      %5369 = vmatprep.mubr.bf16.mxu0 %v1321
      %5370 = vmatmul.mubr.bf16.gmra.mxu0 %v1320
      %v5371 = vpop.f32.mrf.mxu0
      %v5372 = vadd.f32 %v5319, %v5371
      %v5373 = vpop.f32.mrf.mxu0
      %v5374 = vadd.f32 %v5321, %v5373
      %v5375 = vpop.f32.mrf.mxu0
      %v5376 = vadd.f32 %v5323, %v5375
      %v5377 = vpop.f32.mrf.mxu0
      %v5378 = vadd.f32 %v5325, %v5377
      %5379 = vdwg.mxu0
      %5380 = vmatprep.subr.bf16.mxu0 %v4821
      %5381 = vmatpush1.bf16.msra.mxu0 %v4820
      %5382 = vmatprep.subr.bf16.mxu0 %v4813
      %5383 = vmatpush1.bf16.msra.mxu0 %v4812
      %5384 = vmatprep.subr.bf16.mxu0 %v4805
      %5385 = vmatpush1.bf16.msra.mxu0 %v4804
      %5386 = vmatprep.subr.bf16.mxu0 %v4797
      %5387 = vmatpush1.bf16.msra.mxu0 %v4796
      %5388 = vmatprep.subr.bf16.mxu0 %v4789
      %5389 = vmatpush1.bf16.msra.mxu0 %v4788
      %5390 = vmatprep.subr.bf16.mxu0 %v4781
      %5391 = vmatpush1.bf16.msra.mxu0 %v4780
      %5392 = vmatprep.subr.bf16.mxu0 %v4773
      %5393 = vmatpush1.bf16.msra.mxu0 %v4772
      %5394 = vmatprep.subr.bf16.mxu0 %v4765
      %5395 = vmatpush1.bf16.msra.mxu0 %v4764
      %5396 = vmatprep.subr.bf16.mxu0 %v4885
      %5397 = vmatpush2.bf16.msra.mxu0 %v4884
      %5398 = vmatprep.subr.bf16.mxu0 %v4877
      %5399 = vmatpush2.bf16.msra.mxu0 %v4876
      %5400 = vmatprep.subr.bf16.mxu0 %v4869
      %5401 = vmatpush2.bf16.msra.mxu0 %v4868
      %5402 = vmatprep.subr.bf16.mxu0 %v4861
      %5403 = vmatpush2.bf16.msra.mxu0 %v4860
      %5404 = vmatprep.subr.bf16.mxu0 %v4853
      %5405 = vmatpush2.bf16.msra.mxu0 %v4852
      %5406 = vmatprep.subr.bf16.mxu0 %v4845
      %5407 = vmatpush2.bf16.msra.mxu0 %v4844
      %5408 = vmatprep.subr.bf16.mxu0 %v4837
      %5409 = vmatpush2.bf16.msra.mxu0 %v4836
      %5410 = vmatprep.subr.bf16.mxu0 %v4829
      %5411 = vmatpush2.bf16.msra.mxu0 %v4828
      %5412 = vmatprep.mubr.bf16.mxu0 %v1315
      %5413 = vmatmul.mubr.bf16.gmra.mxu0 %v1314
      %v5414 = vpop.f32.mrf.mxu0
      %v5415 = vadd.f32 0.0, %v5414
      %v5416 = vpop.f32.mrf.mxu0
      %v5417 = vadd.f32 0.0, %v5416
      %v5418 = vpop.f32.mrf.mxu0
      %v5419 = vadd.f32 0.0, %v5418
      %v5420 = vpop.f32.mrf.mxu0
      %v5421 = vadd.f32 0.0, %v5420
      %5422 = vmatprep.mubr.bf16.mxu0 %v1319
      %5423 = vmatmul.mubr.bf16.gmra.mxu0 %v1318
      %v5424 = vpop.f32.mrf.mxu0
      %v5425 = vadd.f32 0.0, %v5424
      %v5426 = vpop.f32.mrf.mxu0
      %v5427 = vadd.f32 0.0, %v5426
      %v5428 = vpop.f32.mrf.mxu0
      %v5429 = vadd.f32 0.0, %v5428
      %v5430 = vpop.f32.mrf.mxu0
      %v5431 = vadd.f32 0.0, %v5430
      %5432 = vdwg.mxu0
      %5433 = vmatprep.subr.bf16.mxu0 %v4949
      %5434 = vmatpush1.bf16.msra.mxu0 %v4948
      %5435 = vmatprep.subr.bf16.mxu0 %v4941
      %5436 = vmatpush1.bf16.msra.mxu0 %v4940
      %5437 = vmatprep.subr.bf16.mxu0 %v4933
      %5438 = vmatpush1.bf16.msra.mxu0 %v4932
      %5439 = vmatprep.subr.bf16.mxu0 %v4925
      %5440 = vmatpush1.bf16.msra.mxu0 %v4924
      %5441 = vmatprep.subr.bf16.mxu0 %v4917
      %5442 = vmatpush1.bf16.msra.mxu0 %v4916
      %5443 = vmatprep.subr.bf16.mxu0 %v4909
      %5444 = vmatpush1.bf16.msra.mxu0 %v4908
      %5445 = vmatprep.subr.bf16.mxu0 %v4901
      %5446 = vmatpush1.bf16.msra.mxu0 %v4900
      %5447 = vmatprep.subr.bf16.mxu0 %v4893
      %5448 = vmatpush1.bf16.msra.mxu0 %v4892
      %5449 = vmatprep.subr.bf16.mxu0 %v5013
      %5450 = vmatpush2.bf16.msra.mxu0 %v5012
      %5451 = vmatprep.subr.bf16.mxu0 %v5005
      %5452 = vmatpush2.bf16.msra.mxu0 %v5004
      %5453 = vmatprep.subr.bf16.mxu0 %v4997
      %5454 = vmatpush2.bf16.msra.mxu0 %v4996
      %5455 = vmatprep.subr.bf16.mxu0 %v4989
      %5456 = vmatpush2.bf16.msra.mxu0 %v4988
      %5457 = vmatprep.subr.bf16.mxu0 %v4981
      %5458 = vmatpush2.bf16.msra.mxu0 %v4980
      %5459 = vmatprep.subr.bf16.mxu0 %v4973
      %5460 = vmatpush2.bf16.msra.mxu0 %v4972
      %5461 = vmatprep.subr.bf16.mxu0 %v4965
      %5462 = vmatpush2.bf16.msra.mxu0 %v4964
      %5463 = vmatprep.subr.bf16.mxu0 %v4957
      %5464 = vmatpush2.bf16.msra.mxu0 %v4956
      %5465 = vmatprep.mubr.bf16.mxu0 %v1317
      %5466 = vmatmul.mubr.bf16.gmra.mxu0 %v1316
      %v5467 = vpop.f32.mrf.mxu0
      %v5468 = vadd.f32 %v5415, %v5467
      %v5469 = vpop.f32.mrf.mxu0
      %v5470 = vadd.f32 %v5417, %v5469
      %v5471 = vpop.f32.mrf.mxu0
      %v5472 = vadd.f32 %v5419, %v5471
      %v5473 = vpop.f32.mrf.mxu0
      %v5474 = vadd.f32 %v5421, %v5473
      %5475 = vmatprep.mubr.bf16.mxu0 %v1321
      %5476 = vmatmul.mubr.bf16.gmra.mxu0 %v1320
      %v5477 = vpop.f32.mrf.mxu0
      %v5478 = vadd.f32 %v5425, %v5477
      %v5479 = vpop.f32.mrf.mxu0
      %v5480 = vadd.f32 %v5427, %v5479
      %v5481 = vpop.f32.mrf.mxu0
      %v5482 = vadd.f32 %v5429, %v5481
      %v5483 = vpop.f32.mrf.mxu0
      %v5484 = vadd.f32 %v5431, %v5483
      %5485 = vdwg.mxu0
      %5486 = vmatprep.subr.bf16.mxu0 %v4823
      %5487 = vmatpush1.bf16.msra.mxu0 %v4822
      %5488 = vmatprep.subr.bf16.mxu0 %v4815
      %5489 = vmatpush1.bf16.msra.mxu0 %v4814
      %5490 = vmatprep.subr.bf16.mxu0 %v4807
      %5491 = vmatpush1.bf16.msra.mxu0 %v4806
      %5492 = vmatprep.subr.bf16.mxu0 %v4799
      %5493 = vmatpush1.bf16.msra.mxu0 %v4798
      %5494 = vmatprep.subr.bf16.mxu0 %v4791
      %5495 = vmatpush1.bf16.msra.mxu0 %v4790
      %5496 = vmatprep.subr.bf16.mxu0 %v4783
      %5497 = vmatpush1.bf16.msra.mxu0 %v4782
      %5498 = vmatprep.subr.bf16.mxu0 %v4775
      %5499 = vmatpush1.bf16.msra.mxu0 %v4774
      %5500 = vmatprep.subr.bf16.mxu0 %v4767
      %5501 = vmatpush1.bf16.msra.mxu0 %v4766
      %5502 = vmatprep.subr.bf16.mxu0 %v4887
      %5503 = vmatpush2.bf16.msra.mxu0 %v4886
      %5504 = vmatprep.subr.bf16.mxu0 %v4879
      %5505 = vmatpush2.bf16.msra.mxu0 %v4878
      %5506 = vmatprep.subr.bf16.mxu0 %v4871
      %5507 = vmatpush2.bf16.msra.mxu0 %v4870
      %5508 = vmatprep.subr.bf16.mxu0 %v4863
      %5509 = vmatpush2.bf16.msra.mxu0 %v4862
      %5510 = vmatprep.subr.bf16.mxu0 %v4855
      %5511 = vmatpush2.bf16.msra.mxu0 %v4854
      %5512 = vmatprep.subr.bf16.mxu0 %v4847
      %5513 = vmatpush2.bf16.msra.mxu0 %v4846
      %5514 = vmatprep.subr.bf16.mxu0 %v4839
      %5515 = vmatpush2.bf16.msra.mxu0 %v4838
      %5516 = vmatprep.subr.bf16.mxu0 %v4831
      %5517 = vmatpush2.bf16.msra.mxu0 %v4830
      %5518 = vmatprep.mubr.bf16.mxu0 %v1315
      %5519 = vmatmul.mubr.bf16.gmra.mxu0 %v1314
      %v5520 = vpop.f32.mrf.mxu0
      %v5521 = vadd.f32 0.0, %v5520
      %v5522 = vpop.f32.mrf.mxu0
      %v5523 = vadd.f32 0.0, %v5522
      %v5524 = vpop.f32.mrf.mxu0
      %v5525 = vadd.f32 0.0, %v5524
      %v5526 = vpop.f32.mrf.mxu0
      %v5527 = vadd.f32 0.0, %v5526
      %5528 = vmatprep.mubr.bf16.mxu0 %v1319
      %5529 = vmatmul.mubr.bf16.gmra.mxu0 %v1318
      %v5530 = vpop.f32.mrf.mxu0
      %v5531 = vadd.f32 0.0, %v5530
      %v5532 = vpop.f32.mrf.mxu0
      %v5533 = vadd.f32 0.0, %v5532
      %v5534 = vpop.f32.mrf.mxu0
      %v5535 = vadd.f32 0.0, %v5534
      %v5536 = vpop.f32.mrf.mxu0
      %v5537 = vadd.f32 0.0, %v5536
      %5538 = vdwg.mxu0
      %5539 = vmatprep.subr.bf16.mxu0 %v4951
      %5540 = vmatpush1.bf16.msra.mxu0 %v4950
      %5541 = vmatprep.subr.bf16.mxu0 %v4943
      %5542 = vmatpush1.bf16.msra.mxu0 %v4942
      %5543 = vmatprep.subr.bf16.mxu0 %v4935
      %5544 = vmatpush1.bf16.msra.mxu0 %v4934
      %5545 = vmatprep.subr.bf16.mxu0 %v4927
      %5546 = vmatpush1.bf16.msra.mxu0 %v4926
      %5547 = vmatprep.subr.bf16.mxu0 %v4919
      %5548 = vmatpush1.bf16.msra.mxu0 %v4918
      %5549 = vmatprep.subr.bf16.mxu0 %v4911
      %5550 = vmatpush1.bf16.msra.mxu0 %v4910
      %5551 = vmatprep.subr.bf16.mxu0 %v4903
      %5552 = vmatpush1.bf16.msra.mxu0 %v4902
      %5553 = vmatprep.subr.bf16.mxu0 %v4895
      %5554 = vmatpush1.bf16.msra.mxu0 %v4894
      %5555 = vmatprep.subr.bf16.mxu0 %v5015
      %5556 = vmatpush2.bf16.msra.mxu0 %v5014
      %5557 = vmatprep.subr.bf16.mxu0 %v5007
      %5558 = vmatpush2.bf16.msra.mxu0 %v5006
      %5559 = vmatprep.subr.bf16.mxu0 %v4999
      %5560 = vmatpush2.bf16.msra.mxu0 %v4998
      %5561 = vmatprep.subr.bf16.mxu0 %v4991
      %5562 = vmatpush2.bf16.msra.mxu0 %v4990
      %5563 = vmatprep.subr.bf16.mxu0 %v4983
      %5564 = vmatpush2.bf16.msra.mxu0 %v4982
      %5565 = vmatprep.subr.bf16.mxu0 %v4975
      %5566 = vmatpush2.bf16.msra.mxu0 %v4974
      %5567 = vmatprep.subr.bf16.mxu0 %v4967
      %5568 = vmatpush2.bf16.msra.mxu0 %v4966
      %5569 = vmatprep.subr.bf16.mxu0 %v4959
      %5570 = vmatpush2.bf16.msra.mxu0 %v4958
      %5571 = vmatprep.mubr.bf16.mxu0 %v1317
      %5572 = vmatmul.mubr.bf16.gmra.mxu0 %v1316
      %v5573 = vpop.f32.mrf.mxu0
      %v5574 = vadd.f32 %v5521, %v5573
      %v5575 = vpop.f32.mrf.mxu0
      %v5576 = vadd.f32 %v5523, %v5575
      %v5577 = vpop.f32.mrf.mxu0
      %v5578 = vadd.f32 %v5525, %v5577
      %v5579 = vpop.f32.mrf.mxu0
      %v5580 = vadd.f32 %v5527, %v5579
      %5581 = vmatprep.mubr.bf16.mxu0 %v1321
      %5582 = vmatmul.mubr.bf16.gmra.mxu0 %v1320
      %v5583 = vpop.f32.mrf.mxu0
      %v5584 = vadd.f32 %v5531, %v5583
      %v5585 = vpop.f32.mrf.mxu0
      %v5586 = vadd.f32 %v5533, %v5585
      %v5587 = vpop.f32.mrf.mxu0
      %v5588 = vadd.f32 %v5535, %v5587
      %v5589 = vpop.f32.mrf.mxu0
      %v5590 = vadd.f32 %v5537, %v5589
      %5591 = vdwg.mxu0
      %5592 = vmatprep.subr.bf16.mxu0 %v4825
      %5593 = vmatpush1.bf16.msra.mxu0 %v4824
      %5594 = vmatprep.subr.bf16.mxu0 %v4817
      %5595 = vmatpush1.bf16.msra.mxu0 %v4816
      %5596 = vmatprep.subr.bf16.mxu0 %v4809
      %5597 = vmatpush1.bf16.msra.mxu0 %v4808
      %5598 = vmatprep.subr.bf16.mxu0 %v4801
      %5599 = vmatpush1.bf16.msra.mxu0 %v4800
      %5600 = vmatprep.subr.bf16.mxu0 %v4793
      %5601 = vmatpush1.bf16.msra.mxu0 %v4792
      %5602 = vmatprep.subr.bf16.mxu0 %v4785
      %5603 = vmatpush1.bf16.msra.mxu0 %v4784
      %5604 = vmatprep.subr.bf16.mxu0 %v4777
      %5605 = vmatpush1.bf16.msra.mxu0 %v4776
      %5606 = vmatprep.subr.bf16.mxu0 %v4769
      %5607 = vmatpush1.bf16.msra.mxu0 %v4768
      %5608 = vmatprep.subr.bf16.mxu0 %v4889
      %5609 = vmatpush2.bf16.msra.mxu0 %v4888
      %5610 = vmatprep.subr.bf16.mxu0 %v4881
      %5611 = vmatpush2.bf16.msra.mxu0 %v4880
      %5612 = vmatprep.subr.bf16.mxu0 %v4873
      %5613 = vmatpush2.bf16.msra.mxu0 %v4872
      %5614 = vmatprep.subr.bf16.mxu0 %v4865
      %5615 = vmatpush2.bf16.msra.mxu0 %v4864
      %5616 = vmatprep.subr.bf16.mxu0 %v4857
      %5617 = vmatpush2.bf16.msra.mxu0 %v4856
      %5618 = vmatprep.subr.bf16.mxu0 %v4849
      %5619 = vmatpush2.bf16.msra.mxu0 %v4848
      %5620 = vmatprep.subr.bf16.mxu0 %v4841
      %5621 = vmatpush2.bf16.msra.mxu0 %v4840
      %5622 = vmatprep.subr.bf16.mxu0 %v4833
      %5623 = vmatpush2.bf16.msra.mxu0 %v4832
      %5624 = vmatprep.mubr.bf16.mxu0 %v1315
      %5625 = vmatmul.mubr.bf16.gmra.mxu0 %v1314
      %v5626 = vpop.f32.mrf.mxu0
      %v5627 = vadd.f32 0.0, %v5626
      %v5628 = vpop.f32.mrf.mxu0
      %v5629 = vadd.f32 0.0, %v5628
      %v5630 = vpop.f32.mrf.mxu0
      %v5631 = vadd.f32 0.0, %v5630
      %v5632 = vpop.f32.mrf.mxu0
      %v5633 = vadd.f32 0.0, %v5632
      %5634 = vmatprep.mubr.bf16.mxu0 %v1319
      %5635 = vmatmul.mubr.bf16.gmra.mxu0 %v1318
      %v5636 = vpop.f32.mrf.mxu0
      %v5637 = vadd.f32 0.0, %v5636
      %v5638 = vpop.f32.mrf.mxu0
      %v5639 = vadd.f32 0.0, %v5638
      %v5640 = vpop.f32.mrf.mxu0
      %v5641 = vadd.f32 0.0, %v5640
      %v5642 = vpop.f32.mrf.mxu0
      %v5643 = vadd.f32 0.0, %v5642
      %5644 = vdwg.mxu0
      %5645 = vmatprep.subr.bf16.mxu0 %v4953
      %5646 = vmatpush1.bf16.msra.mxu0 %v4952
      %5647 = vmatprep.subr.bf16.mxu0 %v4945
      %5648 = vmatpush1.bf16.msra.mxu0 %v4944
      %5649 = vmatprep.subr.bf16.mxu0 %v4937
      %5650 = vmatpush1.bf16.msra.mxu0 %v4936
      %5651 = vmatprep.subr.bf16.mxu0 %v4929
      %5652 = vmatpush1.bf16.msra.mxu0 %v4928
      %5653 = vmatprep.subr.bf16.mxu0 %v4921
      %5654 = vmatpush1.bf16.msra.mxu0 %v4920
      %5655 = vmatprep.subr.bf16.mxu0 %v4913
      %5656 = vmatpush1.bf16.msra.mxu0 %v4912
      %5657 = vmatprep.subr.bf16.mxu0 %v4905
      %5658 = vmatpush1.bf16.msra.mxu0 %v4904
      %5659 = vmatprep.subr.bf16.mxu0 %v4897
      %5660 = vmatpush1.bf16.msra.mxu0 %v4896
      %5661 = vmatprep.subr.bf16.mxu0 %v5017
      %5662 = vmatpush2.bf16.msra.mxu0 %v5016
      %5663 = vmatprep.subr.bf16.mxu0 %v5009
      %5664 = vmatpush2.bf16.msra.mxu0 %v5008
      %5665 = vmatprep.subr.bf16.mxu0 %v5001
      %5666 = vmatpush2.bf16.msra.mxu0 %v5000
      %5667 = vmatprep.subr.bf16.mxu0 %v4993
      %5668 = vmatpush2.bf16.msra.mxu0 %v4992
      %5669 = vmatprep.subr.bf16.mxu0 %v4985
      %5670 = vmatpush2.bf16.msra.mxu0 %v4984
      %5671 = vmatprep.subr.bf16.mxu0 %v4977
      %5672 = vmatpush2.bf16.msra.mxu0 %v4976
      %5673 = vmatprep.subr.bf16.mxu0 %v4969
      %5674 = vmatpush2.bf16.msra.mxu0 %v4968
      %5675 = vmatprep.subr.bf16.mxu0 %v4961
      %5676 = vmatpush2.bf16.msra.mxu0 %v4960
      %5677 = vmatprep.mubr.bf16.mxu0 %v1317
      %5678 = vmatmul.mubr.bf16.gmra.mxu0 %v1316
      %v5679 = vpop.f32.mrf.mxu0
      %v5680 = vadd.f32 %v5627, %v5679
      %v5681 = vpop.f32.mrf.mxu0
      %v5682 = vadd.f32 %v5629, %v5681
      %v5683 = vpop.f32.mrf.mxu0
      %v5684 = vadd.f32 %v5631, %v5683
      %v5685 = vpop.f32.mrf.mxu0
      %v5686 = vadd.f32 %v5633, %v5685
      %5687 = vmatprep.mubr.bf16.mxu0 %v1321
      %5688 = vmatmul.mubr.bf16.gmra.mxu0 %v1320
      %v5689 = vpop.f32.mrf.mxu0
      %v5690 = vadd.f32 %v5637, %v5689
      %v5691 = vpop.f32.mrf.mxu0
      %v5692 = vadd.f32 %v5639, %v5691
      %v5693 = vpop.f32.mrf.mxu0
      %v5694 = vadd.f32 %v5641, %v5693
      %v5695 = vpop.f32.mrf.mxu0
      %v5696 = vadd.f32 %v5643, %v5695
      %5697 = vdwg.mxu0
      %5698 = vmatprep.subr.bf16.mxu0 %v4819
      %5699 = vmatpush1.bf16.msra.mxu0 %v4818
      %5700 = vmatprep.subr.bf16.mxu0 %v4811
      %5701 = vmatpush1.bf16.msra.mxu0 %v4810
      %5702 = vmatprep.subr.bf16.mxu0 %v4803
      %5703 = vmatpush1.bf16.msra.mxu0 %v4802
      %5704 = vmatprep.subr.bf16.mxu0 %v4795
      %5705 = vmatpush1.bf16.msra.mxu0 %v4794
      %5706 = vmatprep.subr.bf16.mxu0 %v4787
      %5707 = vmatpush1.bf16.msra.mxu0 %v4786
      %5708 = vmatprep.subr.bf16.mxu0 %v4779
      %5709 = vmatpush1.bf16.msra.mxu0 %v4778
      %5710 = vmatprep.subr.bf16.mxu0 %v4771
      %5711 = vmatpush1.bf16.msra.mxu0 %v4770
      %5712 = vmatprep.subr.bf16.mxu0 %v4763
      %5713 = vmatpush1.bf16.msra.mxu0 %v4762
      %5714 = vmatprep.subr.bf16.mxu0 %v4883
      %5715 = vmatpush2.bf16.msra.mxu0 %v4882
      %5716 = vmatprep.subr.bf16.mxu0 %v4875
      %5717 = vmatpush2.bf16.msra.mxu0 %v4874
      %5718 = vmatprep.subr.bf16.mxu0 %v4867
      %5719 = vmatpush2.bf16.msra.mxu0 %v4866
      %5720 = vmatprep.subr.bf16.mxu0 %v4859
      %5721 = vmatpush2.bf16.msra.mxu0 %v4858
      %5722 = vmatprep.subr.bf16.mxu0 %v4851
      %5723 = vmatpush2.bf16.msra.mxu0 %v4850
      %5724 = vmatprep.subr.bf16.mxu0 %v4843
      %5725 = vmatpush2.bf16.msra.mxu0 %v4842
      %5726 = vmatprep.subr.bf16.mxu0 %v4835
      %5727 = vmatpush2.bf16.msra.mxu0 %v4834
      %5728 = vmatprep.subr.bf16.mxu0 %v4827
      %5729 = vmatpush2.bf16.msra.mxu0 %v4826
      %5730 = vmatprep.mubr.bf16.mxu0 %v1275
      %5731 = vmatmul.mubr.bf16.gmra.mxu0 %v1274
      %v5732 = vpop.f32.mrf.mxu0
      %v5733 = vadd.f32 %v5362, %v5732
      %v5734 = vpop.f32.mrf.mxu0
      %v5735 = vadd.f32 %v5364, %v5734
      %v5736 = vpop.f32.mrf.mxu0
      %v5737 = vadd.f32 %v5366, %v5736
      %v5738 = vpop.f32.mrf.mxu0
      %v5739 = vadd.f32 %v5368, %v5738
      %5740 = vmatprep.mubr.bf16.mxu0 %v1279
      %5741 = vmatmul.mubr.bf16.gmra.mxu0 %v1278
      %v5742 = vpop.f32.mrf.mxu0
      %v5743 = vadd.f32 %v5372, %v5742
      %v5744 = vpop.f32.mrf.mxu0
      %v5745 = vadd.f32 %v5374, %v5744
      %v5746 = vpop.f32.mrf.mxu0
      %v5747 = vadd.f32 %v5376, %v5746
      %v5748 = vpop.f32.mrf.mxu0
      %v5749 = vadd.f32 %v5378, %v5748
      %5750 = vdwg.mxu0
      %5751 = vmatprep.subr.bf16.mxu0 %v4947
      %5752 = vmatpush1.bf16.msra.mxu0 %v4946
      %5753 = vmatprep.subr.bf16.mxu0 %v4939
      %5754 = vmatpush1.bf16.msra.mxu0 %v4938
      %5755 = vmatprep.subr.bf16.mxu0 %v4931
      %5756 = vmatpush1.bf16.msra.mxu0 %v4930
      %5757 = vmatprep.subr.bf16.mxu0 %v4923
      %5758 = vmatpush1.bf16.msra.mxu0 %v4922
      %5759 = vmatprep.subr.bf16.mxu0 %v4915
      %5760 = vmatpush1.bf16.msra.mxu0 %v4914
      %5761 = vmatprep.subr.bf16.mxu0 %v4907
      %5762 = vmatpush1.bf16.msra.mxu0 %v4906
      %5763 = vmatprep.subr.bf16.mxu0 %v4899
      %5764 = vmatpush1.bf16.msra.mxu0 %v4898
      %5765 = vmatprep.subr.bf16.mxu0 %v4891
      %5766 = vmatpush1.bf16.msra.mxu0 %v4890
      %5767 = vmatprep.subr.bf16.mxu0 %v5011
      %5768 = vmatpush2.bf16.msra.mxu0 %v5010
      %5769 = vmatprep.subr.bf16.mxu0 %v5003
      %5770 = vmatpush2.bf16.msra.mxu0 %v5002
      %5771 = vmatprep.subr.bf16.mxu0 %v4995
      %5772 = vmatpush2.bf16.msra.mxu0 %v4994
      %5773 = vmatprep.subr.bf16.mxu0 %v4987
      %5774 = vmatpush2.bf16.msra.mxu0 %v4986
      %5775 = vmatprep.subr.bf16.mxu0 %v4979
      %5776 = vmatpush2.bf16.msra.mxu0 %v4978
      %5777 = vmatprep.subr.bf16.mxu0 %v4971
      %5778 = vmatpush2.bf16.msra.mxu0 %v4970
      %5779 = vmatprep.subr.bf16.mxu0 %v4963
      %5780 = vmatpush2.bf16.msra.mxu0 %v4962
      %5781 = vmatprep.subr.bf16.mxu0 %v4955
      %5782 = vmatpush2.bf16.msra.mxu0 %v4954
      %5783 = vmatprep.mubr.bf16.mxu0 %v1277
      %5784 = vmatmul.mubr.bf16.gmra.mxu0 %v1276
      %v5785 = vpop.f32.mrf.mxu0
      %v5786 = vadd.f32 %v5733, %v5785
      %v5787 = vpop.f32.mrf.mxu0
      %v5788 = vadd.f32 %v5735, %v5787
      %v5789 = vpop.f32.mrf.mxu0
      %v5790 = vadd.f32 %v5737, %v5789
      %v5791 = vpop.f32.mrf.mxu0
      %v5792 = vadd.f32 %v5739, %v5791
      %5793 = vmatprep.mubr.bf16.mxu0 %v1281
      %5794 = vmatmul.mubr.bf16.gmra.mxu0 %v1280
      %v5795 = vpop.f32.mrf.mxu0
      %v5796 = vadd.f32 %v5743, %v5795
      %v5797 = vpop.f32.mrf.mxu0
      %v5798 = vadd.f32 %v5745, %v5797
      %v5799 = vpop.f32.mrf.mxu0
      %v5800 = vadd.f32 %v5747, %v5799
      %v5801 = vpop.f32.mrf.mxu0
      %v5802 = vadd.f32 %v5749, %v5801
      %5803 = vdwg.mxu0
      %5804 = vmatprep.subr.bf16.mxu0 %v4821
      %5805 = vmatpush1.bf16.msra.mxu0 %v4820
      %5806 = vmatprep.subr.bf16.mxu0 %v4813
      %5807 = vmatpush1.bf16.msra.mxu0 %v4812
      %5808 = vmatprep.subr.bf16.mxu0 %v4805
      %5809 = vmatpush1.bf16.msra.mxu0 %v4804
      %5810 = vmatprep.subr.bf16.mxu0 %v4797
      %5811 = vmatpush1.bf16.msra.mxu0 %v4796
      %5812 = vmatprep.subr.bf16.mxu0 %v4789
      %5813 = vmatpush1.bf16.msra.mxu0 %v4788
      %5814 = vmatprep.subr.bf16.mxu0 %v4781
      %5815 = vmatpush1.bf16.msra.mxu0 %v4780
      %5816 = vmatprep.subr.bf16.mxu0 %v4773
      %5817 = vmatpush1.bf16.msra.mxu0 %v4772
      %5818 = vmatprep.subr.bf16.mxu0 %v4765
      %5819 = vmatpush1.bf16.msra.mxu0 %v4764
      %5820 = vmatprep.subr.bf16.mxu0 %v4885
      %5821 = vmatpush2.bf16.msra.mxu0 %v4884
      %5822 = vmatprep.subr.bf16.mxu0 %v4877
      %5823 = vmatpush2.bf16.msra.mxu0 %v4876
      %5824 = vmatprep.subr.bf16.mxu0 %v4869
      %5825 = vmatpush2.bf16.msra.mxu0 %v4868
      %5826 = vmatprep.subr.bf16.mxu0 %v4861
      %5827 = vmatpush2.bf16.msra.mxu0 %v4860
      %5828 = vmatprep.subr.bf16.mxu0 %v4853
      %5829 = vmatpush2.bf16.msra.mxu0 %v4852
      %5830 = vmatprep.subr.bf16.mxu0 %v4845
      %5831 = vmatpush2.bf16.msra.mxu0 %v4844
      %5832 = vmatprep.subr.bf16.mxu0 %v4837
      %5833 = vmatpush2.bf16.msra.mxu0 %v4836
      %5834 = vmatprep.subr.bf16.mxu0 %v4829
      %5835 = vmatpush2.bf16.msra.mxu0 %v4828
      %5836 = vmatprep.mubr.bf16.mxu0 %v1275
      %5837 = vmatmul.mubr.bf16.gmra.mxu0 %v1274
      %v5838 = vpop.f32.mrf.mxu0
      %v5839 = vadd.f32 %v5468, %v5838
      %v5840 = vpop.f32.mrf.mxu0
      %v5841 = vadd.f32 %v5470, %v5840
      %v5842 = vpop.f32.mrf.mxu0
      %v5843 = vadd.f32 %v5472, %v5842
      %v5844 = vpop.f32.mrf.mxu0
      %v5845 = vadd.f32 %v5474, %v5844
      %5846 = vmatprep.mubr.bf16.mxu0 %v1279
      %5847 = vmatmul.mubr.bf16.gmra.mxu0 %v1278
      %v5848 = vpop.f32.mrf.mxu0
      %v5849 = vadd.f32 %v5478, %v5848
      %v5850 = vpop.f32.mrf.mxu0
      %v5851 = vadd.f32 %v5480, %v5850
      %v5852 = vpop.f32.mrf.mxu0
      %v5853 = vadd.f32 %v5482, %v5852
      %v5854 = vpop.f32.mrf.mxu0
      %v5855 = vadd.f32 %v5484, %v5854
      %5856 = vdwg.mxu0
      %5857 = vmatprep.subr.bf16.mxu0 %v4949
      %5858 = vmatpush1.bf16.msra.mxu0 %v4948
      %5859 = vmatprep.subr.bf16.mxu0 %v4941
      %5860 = vmatpush1.bf16.msra.mxu0 %v4940
      %5861 = vmatprep.subr.bf16.mxu0 %v4933
      %5862 = vmatpush1.bf16.msra.mxu0 %v4932
      %5863 = vmatprep.subr.bf16.mxu0 %v4925
      %5864 = vmatpush1.bf16.msra.mxu0 %v4924
      %5865 = vmatprep.subr.bf16.mxu0 %v4917
      %5866 = vmatpush1.bf16.msra.mxu0 %v4916
      %5867 = vmatprep.subr.bf16.mxu0 %v4909
      %5868 = vmatpush1.bf16.msra.mxu0 %v4908
      %5869 = vmatprep.subr.bf16.mxu0 %v4901
      %5870 = vmatpush1.bf16.msra.mxu0 %v4900
      %5871 = vmatprep.subr.bf16.mxu0 %v4893
      %5872 = vmatpush1.bf16.msra.mxu0 %v4892
      %5873 = vmatprep.subr.bf16.mxu0 %v5013
      %5874 = vmatpush2.bf16.msra.mxu0 %v5012
      %5875 = vmatprep.subr.bf16.mxu0 %v5005
      %5876 = vmatpush2.bf16.msra.mxu0 %v5004
      %5877 = vmatprep.subr.bf16.mxu0 %v4997
      %5878 = vmatpush2.bf16.msra.mxu0 %v4996
      %5879 = vmatprep.subr.bf16.mxu0 %v4989
      %5880 = vmatpush2.bf16.msra.mxu0 %v4988
      %5881 = vmatprep.subr.bf16.mxu0 %v4981
      %5882 = vmatpush2.bf16.msra.mxu0 %v4980
      %5883 = vmatprep.subr.bf16.mxu0 %v4973
      %5884 = vmatpush2.bf16.msra.mxu0 %v4972
      %5885 = vmatprep.subr.bf16.mxu0 %v4965
      %5886 = vmatpush2.bf16.msra.mxu0 %v4964
      %5887 = vmatprep.subr.bf16.mxu0 %v4957
      %5888 = vmatpush2.bf16.msra.mxu0 %v4956
      %5889 = vmatprep.mubr.bf16.mxu0 %v1277
      %5890 = vmatmul.mubr.bf16.gmra.mxu0 %v1276
      %v5891 = vpop.f32.mrf.mxu0
      %v5892 = vadd.f32 %v5839, %v5891
      %v5893 = vpop.f32.mrf.mxu0
      %v5894 = vadd.f32 %v5841, %v5893
      %v5895 = vpop.f32.mrf.mxu0
      %v5896 = vadd.f32 %v5843, %v5895
      %v5897 = vpop.f32.mrf.mxu0
      %v5898 = vadd.f32 %v5845, %v5897
      %5899 = vmatprep.mubr.bf16.mxu0 %v1281
      %5900 = vmatmul.mubr.bf16.gmra.mxu0 %v1280
      %v5901 = vpop.f32.mrf.mxu0
      %v5902 = vadd.f32 %v5849, %v5901
      %v5903 = vpop.f32.mrf.mxu0
      %v5904 = vadd.f32 %v5851, %v5903
      %v5905 = vpop.f32.mrf.mxu0
      %v5906 = vadd.f32 %v5853, %v5905
      %v5907 = vpop.f32.mrf.mxu0
      %v5908 = vadd.f32 %v5855, %v5907
      %5909 = vdwg.mxu0
      %5910 = vmatprep.subr.bf16.mxu0 %v4823
      %5911 = vmatpush1.bf16.msra.mxu0 %v4822
      %5912 = vmatprep.subr.bf16.mxu0 %v4815
      %5913 = vmatpush1.bf16.msra.mxu0 %v4814
      %5914 = vmatprep.subr.bf16.mxu0 %v4807
      %5915 = vmatpush1.bf16.msra.mxu0 %v4806
      %5916 = vmatprep.subr.bf16.mxu0 %v4799
      %5917 = vmatpush1.bf16.msra.mxu0 %v4798
      %5918 = vmatprep.subr.bf16.mxu0 %v4791
      %5919 = vmatpush1.bf16.msra.mxu0 %v4790
      %5920 = vmatprep.subr.bf16.mxu0 %v4783
      %5921 = vmatpush1.bf16.msra.mxu0 %v4782
      %5922 = vmatprep.subr.bf16.mxu0 %v4775
      %5923 = vmatpush1.bf16.msra.mxu0 %v4774
      %5924 = vmatprep.subr.bf16.mxu0 %v4767
      %5925 = vmatpush1.bf16.msra.mxu0 %v4766
      %5926 = vmatprep.subr.bf16.mxu0 %v4887
      %5927 = vmatpush2.bf16.msra.mxu0 %v4886
      %5928 = vmatprep.subr.bf16.mxu0 %v4879
      %5929 = vmatpush2.bf16.msra.mxu0 %v4878
      %5930 = vmatprep.subr.bf16.mxu0 %v4871
      %5931 = vmatpush2.bf16.msra.mxu0 %v4870
      %5932 = vmatprep.subr.bf16.mxu0 %v4863
      %5933 = vmatpush2.bf16.msra.mxu0 %v4862
      %5934 = vmatprep.subr.bf16.mxu0 %v4855
      %5935 = vmatpush2.bf16.msra.mxu0 %v4854
      %5936 = vmatprep.subr.bf16.mxu0 %v4847
      %5937 = vmatpush2.bf16.msra.mxu0 %v4846
      %5938 = vmatprep.subr.bf16.mxu0 %v4839
      %5939 = vmatpush2.bf16.msra.mxu0 %v4838
      %5940 = vmatprep.subr.bf16.mxu0 %v4831
      %5941 = vmatpush2.bf16.msra.mxu0 %v4830
      %5942 = vmatprep.mubr.bf16.mxu0 %v1275
      %5943 = vmatmul.mubr.bf16.gmra.mxu0 %v1274
      %v5944 = vpop.f32.mrf.mxu0
      %v5945 = vadd.f32 %v5574, %v5944
      %v5946 = vpop.f32.mrf.mxu0
      %v5947 = vadd.f32 %v5576, %v5946
      %v5948 = vpop.f32.mrf.mxu0
      %v5949 = vadd.f32 %v5578, %v5948
      %v5950 = vpop.f32.mrf.mxu0
      %v5951 = vadd.f32 %v5580, %v5950
      %5952 = vmatprep.mubr.bf16.mxu0 %v1279
      %5953 = vmatmul.mubr.bf16.gmra.mxu0 %v1278
      %v5954 = vpop.f32.mrf.mxu0
      %v5955 = vadd.f32 %v5584, %v5954
      %v5956 = vpop.f32.mrf.mxu0
      %v5957 = vadd.f32 %v5586, %v5956
      %v5958 = vpop.f32.mrf.mxu0
      %v5959 = vadd.f32 %v5588, %v5958
      %v5960 = vpop.f32.mrf.mxu0
      %v5961 = vadd.f32 %v5590, %v5960
      %5962 = vdwg.mxu0
      %5963 = vmatprep.subr.bf16.mxu0 %v4951
      %5964 = vmatpush1.bf16.msra.mxu0 %v4950
      %5965 = vmatprep.subr.bf16.mxu0 %v4943
      %5966 = vmatpush1.bf16.msra.mxu0 %v4942
      %5967 = vmatprep.subr.bf16.mxu0 %v4935
      %5968 = vmatpush1.bf16.msra.mxu0 %v4934
      %5969 = vmatprep.subr.bf16.mxu0 %v4927
      %5970 = vmatpush1.bf16.msra.mxu0 %v4926
      %5971 = vmatprep.subr.bf16.mxu0 %v4919
      %5972 = vmatpush1.bf16.msra.mxu0 %v4918
      %5973 = vmatprep.subr.bf16.mxu0 %v4911
      %5974 = vmatpush1.bf16.msra.mxu0 %v4910
      %5975 = vmatprep.subr.bf16.mxu0 %v4903
      %5976 = vmatpush1.bf16.msra.mxu0 %v4902
      %5977 = vmatprep.subr.bf16.mxu0 %v4895
      %5978 = vmatpush1.bf16.msra.mxu0 %v4894
      %5979 = vmatprep.subr.bf16.mxu0 %v5015
      %5980 = vmatpush2.bf16.msra.mxu0 %v5014
      %5981 = vmatprep.subr.bf16.mxu0 %v5007
      %5982 = vmatpush2.bf16.msra.mxu0 %v5006
      %5983 = vmatprep.subr.bf16.mxu0 %v4999
      %5984 = vmatpush2.bf16.msra.mxu0 %v4998
      %5985 = vmatprep.subr.bf16.mxu0 %v4991
      %5986 = vmatpush2.bf16.msra.mxu0 %v4990
      %5987 = vmatprep.subr.bf16.mxu0 %v4983
      %5988 = vmatpush2.bf16.msra.mxu0 %v4982
      %5989 = vmatprep.subr.bf16.mxu0 %v4975
      %5990 = vmatpush2.bf16.msra.mxu0 %v4974
      %5991 = vmatprep.subr.bf16.mxu0 %v4967
      %5992 = vmatpush2.bf16.msra.mxu0 %v4966
      %5993 = vmatprep.subr.bf16.mxu0 %v4959
      %5994 = vmatpush2.bf16.msra.mxu0 %v4958
      %5995 = vmatprep.mubr.bf16.mxu0 %v1277
      %5996 = vmatmul.mubr.bf16.gmra.mxu0 %v1276
      %v5997 = vpop.f32.mrf.mxu0
      %v5998 = vadd.f32 %v5945, %v5997
      %v5999 = vpop.f32.mrf.mxu0
      %v6000 = vadd.f32 %v5947, %v5999
      %v6001 = vpop.f32.mrf.mxu0
      %v6002 = vadd.f32 %v5949, %v6001
      %v6003 = vpop.f32.mrf.mxu0
      %v6004 = vadd.f32 %v5951, %v6003
      %6005 = vmatprep.mubr.bf16.mxu0 %v1281
      %6006 = vmatmul.mubr.bf16.gmra.mxu0 %v1280
      %v6007 = vpop.f32.mrf.mxu0
      %v6008 = vadd.f32 %v5955, %v6007
      %v6009 = vpop.f32.mrf.mxu0
      %v6010 = vadd.f32 %v5957, %v6009
      %v6011 = vpop.f32.mrf.mxu0
      %v6012 = vadd.f32 %v5959, %v6011
      %v6013 = vpop.f32.mrf.mxu0
      %v6014 = vadd.f32 %v5961, %v6013
      %6015 = vdwg.mxu0
      %6016 = vmatprep.subr.bf16.mxu0 %v4825
      %6017 = vmatpush1.bf16.msra.mxu0 %v4824
      %6018 = vmatprep.subr.bf16.mxu0 %v4817
      %6019 = vmatpush1.bf16.msra.mxu0 %v4816
      %6020 = vmatprep.subr.bf16.mxu0 %v4809
      %6021 = vmatpush1.bf16.msra.mxu0 %v4808
      %6022 = vmatprep.subr.bf16.mxu0 %v4801
      %6023 = vmatpush1.bf16.msra.mxu0 %v4800
      %6024 = vmatprep.subr.bf16.mxu0 %v4793
      %6025 = vmatpush1.bf16.msra.mxu0 %v4792
      %6026 = vmatprep.subr.bf16.mxu0 %v4785
      %6027 = vmatpush1.bf16.msra.mxu0 %v4784
      %6028 = vmatprep.subr.bf16.mxu0 %v4777
      %6029 = vmatpush1.bf16.msra.mxu0 %v4776
      %6030 = vmatprep.subr.bf16.mxu0 %v4769
      %6031 = vmatpush1.bf16.msra.mxu0 %v4768
      %6032 = vmatprep.subr.bf16.mxu0 %v4889
      %6033 = vmatpush2.bf16.msra.mxu0 %v4888
      %6034 = vmatprep.subr.bf16.mxu0 %v4881
      %6035 = vmatpush2.bf16.msra.mxu0 %v4880
      %6036 = vmatprep.subr.bf16.mxu0 %v4873
      %6037 = vmatpush2.bf16.msra.mxu0 %v4872
      %6038 = vmatprep.subr.bf16.mxu0 %v4865
      %6039 = vmatpush2.bf16.msra.mxu0 %v4864
      %6040 = vmatprep.subr.bf16.mxu0 %v4857
      %6041 = vmatpush2.bf16.msra.mxu0 %v4856
      %6042 = vmatprep.subr.bf16.mxu0 %v4849
      %6043 = vmatpush2.bf16.msra.mxu0 %v4848
      %6044 = vmatprep.subr.bf16.mxu0 %v4841
      %6045 = vmatpush2.bf16.msra.mxu0 %v4840
      %6046 = vmatprep.subr.bf16.mxu0 %v4833
      %6047 = vmatpush2.bf16.msra.mxu0 %v4832
      %6048 = vmatprep.mubr.bf16.mxu0 %v1275
      %6049 = vmatmul.mubr.bf16.gmra.mxu0 %v1274
      %v6050 = vpop.f32.mrf.mxu0
      %v6051 = vadd.f32 %v5680, %v6050
      %v6052 = vpop.f32.mrf.mxu0
      %v6053 = vadd.f32 %v5682, %v6052
      %v6054 = vpop.f32.mrf.mxu0
      %v6055 = vadd.f32 %v5684, %v6054
      %v6056 = vpop.f32.mrf.mxu0
      %v6057 = vadd.f32 %v5686, %v6056
      %6058 = vmatprep.mubr.bf16.mxu0 %v1279
      %6059 = vmatmul.mubr.bf16.gmra.mxu0 %v1278
      %v6060 = vpop.f32.mrf.mxu0
      %v6061 = vadd.f32 %v5690, %v6060
      %v6062 = vpop.f32.mrf.mxu0
      %v6063 = vadd.f32 %v5692, %v6062
      %v6064 = vpop.f32.mrf.mxu0
      %v6065 = vadd.f32 %v5694, %v6064
      %v6066 = vpop.f32.mrf.mxu0
      %v6067 = vadd.f32 %v5696, %v6066
      %6068 = vdwg.mxu0
      %6069 = vmatprep.subr.bf16.mxu0 %v4953
      %6070 = vmatpush1.bf16.msra.mxu0 %v4952
      %6071 = vmatprep.subr.bf16.mxu0 %v4945
      %6072 = vmatpush1.bf16.msra.mxu0 %v4944
      %6073 = vmatprep.subr.bf16.mxu0 %v4937
      %6074 = vmatpush1.bf16.msra.mxu0 %v4936
      %6075 = vmatprep.subr.bf16.mxu0 %v4929
      %6076 = vmatpush1.bf16.msra.mxu0 %v4928
      %6077 = vmatprep.subr.bf16.mxu0 %v4921
      %6078 = vmatpush1.bf16.msra.mxu0 %v4920
      %6079 = vmatprep.subr.bf16.mxu0 %v4913
      %6080 = vmatpush1.bf16.msra.mxu0 %v4912
      %6081 = vmatprep.subr.bf16.mxu0 %v4905
      %6082 = vmatpush1.bf16.msra.mxu0 %v4904
      %6083 = vmatprep.subr.bf16.mxu0 %v4897
      %6084 = vmatpush1.bf16.msra.mxu0 %v4896
      %6085 = vmatprep.subr.bf16.mxu0 %v5017
      %6086 = vmatpush2.bf16.msra.mxu0 %v5016
      %6087 = vmatprep.subr.bf16.mxu0 %v5009
      %6088 = vmatpush2.bf16.msra.mxu0 %v5008
      %6089 = vmatprep.subr.bf16.mxu0 %v5001
      %6090 = vmatpush2.bf16.msra.mxu0 %v5000
      %6091 = vmatprep.subr.bf16.mxu0 %v4993
      %6092 = vmatpush2.bf16.msra.mxu0 %v4992
      %6093 = vmatprep.subr.bf16.mxu0 %v4985
      %6094 = vmatpush2.bf16.msra.mxu0 %v4984
      %6095 = vmatprep.subr.bf16.mxu0 %v4977
      %6096 = vmatpush2.bf16.msra.mxu0 %v4976
      %6097 = vmatprep.subr.bf16.mxu0 %v4969
      %6098 = vmatpush2.bf16.msra.mxu0 %v4968
      %6099 = vmatprep.subr.bf16.mxu0 %v4961
      %6100 = vmatpush2.bf16.msra.mxu0 %v4960
      %6101 = vmatprep.mubr.bf16.mxu0 %v1277
      %6102 = vmatmul.mubr.bf16.gmra.mxu0 %v1276
      %v6103 = vpop.f32.mrf.mxu0
      %v6104 = vadd.f32 %v6051, %v6103
      %v6105 = vpop.f32.mrf.mxu0
      %v6106 = vadd.f32 %v6053, %v6105
      %v6107 = vpop.f32.mrf.mxu0
      %v6108 = vadd.f32 %v6055, %v6107
      %v6109 = vpop.f32.mrf.mxu0
      %v6110 = vadd.f32 %v6057, %v6109
      %6111 = vmatprep.mubr.bf16.mxu0 %v1281
      %6112 = vmatmul.mubr.bf16.gmra.mxu0 %v1280
      %v6113 = vpop.f32.mrf.mxu0
      %v6114 = vadd.f32 %v6061, %v6113
      %v6115 = vpop.f32.mrf.mxu0
      %v6116 = vadd.f32 %v6063, %v6115
      %v6117 = vpop.f32.mrf.mxu0
      %v6118 = vadd.f32 %v6065, %v6117
      %v6119 = vpop.f32.mrf.mxu0
      %v6120 = vadd.f32 %v6067, %v6119
      %6121 = vdwg.mxu0
      %6122 = vst [vmem:[%s247] sm:$0xff] %v5786
      %6123 = vst [vmem:[%s247 + $0x8] sm:$0xff] %v5788
      %6124 = vst [vmem:[%s247 + $0x10] sm:$0xff] %v5892
      %6125 = vst [vmem:[%s247 + $0x18] sm:$0xff] %v5894
      %6126 = vst [vmem:[%s247 + $0x20] sm:$0xff] %v5998
      %6127 = vst [vmem:[%s247 + $0x28] sm:$0xff] %v6000
      %6128 = vst [vmem:[%s247 + $0x30] sm:$0xff] %v6104
      %6129 = vst [vmem:[%s247 + $0x38] sm:$0xff] %v6106
      %6130 = vst [vmem:[%s247 + $0x40] sm:$0xff] %v5790
      %6131 = vst [vmem:[%s247 + $0x48] sm:$0xff] %v5792
      %6132 = vst [vmem:[%s247 + $0x50] sm:$0xff] %v5896
      %6133 = vst [vmem:[%s247 + $0x58] sm:$0xff] %v5898
      %6134 = vst [vmem:[%s247 + $0x60] sm:$0xff] %v6002
      %6135 = vst [vmem:[%s247 + $0x68] sm:$0xff] %v6004
      %6136 = vst [vmem:[%s247 + $0x70] sm:$0xff] %v6108
      %6137 = vst [vmem:[%s247 + $0x78] sm:$0xff] %v6110
      %6138 = vst [vmem:[%s247 + $0x80] sm:$0xff] %v5796
      %6139 = vst [vmem:[%s247 + $0x88] sm:$0xff] %v5798
      %6140 = vst [vmem:[%s247 + $0x90] sm:$0xff] %v5902
      %6141 = vst [vmem:[%s247 + $0x98] sm:$0xff] %v5904
      %6142 = vst [vmem:[%s247 + $0xa0] sm:$0xff] %v6008
      %6143 = vst [vmem:[%s247 + $0xa8] sm:$0xff] %v6010
      %6144 = vst [vmem:[%s247 + $0xb0] sm:$0xff] %v6114
      %6145 = vst [vmem:[%s247 + $0xb8] sm:$0xff] %v6116
      %6146 = vst [vmem:[%s247 + $0xc0] sm:$0xff] %v5800
      %6147 = vst [vmem:[%s247 + $0xc8] sm:$0xff] %v5802
      %6148 = vst [vmem:[%s247 + $0xd0] sm:$0xff] %v5906
      %6149 = vst [vmem:[%s247 + $0xd8] sm:$0xff] %v5908
      %6150 = vst [vmem:[%s247 + $0xe0] sm:$0xff] %v6012
      %6151 = vst [vmem:[%s247 + $0xe8] sm:$0xff] %v6014
      %6152 = vst [vmem:[%s247 + $0xf0] sm:$0xff] %v6118
      %6153 = vst [vmem:[%s247 + $0xf8] sm:$0xff] %v6120
      %s6154 = smul.u32 4, %s17
      %p6155 = scmp.lt.s32.totalorder %s6154, 7
      %s6156 = scalar_select %p6155, %s6154, 7
      %s6157 = smul.addr %s6156, 8
      %s6158 = smul.addr %s6157, 8
      %s6159 = scalar_lea.vmem %s4, %s6158
      %s6160 = smul.u32 4, %s17
      %p6161 = scmp.lt.s32.totalorder %s6160, 7
      %s6162 = scalar_select %p6161, %s6160, 7
      %s6163 = smul.addr %s6162, 8
      %s6164 = smul.addr %s6163, 8
      %s6165 = scalar_lea.vmem %s5, %s6164
      // Predicated region
      $region37: #{equivariant_basis.1} parent=35 // pred_check
        %p6166 = pneg %p124
      $region38: #{equivariant_basis.1} parent=35 // pred_check_branch
        %6168 = sbr.rel (%p6166) target = $region40
      $region39: #{equivariant_basis.1} parent=35 // pred_region
        %s6169 = smul.u32 4, %s17
      $region40: #{equivariant_basis.1} parent=35 // pred_fallthru
        _
      // Predicated region
      $region41: #{equivariant_basis.1} parent=35 // pred_check
        %p6170 = pneg %p150
      $region42: #{equivariant_basis.1} parent=35 // pred_check_branch
        %6172 = sbr.rel (%p6170) target = $region44
      $region43: #{equivariant_basis.1} parent=35 // pred_region
        %s6173 = smul.u32 4, %s17
      $region44: #{equivariant_basis.1} parent=35 // pred_fallthru
        _
    $region36: #{equivariant_basis.1} parent=5 // pred_fallthru
      _
    %p6174 = scmp.le.s32.totalorder 2, %s12
    // Predicated region
    $region45: #{equivariant_basis.1} parent=5 // pred_check
      %p6175 = pneg %p6174
    $region46: #{equivariant_basis.1} parent=5 // pred_check_branch
      %6177 = sbr.rel (%p6175) target = $region48
    $region47: #{equivariant_basis.1} parent=5 // pred_region
      %s6178 = ssub.s32 %s12, 2
      // Predicated region
      $region49: #{equivariant_basis.1} parent=47 // pred_check
        %p6179 = pneg %p130
      $region50: #{equivariant_basis.1} parent=47 // pred_check_branch
        %6181 = sbr.rel (%p6179) target = $region52
      $region51: #{equivariant_basis.1} parent=47 // pred_region
        %s6182 = smul.u32 4, %s18
        %p6183 = scmp.lt.s32.totalorder %s6182, 7
        %s6184 = scalar_select %p6183, %s6182, 7
        %s6185 = smul.addr %s6184, 8
        %s6186 = smul.addr %s6185, 8
        %s6187 = scalar_lea.vmem %s4, %s6186
      $region52: #{equivariant_basis.1} parent=47 // pred_fallthru
        _
      // Predicated region
      $region53: #{equivariant_basis.1} parent=47 // pred_check
        %p6188 = pneg %p156
      $region54: #{equivariant_basis.1} parent=47 // pred_check_branch
        %6190 = sbr.rel (%p6188) target = $region56
      $region55: #{equivariant_basis.1} parent=47 // pred_region
        %s6191 = smul.u32 4, %s18
        %p6192 = scmp.lt.s32.totalorder %s6191, 7
        %s6193 = scalar_select %p6192, %s6191, 7
        %s6194 = smul.addr %s6193, 8
        %s6195 = smul.addr %s6194, 8
        %s6196 = scalar_lea.vmem %s5, %s6195
      $region56: #{equivariant_basis.1} parent=47 // pred_fallthru
        _
    $region48: #{equivariant_basis.1} parent=5 // pred_fallthru
      _
  $region6: #{equivariant_basis.1} parent=0 // loop_footer
    %s16 = sadd.s32 1, %s12
  $region7: #{equivariant_basis.1} parent=0 // loop_footer_branch
    %11 = sbr.rel target = $region3
  $region8: #{equivariant_basis.1} parent=0 // loop_exit
    _

</llo_original>
